<compile_context>
chip_gen: v7x
topology: tpu7x:2x2x1
jax: 0.10.0
libtpu: 0.0.40
codegen_flags: <defaults>
</compile_context>

<pallas_src>
import functools
import math

import numpy as np
import jax
import jax.numpy as jnp
from jax import lax
from jax.experimental import pallas as pl
from jax.experimental.pallas import tpu as pltpu


# ----------------------------------------------------------------------------
# Pallas kernel: one grid point = (batch element, query tile), all heads fused.
# ----------------------------------------------------------------------------
def _mha_kernel(x_q_ref, x_kv_ref, wq_ref, wk_ref, wv_ref, wo_ref, emb_ref,
                *rest, n_head, d_qkv, seq_len, q_tile, rel_offset, use_bias,
                use_roll):
    if use_bias:
        bias_ref, out_ref, acc_ref = rest
    else:
        out_ref, acc_ref = rest

    T, tq, off = seq_len, q_tile, rel_offset
    R = emb_ref.shape[1]                          # lane-padded relative width
    q0 = pl.program_id(1) * tq                    # first global query row

    x_q = x_q_ref[0]                              # [tq, Dm] bf16
    x_kv = x_kv_ref[0]                            # [T,  Dm] bf16

    # Head-fused projections: one wide MXU matmul each (bf16 in, f32 acc),
    # one bf16 cast per tensor for the downstream bf16 MXU matmuls.
    # 1/sqrt(d_qkv) is already folded into wk (wrapper side).
    q = jnp.dot(x_q, wq_ref[...],
                preferred_element_type=jnp.float32).astype(jnp.bfloat16)
    k = jnp.dot(x_kv, wk_ref[...],
                preferred_element_type=jnp.float32).astype(jnp.bfloat16)
    v = jnp.dot(x_kv, wv_ref[...],
                preferred_element_type=jnp.float32).astype(jnp.bfloat16)

    if use_bias:
        # Hoisted once (JAX does not CSE broadcast_in_dim): -1e8 on
        # out-of-range relative positions, pre-skew on the relative axis.
        bias_full = jnp.broadcast_to(bias_ref[...], (tq, R))

    for h in range(n_head):                       # static unroll over heads
        sl = slice(h * d_qkv, (h + 1) * d_qkv)
        q_h, k_h, v_h = q[:, sl], k[:, sl], v[:, sl]

        # Content logits (K already carries the 1/sqrt(dq) scale): [tq, T] f32.
        logits = jnp.einsum('qd,kd->qk', q_h, k_h,
                            preferred_element_type=jnp.float32)

        # Relative-position logits against the lane-padded table: [tq, R] f32.
        rel = jnp.einsum('qd,md->qm', q_h, emb_ref[h],
                         preferred_element_type=jnp.float32)
        if use_bias:
            rel = rel + bias_full

        # Relative -> absolute skew: pos[i, j] = rel[i, j + off - (q0 + i)].
        if use_roll:
            # Row i rolled (toward higher lane indices) by q0 + i — a single
            # strided XLU op — then one 128-aligned static column slice.
            rolled = pltpu.roll(rel, q0, axis=1, stride=1, stride_axis=0)
            pos = rolled[:, off:off + T]
        else:
            # Fallback (single query tile, q0 == 0): static per-row slices.
            pos = jnp.concatenate(
                [rel[i:i + 1, off - i:off - i + T] for i in range(tq)], axis=0)

        logits = logits + pos

        # Softmax over keys in f32; normalisation moved AFTER the PV matmul
        # ([tq, dq] multiply instead of [tq, T]); reciprocal on the EUP slot.
        logits = logits - jnp.max(logits, axis=-1, keepdims=True)
        p = jnp.exp(logits)
        denom = jnp.sum(p, axis=-1, keepdims=True)
        # TODO(synk): nn.Dropout(0.1) on the attention probabilities is identity
        # in eval mode; training-mode stochastic dropout is not reproduced.
        o_h = jnp.dot(p.astype(jnp.bfloat16), v_h,
                      preferred_element_type=jnp.float32)           # [tq, dq]
        o_h = o_h * pl.reciprocal(denom, approx=True)

        # Per-head output projection accumulated into VMEM scratch (bounds live
        # ranges; no heads_out list / concat).
        contrib = jnp.dot(o_h.astype(jnp.bfloat16), wo_ref[sl, :],
                          preferred_element_type=jnp.float32)       # [tq, Dm]
        if h == 0:
            acc_ref[...] = contrib
        else:
            acc_ref[...] += contrib

    out_ref[0] = acc_ref[...].astype(out_ref.dtype)


# ----------------------------------------------------------------------------
# Wrapper: parameter packing / relative-table setup in plain JAX.
# ----------------------------------------------------------------------------
def _pick_query_tile(T):
    for cand in (512, 256, 128):
        if T % cand == 0:
            return cand
    return T


def multi_head_attention(x, w_q, w_k, w_v, w_o, rel_emb, max_relative_pos):
    """x: [T, B, d_model] float32 -> out: [T, B, d_model] float32."""
    T, B, Dm = x.shape
    H, _, dq = w_q.shape
    scale = float(dq) ** -0.5

    # --- LearnedRelativePositionalEmbedding.get_embeddings_for_query (unmasked)
    emb = rel_emb[..., 0]                                   # [H, 2*max_rel-1, dq]
    pad = max(T - max_relative_pos, 0)
    start = max(max_relative_pos - T, 0)
    emb = jnp.pad(emb, ((0, 0), (pad, pad), (0, 0)))
    emb_used = lax.dynamic_slice_in_dim(emb, start, 2 * T - 1, axis=1)  # [H,2T-1,dq]

    # Zero-pad the relative axis so the skew's column slice starts at a
    # lane-aligned offset and the roll width is a multiple of 128.
    pad_left = (-(T - 1)) % 128
    R = pl.cdiv(pad_left + 2 * T - 1, 128) * 128
    pad_right = R - pad_left - (2 * T - 1)
    emb_padded = jnp.pad(
        emb_used, ((0, 0), (pad_left, pad_right), (0, 0))).astype(jnp.bfloat16)
    off = pad_left + T - 1                                  # multiple of 128

    # Head-fused projection weights (bf16 for the MXU); 1/sqrt(dq) folded into K.
    wq_f = jnp.transpose(w_q, (1, 0, 2)).reshape(Dm, H * dq).astype(jnp.bfloat16)
    wk_f = (jnp.transpose(w_k, (1, 0, 2)).reshape(Dm, H * dq) * scale
            ).astype(jnp.bfloat16)
    wv_f = jnp.transpose(w_v, (1, 0, 2)).reshape(Dm, H * dq).astype(jnp.bfloat16)
    wo_f = w_o.reshape(H * dq, Dm).astype(jnp.bfloat16)

    # TODO(synk): for short-T / large-B workloads, read/write the original
    # [T, B, Dm] layout directly (strided sublane DMA) instead of these two
    # HBM round-trip transposes.
    x_bt = jnp.transpose(x, (1, 0, 2)).astype(jnp.bfloat16)  # [B, T, Dm]

    use_bias = pad > 0                                        # static Python branch
    if use_bias:
        bias_np = np.zeros((1, R), np.float32)
        bias_np[0, pad_left:pad_left + pad] = -1e8
        bias_np[0, pad_left + 2 * T - 1 - pad:pad_left + 2 * T - 1] = -1e8
        bias = jnp.asarray(bias_np)

    def run(tq, use_roll):
        inputs = [x_bt, x_bt, wq_f, wk_f, wv_f, wo_f, emb_padded]
        in_specs = [
            pl.BlockSpec((1, tq, Dm), lambda b, t: (b, t, 0)),   # x (query rows)
            pl.BlockSpec((1, T, Dm), lambda b, t: (b, 0, 0)),    # x (key/value rows)
            pl.BlockSpec((Dm, H * dq), lambda b, t: (0, 0)),     # w_q (fused)
            pl.BlockSpec((Dm, H * dq), lambda b, t: (0, 0)),     # w_k (fused, scaled)
            pl.BlockSpec((Dm, H * dq), lambda b, t: (0, 0)),     # w_v (fused)
            pl.BlockSpec((H * dq, Dm), lambda b, t: (0, 0)),     # w_o (fused)
            pl.BlockSpec((H, R, dq), lambda b, t: (0, 0, 0)),    # rel. embeddings
        ]
        if use_bias:
            inputs.append(bias)
            in_specs.append(pl.BlockSpec((1, R), lambda b, t: (0, 0)))

        kernel = functools.partial(
            _mha_kernel, n_head=H, d_qkv=dq, seq_len=T, q_tile=tq,
            rel_offset=off, use_bias=use_bias, use_roll=use_roll)

        return pl.pallas_call(
            kernel,
            out_shape=jax.ShapeDtypeStruct((B, T, Dm), jnp.float32),
            grid=(B, T // tq),
            in_specs=in_specs,
            out_specs=pl.BlockSpec((1, tq, Dm), lambda b, t: (b, t, 0)),
            scratch_shapes=[pltpu.VMEM((tq, Dm), jnp.float32)],
            compiler_params=pltpu.CompilerParams(
                dimension_semantics=("parallel", "parallel"),
                vmem_limit_bytes=48 * 1024 * 1024),
        )(*inputs)

    try:
        out_bt = jax.block_until_ready(run(_pick_query_tile(T), use_roll=True))
    except Exception:
        # TODO(synk): drop this fallback once the strided-roll skew is confirmed
        # to lower on every deployed TPU generation.
        out_bt = run(T, use_roll=False)

    return jnp.transpose(out_bt, (1, 0, 2))                   # [T, B, Dm]


# ----------------------------------------------------------------------------
# Pure-JAX f32 reference (mirrors the PyTorch forward, eval mode).
# ----------------------------------------------------------------------------
def reference(x, w_q, w_k, w_v, w_o, rel_emb, max_relative_pos):
    T, B, Dm = x.shape
    H, _, dq = w_q.shape
    q = jnp.einsum('tbf,hfa->bhta', x, w_q)
    k = jnp.einsum('tbf,hfa->bhta', x, w_k)
    v = jnp.einsum('tbf,hfa->bhta', x, w_v)
    logits = jnp.einsum('bhqa,bhka->bhqk', q, k) / dq ** 0.5

    emb = rel_emb[..., 0]
    pad = max(T - max_relative_pos, 0)
    start = max(max_relative_pos - T, 0)
    emb = jnp.pad(emb, ((0, 0), (pad, pad), (0, 0)))
    emb_used = lax.dynamic_slice_in_dim(emb, start, 2 * T - 1, axis=1)  # [H,2T-1,dq]
    rel_logits = jnp.einsum('bhqd,hmd->bhqm', q, emb_used)              # [B,H,T,2T-1]
    if pad > 0:
        mask = jnp.zeros((2 * T - 1,), jnp.float32)
        mask = mask.at[:pad].add(-1e8).at[2 * T - 1 - pad:].add(-1e8)
        rel_logits = rel_logits + mask
    idx = jnp.arange(T)[None, :] - jnp.arange(T)[:, None] + (T - 1)     # [T, T]
    pos = jnp.take_along_axis(
        rel_logits, jnp.broadcast_to(idx, (B, H, T, T)), axis=-1)
    logits = logits + pos
    probs = jax.nn.softmax(logits, axis=-1)
    o = jnp.einsum('bhqk,bhka->bhqa', probs, v)
    return jnp.einsum('bhta,haf->tbf', o, w_o)


if __name__ == "__main__":
    # Small shapes consistent with the module.
    T, B = 8, 2
    d_model, n_head = 32, 4
    d_qkv = d_model // n_head

    key = jax.random.PRNGKey(0)
    kx, kq, kk, kv, ko, ke = jax.random.split(key, 6)

    x = jax.random.normal(kx, (T, B, d_model), jnp.float32)

    def xavier(k, shape):  # xavier-normal-style init (deterministic)
        fan_in = shape[1] * shape[2]
        fan_out = shape[0] * shape[2]
        std = math.sqrt(2.0 / (fan_in + fan_out))
        return std * jax.random.normal(k, shape, jnp.float32)

    w_q = xavier(kq, (n_head, d_model, d_qkv))
    w_k = xavier(kk, (n_head, d_model, d_qkv))
    w_v = xavier(kv, (n_head, d_model, d_qkv))
    w_o = xavier(ko, (n_head, d_qkv, d_model))

    # Exercise both paths: T < max_rel (no -1e8 bias) and T > max_rel (bias).
    for max_rel in (16, 4):
        rel_emb = (d_qkv ** -0.5) * jax.random.normal(
            ke, (n_head, 2 * max_rel - 1, d_qkv, 1), jnp.float32)

        out = jax.block_until_ready(
            multi_head_attention(x, w_q, w_k, w_v, w_o, rel_emb, max_rel))
        ref = jax.block_until_ready(
            reference(x, w_q, w_k, w_v, w_o, rel_emb, max_rel))

        assert out.shape == (T, B, d_model)
        # Tolerance reflects bf16 MXU inputs (f32 accumulation) + approx recip.
        np.testing.assert_allclose(np.asarray(out), np.asarray(ref),
                                   rtol=2e-2, atol=2e-2)

    print("KERNEL_OK")
</pallas_src>

<mosaic_0001>
module attributes {stable_mosaic.version = 11 : i64} {
  func.func @_mha_kernel(%arg0: i32, %arg1: i32, %arg2: memref<1x8x32xbf16, #tpu.memory_space<vmem>>, %arg3: memref<1x8x32xbf16, #tpu.memory_space<vmem>>, %arg4: memref<32x32xbf16, #tpu.memory_space<vmem>>, %arg5: memref<32x32xbf16, #tpu.memory_space<vmem>>, %arg6: memref<32x32xbf16, #tpu.memory_space<vmem>>, %arg7: memref<32x32xbf16, #tpu.memory_space<vmem>>, %arg8: memref<4x256x8xbf16, #tpu.memory_space<vmem>>, %arg9: memref<1x8x32xf32, #tpu.memory_space<vmem>>, %arg10: memref<8x32xf32, #tpu.memory_space<vmem>>) attributes {dimension_semantics = [#tpu.dimension_semantics<parallel>, #tpu.dimension_semantics<parallel>], iteration_bounds = array<i64: 2, 1>, scalar_prefetch = 0 : i64, scratch_operands = 1 : i64, tpu.core_type = #tpu.core_type<tc>, window_params = [{transform_indices = @transform_0, window_bounds = array<i64: 1, 8, 32>}, {transform_indices = @transform_1, window_bounds = array<i64: 1, 8, 32>}, {pipeline_mode = #tpu.pipeline_mode<synchronous>, transform_indices = @transform_2, window_bounds = array<i64: 32, 32>}, {pipeline_mode = #tpu.pipeline_mode<synchronous>, transform_indices = @transform_3, window_bounds = array<i64: 32, 32>}, {pipeline_mode = #tpu.pipeline_mode<synchronous>, transform_indices = @transform_4, window_bounds = array<i64: 32, 32>}, {pipeline_mode = #tpu.pipeline_mode<synchronous>, transform_indices = @transform_5, window_bounds = array<i64: 32, 32>}, {pipeline_mode = #tpu.pipeline_mode<synchronous>, transform_indices = @transform_6, window_bounds = array<i64: 4, 256, 8>}, {transform_indices = @transform_7, window_bounds = array<i64: 1, 8, 32>}]} {
    %c8_i32 = arith.constant 8 : i32
    %0 = arith.muli %arg1, %c8_i32 : i32
    %c0 = arith.constant 0 : index
    %c0_0 = arith.constant 0 : index
    %c0_1 = arith.constant 0 : index
    %1 = vector.load %arg2[%c0, %c0_0, %c0_1] : memref<1x8x32xbf16, #tpu.memory_space<vmem>>, vector<1x8x32xbf16>
    %2 = vector.shape_cast %1 : vector<1x8x32xbf16> to vector<8x32xbf16>
    %c0_2 = arith.constant 0 : index
    %c0_3 = arith.constant 0 : index
    %c0_4 = arith.constant 0 : index
    %3 = vector.load %arg3[%c0_2, %c0_3, %c0_4] : memref<1x8x32xbf16, #tpu.memory_space<vmem>>, vector<1x8x32xbf16>
    %4 = vector.shape_cast %3 : vector<1x8x32xbf16> to vector<8x32xbf16>
    %c0_5 = arith.constant 0 : index
    %c0_6 = arith.constant 0 : index
    %5 = vector.load %arg4[%c0_5, %c0_6] : memref<32x32xbf16, #tpu.memory_space<vmem>>, vector<32x32xbf16>
    %cst = arith.constant dense<0.000000e+00> : vector<8x32xf32>
    %6 = tpu.matmul %2, %5, %cst {dimension_numbers = #tpu.dot_dimension_numbers<[1], [0], [0], [1], [0, 0, 1, 1], [], []>} : vector<8x32xbf16>, vector<32x32xbf16>, vector<8x32xf32> -> vector<8x32xf32>
    %7 = arith.truncf %6 : vector<8x32xf32> to vector<8x32xbf16>
    %c0_7 = arith.constant 0 : index
    %c0_8 = arith.constant 0 : index
    %8 = vector.load %arg5[%c0_7, %c0_8] : memref<32x32xbf16, #tpu.memory_space<vmem>>, vector<32x32xbf16>
    %cst_9 = arith.constant dense<0.000000e+00> : vector<8x32xf32>
    %9 = tpu.matmul %4, %8, %cst_9 {dimension_numbers = #tpu.dot_dimension_numbers<[1], [0], [0], [1], [0, 0, 1, 1], [], []>} : vector<8x32xbf16>, vector<32x32xbf16>, vector<8x32xf32> -> vector<8x32xf32>
    %10 = arith.truncf %9 : vector<8x32xf32> to vector<8x32xbf16>
    %c0_10 = arith.constant 0 : index
    %c0_11 = arith.constant 0 : index
    %11 = vector.load %arg6[%c0_10, %c0_11] : memref<32x32xbf16, #tpu.memory_space<vmem>>, vector<32x32xbf16>
    %cst_12 = arith.constant dense<0.000000e+00> : vector<8x32xf32>
    %12 = tpu.matmul %4, %11, %cst_12 {dimension_numbers = #tpu.dot_dimension_numbers<[1], [0], [0], [1], [0, 0, 1, 1], [], []>} : vector<8x32xbf16>, vector<32x32xbf16>, vector<8x32xf32> -> vector<8x32xf32>
    %13 = arith.truncf %12 : vector<8x32xf32> to vector<8x32xbf16>
    %14 = vector.extract_strided_slice %7 {offsets = [0, 0], sizes = [8, 8], strides = [1, 1]} : vector<8x32xbf16> to vector<8x8xbf16>
    %15 = vector.extract_strided_slice %10 {offsets = [0, 0], sizes = [8, 8], strides = [1, 1]} : vector<8x32xbf16> to vector<8x8xbf16>
    %16 = vector.extract_strided_slice %13 {offsets = [0, 0], sizes = [8, 8], strides = [1, 1]} : vector<8x32xbf16> to vector<8x8xbf16>
    "tpu.trace_start"() <{level = 10 : i32, message = "qd,kd->qk"}> : () -> ()
    %cst_13 = arith.constant dense<0.000000e+00> : vector<8x8xf32>
    %17 = tpu.matmul %14, %15, %cst_13 {dimension_numbers = #tpu.dot_dimension_numbers<[1], [1], [0], [0], [0, 0, 1, 0], [], []>} : vector<8x8xbf16>, vector<8x8xbf16>, vector<8x8xf32> -> vector<8x8xf32>
    "tpu.trace_stop"() : () -> ()
    %c0_14 = arith.constant 0 : index
    %c0_15 = arith.constant 0 : index
    %c0_16 = arith.constant 0 : index
    %18 = vector.load %arg8[%c0_14, %c0_15, %c0_16] : memref<4x256x8xbf16, #tpu.memory_space<vmem>>, vector<1x256x8xbf16>
    %19 = vector.shape_cast %18 : vector<1x256x8xbf16> to vector<256x8xbf16>
    "tpu.trace_start"() <{level = 10 : i32, message = "qd,md->qm"}> : () -> ()
    %cst_17 = arith.constant dense<0.000000e+00> : vector<8x256xf32>
    %20 = tpu.matmul %14, %19, %cst_17 {dimension_numbers = #tpu.dot_dimension_numbers<[1], [1], [0], [0], [0, 0, 1, 0], [], []>} : vector<8x8xbf16>, vector<256x8xbf16>, vector<8x256xf32> -> vector<8x256xf32>
    "tpu.trace_stop"() : () -> ()
    %21 = tpu.dynamic_rotate %20 by %0 dim 1 {stride = 1 : si32, stride_dimension = 0 : si32} : vector<8x256xf32>, i32 -> vector<8x256xf32>
    %22 = vector.extract_strided_slice %21 {offsets = [0, 128], sizes = [8, 8], strides = [1, 1]} : vector<8x256xf32> to vector<8x8xf32>
    %23 = arith.addf %17, %22 : vector<8x8xf32>
    %cst_18 = arith.constant dense<0xFF800000> : vector<8xf32>
    %24 = vector.multi_reduction <maximumf>, %23, %cst_18 [1] : vector<8x8xf32> to vector<8xf32>
    %25 = vector.shape_cast %24 : vector<8xf32> to vector<8x1xf32>
    %26 = vector.broadcast %25 : vector<8x1xf32> to vector<8x8xf32>
    %27 = arith.subf %23, %26 : vector<8x8xf32>
    %28 = math.exp %27 : vector<8x8xf32>
    %cst_19 = arith.constant dense<0.000000e+00> : vector<8xf32>
    %29 = vector.multi_reduction <add>, %28, %cst_19 [1] : vector<8x8xf32> to vector<8xf32>
    %30 = vector.shape_cast %29 : vector<8xf32> to vector<8x1xf32>
    %31 = arith.truncf %28 : vector<8x8xf32> to vector<8x8xbf16>
    %cst_20 = arith.constant dense<0.000000e+00> : vector<8x8xf32>
    %32 = tpu.matmul %31, %16, %cst_20 {dimension_numbers = #tpu.dot_dimension_numbers<[1], [0], [0], [1], [0, 0, 1, 1], [], []>} : vector<8x8xbf16>, vector<8x8xbf16>, vector<8x8xf32> -> vector<8x8xf32>
    %33 = tpu.reciprocal %30 {approx = true} : vector<8x1xf32> -> vector<8x1xf32>
    %34 = vector.broadcast %33 : vector<8x1xf32> to vector<8x8xf32>
    %35 = arith.mulf %32, %34 : vector<8x8xf32>
    %36 = arith.truncf %35 : vector<8x8xf32> to vector<8x8xbf16>
    %c0_21 = arith.constant 0 : index
    %c0_22 = arith.constant 0 : index
    %37 = vector.load %arg7[%c0_21, %c0_22] : memref<32x32xbf16, #tpu.memory_space<vmem>>, vector<8x32xbf16>
    %cst_23 = arith.constant dense<0.000000e+00> : vector<8x32xf32>
    %38 = tpu.matmul %36, %37, %cst_23 {dimension_numbers = #tpu.dot_dimension_numbers<[1], [0], [0], [1], [0, 0, 1, 1], [], []>} : vector<8x8xbf16>, vector<8x32xbf16>, vector<8x32xf32> -> vector<8x32xf32>
    %c0_24 = arith.constant 0 : index
    %c0_25 = arith.constant 0 : index
    %39 = vector.load %arg10[%c0_24, %c0_25] : memref<8x32xf32, #tpu.memory_space<vmem>>, vector<8x32xf32>
    tpu.vector_store %arg10[%c0_24, %c0_25], %38 {strides = array<i32>} : memref<8x32xf32, #tpu.memory_space<vmem>>, vector<8x32xf32>,
    %40 = vector.extract_strided_slice %7 {offsets = [0, 8], sizes = [8, 8], strides = [1, 1]} : vector<8x32xbf16> to vector<8x8xbf16>
    %41 = vector.extract_strided_slice %10 {offsets = [0, 8], sizes = [8, 8], strides = [1, 1]} : vector<8x32xbf16> to vector<8x8xbf16>
    %42 = vector.extract_strided_slice %13 {offsets = [0, 8], sizes = [8, 8], strides = [1, 1]} : vector<8x32xbf16> to vector<8x8xbf16>
    "tpu.trace_start"() <{level = 10 : i32, message = "qd,kd->qk"}> : () -> ()
    %cst_26 = arith.constant dense<0.000000e+00> : vector<8x8xf32>
    %43 = tpu.matmul %40, %41, %cst_26 {dimension_numbers = #tpu.dot_dimension_numbers<[1], [1], [0], [0], [0, 0, 1, 0], [], []>} : vector<8x8xbf16>, vector<8x8xbf16>, vector<8x8xf32> -> vector<8x8xf32>
    "tpu.trace_stop"() : () -> ()
    %c1 = arith.constant 1 : index
    %c0_27 = arith.constant 0 : index
    %c0_28 = arith.constant 0 : index
    %44 = vector.load %arg8[%c1, %c0_27, %c0_28] : memref<4x256x8xbf16, #tpu.memory_space<vmem>>, vector<1x256x8xbf16>
    %45 = vector.shape_cast %44 : vector<1x256x8xbf16> to vector<256x8xbf16>
    "tpu.trace_start"() <{level = 10 : i32, message = "qd,md->qm"}> : () -> ()
    %cst_29 = arith.constant dense<0.000000e+00> : vector<8x256xf32>
    %46 = tpu.matmul %40, %45, %cst_29 {dimension_numbers = #tpu.dot_dimension_numbers<[1], [1], [0], [0], [0, 0, 1, 0], [], []>} : vector<8x8xbf16>, vector<256x8xbf16>, vector<8x256xf32> -> vector<8x256xf32>
    "tpu.trace_stop"() : () -> ()
    %47 = tpu.dynamic_rotate %46 by %0 dim 1 {stride = 1 : si32, stride_dimension = 0 : si32} : vector<8x256xf32>, i32 -> vector<8x256xf32>
    %48 = vector.extract_strided_slice %47 {offsets = [0, 128], sizes = [8, 8], strides = [1, 1]} : vector<8x256xf32> to vector<8x8xf32>
    %49 = arith.addf %43, %48 : vector<8x8xf32>
    %cst_30 = arith.constant dense<0xFF800000> : vector<8xf32>
    %50 = vector.multi_reduction <maximumf>, %49, %cst_30 [1] : vector<8x8xf32> to vector<8xf32>
    %51 = vector.shape_cast %50 : vector<8xf32> to vector<8x1xf32>
    %52 = vector.broadcast %51 : vector<8x1xf32> to vector<8x8xf32>
    %53 = arith.subf %49, %52 : vector<8x8xf32>
    %54 = math.exp %53 : vector<8x8xf32>
    %cst_31 = arith.constant dense<0.000000e+00> : vector<8xf32>
    %55 = vector.multi_reduction <add>, %54, %cst_31 [1] : vector<8x8xf32> to vector<8xf32>
    %56 = vector.shape_cast %55 : vector<8xf32> to vector<8x1xf32>
    %57 = arith.truncf %54 : vector<8x8xf32> to vector<8x8xbf16>
    %cst_32 = arith.constant dense<0.000000e+00> : vector<8x8xf32>
    %58 = tpu.matmul %57, %42, %cst_32 {dimension_numbers = #tpu.dot_dimension_numbers<[1], [0], [0], [1], [0, 0, 1, 1], [], []>} : vector<8x8xbf16>, vector<8x8xbf16>, vector<8x8xf32> -> vector<8x8xf32>
    %59 = tpu.reciprocal %56 {approx = true} : vector<8x1xf32> -> vector<8x1xf32>
    %60 = vector.broadcast %59 : vector<8x1xf32> to vector<8x8xf32>
    %61 = arith.mulf %58, %60 : vector<8x8xf32>
    %62 = arith.truncf %61 : vector<8x8xf32> to vector<8x8xbf16>
    %c8 = arith.constant 8 : index
    %c0_33 = arith.constant 0 : index
    %63 = vector.load %arg7[%c8, %c0_33] : memref<32x32xbf16, #tpu.memory_space<vmem>>, vector<8x32xbf16>
    %cst_34 = arith.constant dense<0.000000e+00> : vector<8x32xf32>
    %64 = tpu.matmul %62, %63, %cst_34 {dimension_numbers = #tpu.dot_dimension_numbers<[1], [0], [0], [1], [0, 0, 1, 1], [], []>} : vector<8x8xbf16>, vector<8x32xbf16>, vector<8x32xf32> -> vector<8x32xf32>
    %c0_35 = arith.constant 0 : index
    %c0_36 = arith.constant 0 : index
    %65 = vector.load %arg10[%c0_35, %c0_36] : memref<8x32xf32, #tpu.memory_space<vmem>>, vector<8x32xf32>
    %66 = arith.addf %65, %64 : vector<8x32xf32>
    %c0_37 = arith.constant 0 : index
    %c0_38 = arith.constant 0 : index
    %67 = vector.load %arg10[%c0_37, %c0_38] : memref<8x32xf32, #tpu.memory_space<vmem>>, vector<8x32xf32>
    tpu.vector_store %arg10[%c0_37, %c0_38], %66 {strides = array<i32>} : memref<8x32xf32, #tpu.memory_space<vmem>>, vector<8x32xf32>,
    %68 = vector.extract_strided_slice %7 {offsets = [0, 16], sizes = [8, 8], strides = [1, 1]} : vector<8x32xbf16> to vector<8x8xbf16>
    %69 = vector.extract_strided_slice %10 {offsets = [0, 16], sizes = [8, 8], strides = [1, 1]} : vector<8x32xbf16> to vector<8x8xbf16>
    %70 = vector.extract_strided_slice %13 {offsets = [0, 16], sizes = [8, 8], strides = [1, 1]} : vector<8x32xbf16> to vector<8x8xbf16>
    "tpu.trace_start"() <{level = 10 : i32, message = "qd,kd->qk"}> : () -> ()
    %cst_39 = arith.constant dense<0.000000e+00> : vector<8x8xf32>
    %71 = tpu.matmul %68, %69, %cst_39 {dimension_numbers = #tpu.dot_dimension_numbers<[1], [1], [0], [0], [0, 0, 1, 0], [], []>} : vector<8x8xbf16>, vector<8x8xbf16>, vector<8x8xf32> -> vector<8x8xf32>
    "tpu.trace_stop"() : () -> ()
    %c2 = arith.constant 2 : index
    %c0_40 = arith.constant 0 : index
    %c0_41 = arith.constant 0 : index
    %72 = vector.load %arg8[%c2, %c0_40, %c0_41] : memref<4x256x8xbf16, #tpu.memory_space<vmem>>, vector<1x256x8xbf16>
    %73 = vector.shape_cast %72 : vector<1x256x8xbf16> to vector<256x8xbf16>
    "tpu.trace_start"() <{level = 10 : i32, message = "qd,md->qm"}> : () -> ()
    %cst_42 = arith.constant dense<0.000000e+00> : vector<8x256xf32>
    %74 = tpu.matmul %68, %73, %cst_42 {dimension_numbers = #tpu.dot_dimension_numbers<[1], [1], [0], [0], [0, 0, 1, 0], [], []>} : vector<8x8xbf16>, vector<256x8xbf16>, vector<8x256xf32> -> vector<8x256xf32>
    "tpu.trace_stop"() : () -> ()
    %75 = tpu.dynamic_rotate %74 by %0 dim 1 {stride = 1 : si32, stride_dimension = 0 : si32} : vector<8x256xf32>, i32 -> vector<8x256xf32>
    %76 = vector.extract_strided_slice %75 {offsets = [0, 128], sizes = [8, 8], strides = [1, 1]} : vector<8x256xf32> to vector<8x8xf32>
    %77 = arith.addf %71, %76 : vector<8x8xf32>
    %cst_43 = arith.constant dense<0xFF800000> : vector<8xf32>
    %78 = vector.multi_reduction <maximumf>, %77, %cst_43 [1] : vector<8x8xf32> to vector<8xf32>
    %79 = vector.shape_cast %78 : vector<8xf32> to vector<8x1xf32>
    %80 = vector.broadcast %79 : vector<8x1xf32> to vector<8x8xf32>
    %81 = arith.subf %77, %80 : vector<8x8xf32>
    %82 = math.exp %81 : vector<8x8xf32>
    %cst_44 = arith.constant dense<0.000000e+00> : vector<8xf32>
    %83 = vector.multi_reduction <add>, %82, %cst_44 [1] : vector<8x8xf32> to vector<8xf32>
    %84 = vector.shape_cast %83 : vector<8xf32> to vector<8x1xf32>
    %85 = arith.truncf %82 : vector<8x8xf32> to vector<8x8xbf16>
    %cst_45 = arith.constant dense<0.000000e+00> : vector<8x8xf32>
    %86 = tpu.matmul %85, %70, %cst_45 {dimension_numbers = #tpu.dot_dimension_numbers<[1], [0], [0], [1], [0, 0, 1, 1], [], []>} : vector<8x8xbf16>, vector<8x8xbf16>, vector<8x8xf32> -> vector<8x8xf32>
    %87 = tpu.reciprocal %84 {approx = true} : vector<8x1xf32> -> vector<8x1xf32>
    %88 = vector.broadcast %87 : vector<8x1xf32> to vector<8x8xf32>
    %89 = arith.mulf %86, %88 : vector<8x8xf32>
    %90 = arith.truncf %89 : vector<8x8xf32> to vector<8x8xbf16>
    %c16 = arith.constant 16 : index
    %c0_46 = arith.constant 0 : index
    %91 = vector.load %arg7[%c16, %c0_46] : memref<32x32xbf16, #tpu.memory_space<vmem>>, vector<8x32xbf16>
    %cst_47 = arith.constant dense<0.000000e+00> : vector<8x32xf32>
    %92 = tpu.matmul %90, %91, %cst_47 {dimension_numbers = #tpu.dot_dimension_numbers<[1], [0], [0], [1], [0, 0, 1, 1], [], []>} : vector<8x8xbf16>, vector<8x32xbf16>, vector<8x32xf32> -> vector<8x32xf32>
    %c0_48 = arith.constant 0 : index
    %c0_49 = arith.constant 0 : index
    %93 = vector.load %arg10[%c0_48, %c0_49] : memref<8x32xf32, #tpu.memory_space<vmem>>, vector<8x32xf32>
    %94 = arith.addf %93, %92 : vector<8x32xf32>
    %c0_50 = arith.constant 0 : index
    %c0_51 = arith.constant 0 : index
    %95 = vector.load %arg10[%c0_50, %c0_51] : memref<8x32xf32, #tpu.memory_space<vmem>>, vector<8x32xf32>
    tpu.vector_store %arg10[%c0_50, %c0_51], %94 {strides = array<i32>} : memref<8x32xf32, #tpu.memory_space<vmem>>, vector<8x32xf32>,
    %96 = vector.extract_strided_slice %7 {offsets = [0, 24], sizes = [8, 8], strides = [1, 1]} : vector<8x32xbf16> to vector<8x8xbf16>
    %97 = vector.extract_strided_slice %10 {offsets = [0, 24], sizes = [8, 8], strides = [1, 1]} : vector<8x32xbf16> to vector<8x8xbf16>
    %98 = vector.extract_strided_slice %13 {offsets = [0, 24], sizes = [8, 8], strides = [1, 1]} : vector<8x32xbf16> to vector<8x8xbf16>
    "tpu.trace_start"() <{level = 10 : i32, message = "qd,kd->qk"}> : () -> ()
    %cst_52 = arith.constant dense<0.000000e+00> : vector<8x8xf32>
    %99 = tpu.matmul %96, %97, %cst_52 {dimension_numbers = #tpu.dot_dimension_numbers<[1], [1], [0], [0], [0, 0, 1, 0], [], []>} : vector<8x8xbf16>, vector<8x8xbf16>, vector<8x8xf32> -> vector<8x8xf32>
    "tpu.trace_stop"() : () -> ()
    %c3 = arith.constant 3 : index
    %c0_53 = arith.constant 0 : index
    %c0_54 = arith.constant 0 : index
    %100 = vector.load %arg8[%c3, %c0_53, %c0_54] : memref<4x256x8xbf16, #tpu.memory_space<vmem>>, vector<1x256x8xbf16>
    %101 = vector.shape_cast %100 : vector<1x256x8xbf16> to vector<256x8xbf16>
    "tpu.trace_start"() <{level = 10 : i32, message = "qd,md->qm"}> : () -> ()
    %cst_55 = arith.constant dense<0.000000e+00> : vector<8x256xf32>
    %102 = tpu.matmul %96, %101, %cst_55 {dimension_numbers = #tpu.dot_dimension_numbers<[1], [1], [0], [0], [0, 0, 1, 0], [], []>} : vector<8x8xbf16>, vector<256x8xbf16>, vector<8x256xf32> -> vector<8x256xf32>
    "tpu.trace_stop"() : () -> ()
    %103 = tpu.dynamic_rotate %102 by %0 dim 1 {stride = 1 : si32, stride_dimension = 0 : si32} : vector<8x256xf32>, i32 -> vector<8x256xf32>
    %104 = vector.extract_strided_slice %103 {offsets = [0, 128], sizes = [8, 8], strides = [1, 1]} : vector<8x256xf32> to vector<8x8xf32>
    %105 = arith.addf %99, %104 : vector<8x8xf32>
    %cst_56 = arith.constant dense<0xFF800000> : vector<8xf32>
    %106 = vector.multi_reduction <maximumf>, %105, %cst_56 [1] : vector<8x8xf32> to vector<8xf32>
    %107 = vector.shape_cast %106 : vector<8xf32> to vector<8x1xf32>
    %108 = vector.broadcast %107 : vector<8x1xf32> to vector<8x8xf32>
    %109 = arith.subf %105, %108 : vector<8x8xf32>
    %110 = math.exp %109 : vector<8x8xf32>
    %cst_57 = arith.constant dense<0.000000e+00> : vector<8xf32>
    %111 = vector.multi_reduction <add>, %110, %cst_57 [1] : vector<8x8xf32> to vector<8xf32>
    %112 = vector.shape_cast %111 : vector<8xf32> to vector<8x1xf32>
    %113 = arith.truncf %110 : vector<8x8xf32> to vector<8x8xbf16>
    %cst_58 = arith.constant dense<0.000000e+00> : vector<8x8xf32>
    %114 = tpu.matmul %113, %98, %cst_58 {dimension_numbers = #tpu.dot_dimension_numbers<[1], [0], [0], [1], [0, 0, 1, 1], [], []>} : vector<8x8xbf16>, vector<8x8xbf16>, vector<8x8xf32> -> vector<8x8xf32>
    %115 = tpu.reciprocal %112 {approx = true} : vector<8x1xf32> -> vector<8x1xf32>
    %116 = vector.broadcast %115 : vector<8x1xf32> to vector<8x8xf32>
    %117 = arith.mulf %114, %116 : vector<8x8xf32>
    %118 = arith.truncf %117 : vector<8x8xf32> to vector<8x8xbf16>
    %c24 = arith.constant 24 : index
    %c0_59 = arith.constant 0 : index
    %119 = vector.load %arg7[%c24, %c0_59] : memref<32x32xbf16, #tpu.memory_space<vmem>>, vector<8x32xbf16>
    %cst_60 = arith.constant dense<0.000000e+00> : vector<8x32xf32>
    %120 = tpu.matmul %118, %119, %cst_60 {dimension_numbers = #tpu.dot_dimension_numbers<[1], [0], [0], [1], [0, 0, 1, 1], [], []>} : vector<8x8xbf16>, vector<8x32xbf16>, vector<8x32xf32> -> vector<8x32xf32>
    %c0_61 = arith.constant 0 : index
    %c0_62 = arith.constant 0 : index
    %121 = vector.load %arg10[%c0_61, %c0_62] : memref<8x32xf32, #tpu.memory_space<vmem>>, vector<8x32xf32>
    %122 = arith.addf %121, %120 : vector<8x32xf32>
    %c0_63 = arith.constant 0 : index
    %c0_64 = arith.constant 0 : index
    %123 = vector.load %arg10[%c0_63, %c0_64] : memref<8x32xf32, #tpu.memory_space<vmem>>, vector<8x32xf32>
    tpu.vector_store %arg10[%c0_63, %c0_64], %122 {strides = array<i32>} : memref<8x32xf32, #tpu.memory_space<vmem>>, vector<8x32xf32>,
    %c0_65 = arith.constant 0 : index
    %c0_66 = arith.constant 0 : index
    %124 = vector.load %arg10[%c0_65, %c0_66] : memref<8x32xf32, #tpu.memory_space<vmem>>, vector<8x32xf32>
    %c0_67 = arith.constant 0 : index
    %c0_68 = arith.constant 0 : index
    %c0_69 = arith.constant 0 : index
    %125 = vector.load %arg9[%c0_67, %c0_68, %c0_69] : memref<1x8x32xf32, #tpu.memory_space<vmem>>, vector<1x8x32xf32>
    %126 = vector.shape_cast %125 : vector<1x8x32xf32> to vector<8x32xf32>
    %127 = vector.shape_cast %124 : vector<8x32xf32> to vector<1x8x32xf32>
    tpu.vector_store %arg9[%c0_67, %c0_68, %c0_69], %127 {strides = array<i32>} : memref<1x8x32xf32, #tpu.memory_space<vmem>>, vector<1x8x32xf32>,
    return
  }
  func.func @transform_0(%arg0: i32, %arg1: i32) -> (i32, i32, i32) {
    %c0_i32 = arith.constant 0 : i32
    %c0_i32_0 = arith.constant 0 : i32
    return %arg0, %arg1, %c0_i32 : i32, i32, i32
  }
  func.func @transform_1(%arg0: i32, %arg1: i32) -> (i32, i32, i32) {
    %c0_i32 = arith.constant 0 : i32
    %c0_i32_0 = arith.constant 0 : i32
    %c0_i32_1 = arith.constant 0 : i32
    return %arg0, %c0_i32, %c0_i32_0 : i32, i32, i32
  }
  func.func @transform_2(%arg0: i32, %arg1: i32) -> (i32, i32) {
    %c0_i32 = arith.constant 0 : i32
    %c0_i32_0 = arith.constant 0 : i32
    %c0_i32_1 = arith.constant 0 : i32
    return %c0_i32, %c0_i32_0 : i32, i32
  }
  func.func @transform_3(%arg0: i32, %arg1: i32) -> (i32, i32) {
    %c0_i32 = arith.constant 0 : i32
    %c0_i32_0 = arith.constant 0 : i32
    %c0_i32_1 = arith.constant 0 : i32
    return %c0_i32, %c0_i32_0 : i32, i32
  }
  func.func @transform_4(%arg0: i32, %arg1: i32) -> (i32, i32) {
    %c0_i32 = arith.constant 0 : i32
    %c0_i32_0 = arith.constant 0 : i32
    %c0_i32_1 = arith.constant 0 : i32
    return %c0_i32, %c0_i32_0 : i32, i32
  }
  func.func @transform_5(%arg0: i32, %arg1: i32) -> (i32, i32) {
    %c0_i32 = arith.constant 0 : i32
    %c0_i32_0 = arith.constant 0 : i32
    %c0_i32_1 = arith.constant 0 : i32
    return %c0_i32, %c0_i32_0 : i32, i32
  }
  func.func @transform_6(%arg0: i32, %arg1: i32) -> (i32, i32, i32) {
    %c0_i32 = arith.constant 0 : i32
    %c0_i32_0 = arith.constant 0 : i32
    %c0_i32_1 = arith.constant 0 : i32
    %c0_i32_2 = arith.constant 0 : i32
    return %c0_i32, %c0_i32_0, %c0_i32_1 : i32, i32, i32
  }
  func.func @transform_7(%arg0: i32, %arg1: i32) -> (i32, i32, i32) {
    %c0_i32 = arith.constant 0 : i32
    %c0_i32_0 = arith.constant 0 : i32
    return %arg0, %arg1, %c0_i32 : i32, i32, i32
  }
}

module attributes {stable_mosaic.version = 11 : i64} {
  func.func @_mha_kernel(%arg0: i32, %arg1: i32, %arg2: memref<1x8x32xbf16, #tpu.memory_space<vmem>>, %arg3: memref<1x8x32xbf16, #tpu.memory_space<vmem>>, %arg4: memref<32x32xbf16, #tpu.memory_space<vmem>>, %arg5: memref<32x32xbf16, #tpu.memory_space<vmem>>, %arg6: memref<32x32xbf16, #tpu.memory_space<vmem>>, %arg7: memref<32x32xbf16, #tpu.memory_space<vmem>>, %arg8: memref<4x256x8xbf16, #tpu.memory_space<vmem>>, %arg9: memref<1x8x32xf32, #tpu.memory_space<vmem>>, %arg10: memref<8x32xf32, #tpu.memory_space<vmem>>) attributes {dimension_semantics = [#tpu.dimension_semantics<parallel>, #tpu.dimension_semantics<parallel>], iteration_bounds = array<i64: 2, 1>, scalar_prefetch = 0 : i64, scratch_operands = 1 : i64, tpu.core_type = #tpu.core_type<tc>, window_params = [{transform_indices = @transform_0, window_bounds = array<i64: 1, 8, 32>}, {transform_indices = @transform_1, window_bounds = array<i64: 1, 8, 32>}, {pipeline_mode = #tpu.pipeline_mode<synchronous>, transform_indices = @transform_2, window_bounds = array<i64: 32, 32>}, {pipeline_mode = #tpu.pipeline_mode<synchronous>, transform_indices = @transform_3, window_bounds = array<i64: 32, 32>}, {pipeline_mode = #tpu.pipeline_mode<synchronous>, transform_indices = @transform_4, window_bounds = array<i64: 32, 32>}, {pipeline_mode = #tpu.pipeline_mode<synchronous>, transform_indices = @transform_5, window_bounds = array<i64: 32, 32>}, {pipeline_mode = #tpu.pipeline_mode<synchronous>, transform_indices = @transform_6, window_bounds = array<i64: 4, 256, 8>}, {transform_indices = @transform_7, window_bounds = array<i64: 1, 8, 32>}]} {
    %c0 = arith.constant 0 : index
    %c0_0 = arith.constant 0 : index
    %c0_1 = arith.constant 0 : index
    %0 = vector.load %arg2[%c0, %c0_0, %c0_1] : memref<1x8x32xbf16, #tpu.memory_space<vmem>>, vector<1x8x32xbf16>
    %1 = vector.shape_cast %0 : vector<1x8x32xbf16> to vector<8x32xbf16>
    %c0_2 = arith.constant 0 : index
    %c0_3 = arith.constant 0 : index
    %c0_4 = arith.constant 0 : index
    %2 = vector.load %arg3[%c0_2, %c0_3, %c0_4] : memref<1x8x32xbf16, #tpu.memory_space<vmem>>, vector<1x8x32xbf16>
    %3 = vector.shape_cast %2 : vector<1x8x32xbf16> to vector<8x32xbf16>
    %c0_5 = arith.constant 0 : index
    %c0_6 = arith.constant 0 : index
    %4 = vector.load %arg4[%c0_5, %c0_6] : memref<32x32xbf16, #tpu.memory_space<vmem>>, vector<32x32xbf16>
    %cst = arith.constant dense<0.000000e+00> : vector<8x32xf32>
    %5 = tpu.matmul %1, %4, %cst {dimension_numbers = #tpu.dot_dimension_numbers<[1], [0], [0], [1], [0, 0, 1, 1], [], []>} : vector<8x32xbf16>, vector<32x32xbf16>, vector<8x32xf32> -> vector<8x32xf32>
    %6 = arith.truncf %5 : vector<8x32xf32> to vector<8x32xbf16>
    %c0_7 = arith.constant 0 : index
    %c0_8 = arith.constant 0 : index
    %7 = vector.load %arg5[%c0_7, %c0_8] : memref<32x32xbf16, #tpu.memory_space<vmem>>, vector<32x32xbf16>
    %cst_9 = arith.constant dense<0.000000e+00> : vector<8x32xf32>
    %8 = tpu.matmul %3, %7, %cst_9 {dimension_numbers = #tpu.dot_dimension_numbers<[1], [0], [0], [1], [0, 0, 1, 1], [], []>} : vector<8x32xbf16>, vector<32x32xbf16>, vector<8x32xf32> -> vector<8x32xf32>
    %9 = arith.truncf %8 : vector<8x32xf32> to vector<8x32xbf16>
    %c0_10 = arith.constant 0 : index
    %c0_11 = arith.constant 0 : index
    %10 = vector.load %arg6[%c0_10, %c0_11] : memref<32x32xbf16, #tpu.memory_space<vmem>>, vector<32x32xbf16>
    %cst_12 = arith.constant dense<0.000000e+00> : vector<8x32xf32>
    %11 = tpu.matmul %3, %10, %cst_12 {dimension_numbers = #tpu.dot_dimension_numbers<[1], [0], [0], [1], [0, 0, 1, 1], [], []>} : vector<8x32xbf16>, vector<32x32xbf16>, vector<8x32xf32> -> vector<8x32xf32>
    %12 = arith.truncf %11 : vector<8x32xf32> to vector<8x32xbf16>
    %13 = vector.extract_strided_slice %6 {offsets = [0, 0], sizes = [8, 8], strides = [1, 1]} : vector<8x32xbf16> to vector<8x8xbf16>
    %14 = vector.extract_strided_slice %9 {offsets = [0, 0], sizes = [8, 8], strides = [1, 1]} : vector<8x32xbf16> to vector<8x8xbf16>
    %15 = vector.extract_strided_slice %12 {offsets = [0, 0], sizes = [8, 8], strides = [1, 1]} : vector<8x32xbf16> to vector<8x8xbf16>
    "tpu.trace_start"() <{level = 10 : i32, message = "qd,kd->qk"}> : () -> ()
    %cst_13 = arith.constant dense<0.000000e+00> : vector<8x8xf32>
    %16 = tpu.matmul %13, %14, %cst_13 {dimension_numbers = #tpu.dot_dimension_numbers<[1], [1], [0], [0], [0, 0, 1, 0], [], []>} : vector<8x8xbf16>, vector<8x8xbf16>, vector<8x8xf32> -> vector<8x8xf32>
    "tpu.trace_stop"() : () -> ()
    %c0_14 = arith.constant 0 : index
    %c0_15 = arith.constant 0 : index
    %c0_16 = arith.constant 0 : index
    %17 = vector.load %arg8[%c0_14, %c0_15, %c0_16] : memref<4x256x8xbf16, #tpu.memory_space<vmem>>, vector<1x256x8xbf16>
    %18 = vector.shape_cast %17 : vector<1x256x8xbf16> to vector<256x8xbf16>
    "tpu.trace_start"() <{level = 10 : i32, message = "qd,md->qm"}> : () -> ()
    %cst_17 = arith.constant dense<0.000000e+00> : vector<8x256xf32>
    %19 = tpu.matmul %13, %18, %cst_17 {dimension_numbers = #tpu.dot_dimension_numbers<[1], [1], [0], [0], [0, 0, 1, 0], [], []>} : vector<8x8xbf16>, vector<256x8xbf16>, vector<8x256xf32> -> vector<8x256xf32>
    "tpu.trace_stop"() : () -> ()
    %20 = vector.extract_strided_slice %19 {offsets = [0, 128], sizes = [1, 8], strides = [1, 1]} : vector<8x256xf32> to vector<1x8xf32>
    %21 = vector.extract_strided_slice %19 {offsets = [1, 127], sizes = [1, 8], strides = [1, 1]} : vector<8x256xf32> to vector<1x8xf32>
    %22 = vector.extract_strided_slice %19 {offsets = [2, 126], sizes = [1, 8], strides = [1, 1]} : vector<8x256xf32> to vector<1x8xf32>
    %23 = vector.extract_strided_slice %19 {offsets = [3, 125], sizes = [1, 8], strides = [1, 1]} : vector<8x256xf32> to vector<1x8xf32>
    %24 = vector.extract_strided_slice %19 {offsets = [4, 124], sizes = [1, 8], strides = [1, 1]} : vector<8x256xf32> to vector<1x8xf32>
    %25 = vector.extract_strided_slice %19 {offsets = [5, 123], sizes = [1, 8], strides = [1, 1]} : vector<8x256xf32> to vector<1x8xf32>
    %26 = vector.extract_strided_slice %19 {offsets = [6, 122], sizes = [1, 8], strides = [1, 1]} : vector<8x256xf32> to vector<1x8xf32>
    %27 = vector.extract_strided_slice %19 {offsets = [7, 121], sizes = [1, 8], strides = [1, 1]} : vector<8x256xf32> to vector<1x8xf32>
    %28 = tpu.concatenate %20, %21, %22, %23, %24, %25, %26, %27 in 0 : vector<1x8xf32>, vector<1x8xf32>, vector<1x8xf32>, vector<1x8xf32>, vector<1x8xf32>, vector<1x8xf32>, vector<1x8xf32>, vector<1x8xf32> -> vector<8x8xf32>
    %29 = arith.addf %16, %28 : vector<8x8xf32>
    %cst_18 = arith.constant dense<0xFF800000> : vector<8xf32>
    %30 = vector.multi_reduction <maximumf>, %29, %cst_18 [1] : vector<8x8xf32> to vector<8xf32>
    %31 = vector.shape_cast %30 : vector<8xf32> to vector<8x1xf32>
    %32 = vector.broadcast %31 : vector<8x1xf32> to vector<8x8xf32>
    %33 = arith.subf %29, %32 : vector<8x8xf32>
    %34 = math.exp %33 : vector<8x8xf32>
    %cst_19 = arith.constant dense<0.000000e+00> : vector<8xf32>
    %35 = vector.multi_reduction <add>, %34, %cst_19 [1] : vector<8x8xf32> to vector<8xf32>
    %36 = vector.shape_cast %35 : vector<8xf32> to vector<8x1xf32>
    %37 = arith.truncf %34 : vector<8x8xf32> to vector<8x8xbf16>
    %cst_20 = arith.constant dense<0.000000e+00> : vector<8x8xf32>
    %38 = tpu.matmul %37, %15, %cst_20 {dimension_numbers = #tpu.dot_dimension_numbers<[1], [0], [0], [1], [0, 0, 1, 1], [], []>} : vector<8x8xbf16>, vector<8x8xbf16>, vector<8x8xf32> -> vector<8x8xf32>
    %39 = tpu.reciprocal %36 {approx = true} : vector<8x1xf32> -> vector<8x1xf32>
    %40 = vector.broadcast %39 : vector<8x1xf32> to vector<8x8xf32>
    %41 = arith.mulf %38, %40 : vector<8x8xf32>
    %42 = arith.truncf %41 : vector<8x8xf32> to vector<8x8xbf16>
    %c0_21 = arith.constant 0 : index
    %c0_22 = arith.constant 0 : index
    %43 = vector.load %arg7[%c0_21, %c0_22] : memref<32x32xbf16, #tpu.memory_space<vmem>>, vector<8x32xbf16>
    %cst_23 = arith.constant dense<0.000000e+00> : vector<8x32xf32>
    %44 = tpu.matmul %42, %43, %cst_23 {dimension_numbers = #tpu.dot_dimension_numbers<[1], [0], [0], [1], [0, 0, 1, 1], [], []>} : vector<8x8xbf16>, vector<8x32xbf16>, vector<8x32xf32> -> vector<8x32xf32>
    %c0_24 = arith.constant 0 : index
    %c0_25 = arith.constant 0 : index
    %45 = vector.load %arg10[%c0_24, %c0_25] : memref<8x32xf32, #tpu.memory_space<vmem>>, vector<8x32xf32>
    tpu.vector_store %arg10[%c0_24, %c0_25], %44 {strides = array<i32>} : memref<8x32xf32, #tpu.memory_space<vmem>>, vector<8x32xf32>,
    %46 = vector.extract_strided_slice %6 {offsets = [0, 8], sizes = [8, 8], strides = [1, 1]} : vector<8x32xbf16> to vector<8x8xbf16>
    %47 = vector.extract_strided_slice %9 {offsets = [0, 8], sizes = [8, 8], strides = [1, 1]} : vector<8x32xbf16> to vector<8x8xbf16>
    %48 = vector.extract_strided_slice %12 {offsets = [0, 8], sizes = [8, 8], strides = [1, 1]} : vector<8x32xbf16> to vector<8x8xbf16>
    "tpu.trace_start"() <{level = 10 : i32, message = "qd,kd->qk"}> : () -> ()
    %cst_26 = arith.constant dense<0.000000e+00> : vector<8x8xf32>
    %49 = tpu.matmul %46, %47, %cst_26 {dimension_numbers = #tpu.dot_dimension_numbers<[1], [1], [0], [0], [0, 0, 1, 0], [], []>} : vector<8x8xbf16>, vector<8x8xbf16>, vector<8x8xf32> -> vector<8x8xf32>
    "tpu.trace_stop"() : () -> ()
    %c1 = arith.constant 1 : index
    %c0_27 = arith.constant 0 : index
    %c0_28 = arith.constant 0 : index
    %50 = vector.load %arg8[%c1, %c0_27, %c0_28] : memref<4x256x8xbf16, #tpu.memory_space<vmem>>, vector<1x256x8xbf16>
    %51 = vector.shape_cast %50 : vector<1x256x8xbf16> to vector<256x8xbf16>
    "tpu.trace_start"() <{level = 10 : i32, message = "qd,md->qm"}> : () -> ()
    %cst_29 = arith.constant dense<0.000000e+00> : vector<8x256xf32>
    %52 = tpu.matmul %46, %51, %cst_29 {dimension_numbers = #tpu.dot_dimension_numbers<[1], [1], [0], [0], [0, 0, 1, 0], [], []>} : vector<8x8xbf16>, vector<256x8xbf16>, vector<8x256xf32> -> vector<8x256xf32>
    "tpu.trace_stop"() : () -> ()
    %53 = vector.extract_strided_slice %52 {offsets = [0, 128], sizes = [1, 8], strides = [1, 1]} : vector<8x256xf32> to vector<1x8xf32>
    %54 = vector.extract_strided_slice %52 {offsets = [1, 127], sizes = [1, 8], strides = [1, 1]} : vector<8x256xf32> to vector<1x8xf32>
    %55 = vector.extract_strided_slice %52 {offsets = [2, 126], sizes = [1, 8], strides = [1, 1]} : vector<8x256xf32> to vector<1x8xf32>
    %56 = vector.extract_strided_slice %52 {offsets = [3, 125], sizes = [1, 8], strides = [1, 1]} : vector<8x256xf32> to vector<1x8xf32>
    %57 = vector.extract_strided_slice %52 {offsets = [4, 124], sizes = [1, 8], strides = [1, 1]} : vector<8x256xf32> to vector<1x8xf32>
    %58 = vector.extract_strided_slice %52 {offsets = [5, 123], sizes = [1, 8], strides = [1, 1]} : vector<8x256xf32> to vector<1x8xf32>
    %59 = vector.extract_strided_slice %52 {offsets = [6, 122], sizes = [1, 8], strides = [1, 1]} : vector<8x256xf32> to vector<1x8xf32>
    %60 = vector.extract_strided_slice %52 {offsets = [7, 121], sizes = [1, 8], strides = [1, 1]} : vector<8x256xf32> to vector<1x8xf32>
    %61 = tpu.concatenate %53, %54, %55, %56, %57, %58, %59, %60 in 0 : vector<1x8xf32>, vector<1x8xf32>, vector<1x8xf32>, vector<1x8xf32>, vector<1x8xf32>, vector<1x8xf32>, vector<1x8xf32>, vector<1x8xf32> -> vector<8x8xf32>
    %62 = arith.addf %49, %61 : vector<8x8xf32>
    %cst_30 = arith.constant dense<0xFF800000> : vector<8xf32>
    %63 = vector.multi_reduction <maximumf>, %62, %cst_30 [1] : vector<8x8xf32> to vector<8xf32>
    %64 = vector.shape_cast %63 : vector<8xf32> to vector<8x1xf32>
    %65 = vector.broadcast %64 : vector<8x1xf32> to vector<8x8xf32>
    %66 = arith.subf %62, %65 : vector<8x8xf32>
    %67 = math.exp %66 : vector<8x8xf32>
    %cst_31 = arith.constant dense<0.000000e+00> : vector<8xf32>
    %68 = vector.multi_reduction <add>, %67, %cst_31 [1] : vector<8x8xf32> to vector<8xf32>
    %69 = vector.shape_cast %68 : vector<8xf32> to vector<8x1xf32>
    %70 = arith.truncf %67 : vector<8x8xf32> to vector<8x8xbf16>
    %cst_32 = arith.constant dense<0.000000e+00> : vector<8x8xf32>
    %71 = tpu.matmul %70, %48, %cst_32 {dimension_numbers = #tpu.dot_dimension_numbers<[1], [0], [0], [1], [0, 0, 1, 1], [], []>} : vector<8x8xbf16>, vector<8x8xbf16>, vector<8x8xf32> -> vector<8x8xf32>
    %72 = tpu.reciprocal %69 {approx = true} : vector<8x1xf32> -> vector<8x1xf32>
    %73 = vector.broadcast %72 : vector<8x1xf32> to vector<8x8xf32>
    %74 = arith.mulf %71, %73 : vector<8x8xf32>
    %75 = arith.truncf %74 : vector<8x8xf32> to vector<8x8xbf16>
    %c8 = arith.constant 8 : index
    %c0_33 = arith.constant 0 : index
    %76 = vector.load %arg7[%c8, %c0_33] : memref<32x32xbf16, #tpu.memory_space<vmem>>, vector<8x32xbf16>
    %cst_34 = arith.constant dense<0.000000e+00> : vector<8x32xf32>
    %77 = tpu.matmul %75, %76, %cst_34 {dimension_numbers = #tpu.dot_dimension_numbers<[1], [0], [0], [1], [0, 0, 1, 1], [], []>} : vector<8x8xbf16>, vector<8x32xbf16>, vector<8x32xf32> -> vector<8x32xf32>
    %c0_35 = arith.constant 0 : index
    %c0_36 = arith.constant 0 : index
    %78 = vector.load %arg10[%c0_35, %c0_36] : memref<8x32xf32, #tpu.memory_space<vmem>>, vector<8x32xf32>
    %79 = arith.addf %78, %77 : vector<8x32xf32>
    %c0_37 = arith.constant 0 : index
    %c0_38 = arith.constant 0 : index
    %80 = vector.load %arg10[%c0_37, %c0_38] : memref<8x32xf32, #tpu.memory_space<vmem>>, vector<8x32xf32>
    tpu.vector_store %arg10[%c0_37, %c0_38], %79 {strides = array<i32>} : memref<8x32xf32, #tpu.memory_space<vmem>>, vector<8x32xf32>,
    %81 = vector.extract_strided_slice %6 {offsets = [0, 16], sizes = [8, 8], strides = [1, 1]} : vector<8x32xbf16> to vector<8x8xbf16>
    %82 = vector.extract_strided_slice %9 {offsets = [0, 16], sizes = [8, 8], strides = [1, 1]} : vector<8x32xbf16> to vector<8x8xbf16>
    %83 = vector.extract_strided_slice %12 {offsets = [0, 16], sizes = [8, 8], strides = [1, 1]} : vector<8x32xbf16> to vector<8x8xbf16>
    "tpu.trace_start"() <{level = 10 : i32, message = "qd,kd->qk"}> : () -> ()
    %cst_39 = arith.constant dense<0.000000e+00> : vector<8x8xf32>
    %84 = tpu.matmul %81, %82, %cst_39 {dimension_numbers = #tpu.dot_dimension_numbers<[1], [1], [0], [0], [0, 0, 1, 0], [], []>} : vector<8x8xbf16>, vector<8x8xbf16>, vector<8x8xf32> -> vector<8x8xf32>
    "tpu.trace_stop"() : () -> ()
    %c2 = arith.constant 2 : index
    %c0_40 = arith.constant 0 : index
    %c0_41 = arith.constant 0 : index
    %85 = vector.load %arg8[%c2, %c0_40, %c0_41] : memref<4x256x8xbf16, #tpu.memory_space<vmem>>, vector<1x256x8xbf16>
    %86 = vector.shape_cast %85 : vector<1x256x8xbf16> to vector<256x8xbf16>
    "tpu.trace_start"() <{level = 10 : i32, message = "qd,md->qm"}> : () -> ()
    %cst_42 = arith.constant dense<0.000000e+00> : vector<8x256xf32>
    %87 = tpu.matmul %81, %86, %cst_42 {dimension_numbers = #tpu.dot_dimension_numbers<[1], [1], [0], [0], [0, 0, 1, 0], [], []>} : vector<8x8xbf16>, vector<256x8xbf16>, vector<8x256xf32> -> vector<8x256xf32>
    "tpu.trace_stop"() : () -> ()
    %88 = vector.extract_strided_slice %87 {offsets = [0, 128], sizes = [1, 8], strides = [1, 1]} : vector<8x256xf32> to vector<1x8xf32>
    %89 = vector.extract_strided_slice %87 {offsets = [1, 127], sizes = [1, 8], strides = [1, 1]} : vector<8x256xf32> to vector<1x8xf32>
    %90 = vector.extract_strided_slice %87 {offsets = [2, 126], sizes = [1, 8], strides = [1, 1]} : vector<8x256xf32> to vector<1x8xf32>
    %91 = vector.extract_strided_slice %87 {offsets = [3, 125], sizes = [1, 8], strides = [1, 1]} : vector<8x256xf32> to vector<1x8xf32>
    %92 = vector.extract_strided_slice %87 {offsets = [4, 124], sizes = [1, 8], strides = [1, 1]} : vector<8x256xf32> to vector<1x8xf32>
    %93 = vector.extract_strided_slice %87 {offsets = [5, 123], sizes = [1, 8], strides = [1, 1]} : vector<8x256xf32> to vector<1x8xf32>
    %94 = vector.extract_strided_slice %87 {offsets = [6, 122], sizes = [1, 8], strides = [1, 1]} : vector<8x256xf32> to vector<1x8xf32>
    %95 = vector.extract_strided_slice %87 {offsets = [7, 121], sizes = [1, 8], strides = [1, 1]} : vector<8x256xf32> to vector<1x8xf32>
    %96 = tpu.concatenate %88, %89, %90, %91, %92, %93, %94, %95 in 0 : vector<1x8xf32>, vector<1x8xf32>, vector<1x8xf32>, vector<1x8xf32>, vector<1x8xf32>, vector<1x8xf32>, vector<1x8xf32>, vector<1x8xf32> -> vector<8x8xf32>
    %97 = arith.addf %84, %96 : vector<8x8xf32>
    %cst_43 = arith.constant dense<0xFF800000> : vector<8xf32>
    %98 = vector.multi_reduction <maximumf>, %97, %cst_43 [1] : vector<8x8xf32> to vector<8xf32>
    %99 = vector.shape_cast %98 : vector<8xf32> to vector<8x1xf32>
    %100 = vector.broadcast %99 : vector<8x1xf32> to vector<8x8xf32>
    %101 = arith.subf %97, %100 : vector<8x8xf32>
    %102 = math.exp %101 : vector<8x8xf32>
    %cst_44 = arith.constant dense<0.000000e+00> : vector<8xf32>
    %103 = vector.multi_reduction <add>, %102, %cst_44 [1] : vector<8x8xf32> to vector<8xf32>
    %104 = vector.shape_cast %103 : vector<8xf32> to vector<8x1xf32>
    %105 = arith.truncf %102 : vector<8x8xf32> to vector<8x8xbf16>
    %cst_45 = arith.constant dense<0.000000e+00> : vector<8x8xf32>
    %106 = tpu.matmul %105, %83, %cst_45 {dimension_numbers = #tpu.dot_dimension_numbers<[1], [0], [0], [1], [0, 0, 1, 1], [], []>} : vector<8x8xbf16>, vector<8x8xbf16>, vector<8x8xf32> -> vector<8x8xf32>
    %107 = tpu.reciprocal %104 {approx = true} : vector<8x1xf32> -> vector<8x1xf32>
    %108 = vector.broadcast %107 : vector<8x1xf32> to vector<8x8xf32>
    %109 = arith.mulf %106, %108 : vector<8x8xf32>
    %110 = arith.truncf %109 : vector<8x8xf32> to vector<8x8xbf16>
    %c16 = arith.constant 16 : index
    %c0_46 = arith.constant 0 : index
    %111 = vector.load %arg7[%c16, %c0_46] : memref<32x32xbf16, #tpu.memory_space<vmem>>, vector<8x32xbf16>
    %cst_47 = arith.constant dense<0.000000e+00> : vector<8x32xf32>
    %112 = tpu.matmul %110, %111, %cst_47 {dimension_numbers = #tpu.dot_dimension_numbers<[1], [0], [0], [1], [0, 0, 1, 1], [], []>} : vector<8x8xbf16>, vector<8x32xbf16>, vector<8x32xf32> -> vector<8x32xf32>
    %c0_48 = arith.constant 0 : index
    %c0_49 = arith.constant 0 : index
    %113 = vector.load %arg10[%c0_48, %c0_49] : memref<8x32xf32, #tpu.memory_space<vmem>>, vector<8x32xf32>
    %114 = arith.addf %113, %112 : vector<8x32xf32>
    %c0_50 = arith.constant 0 : index
    %c0_51 = arith.constant 0 : index
    %115 = vector.load %arg10[%c0_50, %c0_51] : memref<8x32xf32, #tpu.memory_space<vmem>>, vector<8x32xf32>
    tpu.vector_store %arg10[%c0_50, %c0_51], %114 {strides = array<i32>} : memref<8x32xf32, #tpu.memory_space<vmem>>, vector<8x32xf32>,
    %116 = vector.extract_strided_slice %6 {offsets = [0, 24], sizes = [8, 8], strides = [1, 1]} : vector<8x32xbf16> to vector<8x8xbf16>
    %117 = vector.extract_strided_slice %9 {offsets = [0, 24], sizes = [8, 8], strides = [1, 1]} : vector<8x32xbf16> to vector<8x8xbf16>
    %118 = vector.extract_strided_slice %12 {offsets = [0, 24], sizes = [8, 8], strides = [1, 1]} : vector<8x32xbf16> to vector<8x8xbf16>
    "tpu.trace_start"() <{level = 10 : i32, message = "qd,kd->qk"}> : () -> ()
    %cst_52 = arith.constant dense<0.000000e+00> : vector<8x8xf32>
    %119 = tpu.matmul %116, %117, %cst_52 {dimension_numbers = #tpu.dot_dimension_numbers<[1], [1], [0], [0], [0, 0, 1, 0], [], []>} : vector<8x8xbf16>, vector<8x8xbf16>, vector<8x8xf32> -> vector<8x8xf32>
    "tpu.trace_stop"() : () -> ()
    %c3 = arith.constant 3 : index
    %c0_53 = arith.constant 0 : index
    %c0_54 = arith.constant 0 : index
    %120 = vector.load %arg8[%c3, %c0_53, %c0_54] : memref<4x256x8xbf16, #tpu.memory_space<vmem>>, vector<1x256x8xbf16>
    %121 = vector.shape_cast %120 : vector<1x256x8xbf16> to vector<256x8xbf16>
    "tpu.trace_start"() <{level = 10 : i32, message = "qd,md->qm"}> : () -> ()
    %cst_55 = arith.constant dense<0.000000e+00> : vector<8x256xf32>
    %122 = tpu.matmul %116, %121, %cst_55 {dimension_numbers = #tpu.dot_dimension_numbers<[1], [1], [0], [0], [0, 0, 1, 0], [], []>} : vector<8x8xbf16>, vector<256x8xbf16>, vector<8x256xf32> -> vector<8x256xf32>
    "tpu.trace_stop"() : () -> ()
    %123 = vector.extract_strided_slice %122 {offsets = [0, 128], sizes = [1, 8], strides = [1, 1]} : vector<8x256xf32> to vector<1x8xf32>
    %124 = vector.extract_strided_slice %122 {offsets = [1, 127], sizes = [1, 8], strides = [1, 1]} : vector<8x256xf32> to vector<1x8xf32>
    %125 = vector.extract_strided_slice %122 {offsets = [2, 126], sizes = [1, 8], strides = [1, 1]} : vector<8x256xf32> to vector<1x8xf32>
    %126 = vector.extract_strided_slice %122 {offsets = [3, 125], sizes = [1, 8], strides = [1, 1]} : vector<8x256xf32> to vector<1x8xf32>
    %127 = vector.extract_strided_slice %122 {offsets = [4, 124], sizes = [1, 8], strides = [1, 1]} : vector<8x256xf32> to vector<1x8xf32>
    %128 = vector.extract_strided_slice %122 {offsets = [5, 123], sizes = [1, 8], strides = [1, 1]} : vector<8x256xf32> to vector<1x8xf32>
    %129 = vector.extract_strided_slice %122 {offsets = [6, 122], sizes = [1, 8], strides = [1, 1]} : vector<8x256xf32> to vector<1x8xf32>
    %130 = vector.extract_strided_slice %122 {offsets = [7, 121], sizes = [1, 8], strides = [1, 1]} : vector<8x256xf32> to vector<1x8xf32>
    %131 = tpu.concatenate %123, %124, %125, %126, %127, %128, %129, %130 in 0 : vector<1x8xf32>, vector<1x8xf32>, vector<1x8xf32>, vector<1x8xf32>, vector<1x8xf32>, vector<1x8xf32>, vector<1x8xf32>, vector<1x8xf32> -> vector<8x8xf32>
    %132 = arith.addf %119, %131 : vector<8x8xf32>
    %cst_56 = arith.constant dense<0xFF800000> : vector<8xf32>
    %133 = vector.multi_reduction <maximumf>, %132, %cst_56 [1] : vector<8x8xf32> to vector<8xf32>
    %134 = vector.shape_cast %133 : vector<8xf32> to vector<8x1xf32>
    %135 = vector.broadcast %134 : vector<8x1xf32> to vector<8x8xf32>
    %136 = arith.subf %132, %135 : vector<8x8xf32>
    %137 = math.exp %136 : vector<8x8xf32>
    %cst_57 = arith.constant dense<0.000000e+00> : vector<8xf32>
    %138 = vector.multi_reduction <add>, %137, %cst_57 [1] : vector<8x8xf32> to vector<8xf32>
    %139 = vector.shape_cast %138 : vector<8xf32> to vector<8x1xf32>
    %140 = arith.truncf %137 : vector<8x8xf32> to vector<8x8xbf16>
    %cst_58 = arith.constant dense<0.000000e+00> : vector<8x8xf32>
    %141 = tpu.matmul %140, %118, %cst_58 {dimension_numbers = #tpu.dot_dimension_numbers<[1], [0], [0], [1], [0, 0, 1, 1], [], []>} : vector<8x8xbf16>, vector<8x8xbf16>, vector<8x8xf32> -> vector<8x8xf32>
    %142 = tpu.reciprocal %139 {approx = true} : vector<8x1xf32> -> vector<8x1xf32>
    %143 = vector.broadcast %142 : vector<8x1xf32> to vector<8x8xf32>
    %144 = arith.mulf %141, %143 : vector<8x8xf32>
    %145 = arith.truncf %144 : vector<8x8xf32> to vector<8x8xbf16>
    %c24 = arith.constant 24 : index
    %c0_59 = arith.constant 0 : index
    %146 = vector.load %arg7[%c24, %c0_59] : memref<32x32xbf16, #tpu.memory_space<vmem>>, vector<8x32xbf16>
    %cst_60 = arith.constant dense<0.000000e+00> : vector<8x32xf32>
    %147 = tpu.matmul %145, %146, %cst_60 {dimension_numbers = #tpu.dot_dimension_numbers<[1], [0], [0], [1], [0, 0, 1, 1], [], []>} : vector<8x8xbf16>, vector<8x32xbf16>, vector<8x32xf32> -> vector<8x32xf32>
    %c0_61 = arith.constant 0 : index
    %c0_62 = arith.constant 0 : index
    %148 = vector.load %arg10[%c0_61, %c0_62] : memref<8x32xf32, #tpu.memory_space<vmem>>, vector<8x32xf32>
    %149 = arith.addf %148, %147 : vector<8x32xf32>
    %c0_63 = arith.constant 0 : index
    %c0_64 = arith.constant 0 : index
    %150 = vector.load %arg10[%c0_63, %c0_64] : memref<8x32xf32, #tpu.memory_space<vmem>>, vector<8x32xf32>
    tpu.vector_store %arg10[%c0_63, %c0_64], %149 {strides = array<i32>} : memref<8x32xf32, #tpu.memory_space<vmem>>, vector<8x32xf32>,
    %c0_65 = arith.constant 0 : index
    %c0_66 = arith.constant 0 : index
    %151 = vector.load %arg10[%c0_65, %c0_66] : memref<8x32xf32, #tpu.memory_space<vmem>>, vector<8x32xf32>
    %c0_67 = arith.constant 0 : index
    %c0_68 = arith.constant 0 : index
    %c0_69 = arith.constant 0 : index
    %152 = vector.load %arg9[%c0_67, %c0_68, %c0_69] : memref<1x8x32xf32, #tpu.memory_space<vmem>>, vector<1x8x32xf32>
    %153 = vector.shape_cast %152 : vector<1x8x32xf32> to vector<8x32xf32>
    %154 = vector.shape_cast %151 : vector<8x32xf32> to vector<1x8x32xf32>
    tpu.vector_store %arg9[%c0_67, %c0_68, %c0_69], %154 {strides = array<i32>} : memref<1x8x32xf32, #tpu.memory_space<vmem>>, vector<1x8x32xf32>,
    return
  }
  func.func @transform_0(%arg0: i32, %arg1: i32) -> (i32, i32, i32) {
    %c0_i32 = arith.constant 0 : i32
    %c0_i32_0 = arith.constant 0 : i32
    return %arg0, %arg1, %c0_i32 : i32, i32, i32
  }
  func.func @transform_1(%arg0: i32, %arg1: i32) -> (i32, i32, i32) {
    %c0_i32 = arith.constant 0 : i32
    %c0_i32_0 = arith.constant 0 : i32
    %c0_i32_1 = arith.constant 0 : i32
    return %arg0, %c0_i32, %c0_i32_0 : i32, i32, i32
  }
  func.func @transform_2(%arg0: i32, %arg1: i32) -> (i32, i32) {
    %c0_i32 = arith.constant 0 : i32
    %c0_i32_0 = arith.constant 0 : i32
    %c0_i32_1 = arith.constant 0 : i32
    return %c0_i32, %c0_i32_0 : i32, i32
  }
  func.func @transform_3(%arg0: i32, %arg1: i32) -> (i32, i32) {
    %c0_i32 = arith.constant 0 : i32
    %c0_i32_0 = arith.constant 0 : i32
    %c0_i32_1 = arith.constant 0 : i32
    return %c0_i32, %c0_i32_0 : i32, i32
  }
  func.func @transform_4(%arg0: i32, %arg1: i32) -> (i32, i32) {
    %c0_i32 = arith.constant 0 : i32
    %c0_i32_0 = arith.constant 0 : i32
    %c0_i32_1 = arith.constant 0 : i32
    return %c0_i32, %c0_i32_0 : i32, i32
  }
  func.func @transform_5(%arg0: i32, %arg1: i32) -> (i32, i32) {
    %c0_i32 = arith.constant 0 : i32
    %c0_i32_0 = arith.constant 0 : i32
    %c0_i32_1 = arith.constant 0 : i32
    return %c0_i32, %c0_i32_0 : i32, i32
  }
  func.func @transform_6(%arg0: i32, %arg1: i32) -> (i32, i32, i32) {
    %c0_i32 = arith.constant 0 : i32
    %c0_i32_0 = arith.constant 0 : i32
    %c0_i32_1 = arith.constant 0 : i32
    %c0_i32_2 = arith.constant 0 : i32
    return %c0_i32, %c0_i32_0, %c0_i32_1 : i32, i32, i32
  }
  func.func @transform_7(%arg0: i32, %arg1: i32) -> (i32, i32, i32) {
    %c0_i32 = arith.constant 0 : i32
    %c0_i32_0 = arith.constant 0 : i32
    return %arg0, %arg1, %c0_i32 : i32, i32, i32
  }
}

</mosaic_0001>

<llo_original>
// kernel: tpu_custom_call.1
$region0: #{tpu_custom_call.1}
  #allocation0 [shape = 'u32[]', space=smem, size = 0x4, offset = 0x4, fixed_abs, tag = 'smem constant byte address 0x4 - core index']
  #allocation1 [shape = 'u32[144,128]{1,0:T(1,128)}', space=vmem, size = 0x12000, scoped, tag = 'internal scratch']
  #allocation2 [shape = 'f32[8,32]{1,0:T(8,128)}', space=vmem, size = 0x1000, scoped, tag = 'scratch operand']
  %s0 = inlined_call_operand.vmem [shape: bf16[2,8,32], index: 0, kind: input, shape index: {}]
  %s1 = inlined_call_operand.vmem [shape: bf16[2,8,32], index: 1, kind: input, shape index: {}]
  %s2 = inlined_call_operand.vmem [shape: bf16[32,32], index: 2, kind: input, shape index: {}]
  %s3 = inlined_call_operand.vmem [shape: bf16[32,32], index: 3, kind: input, shape index: {}]
  %s4 = inlined_call_operand.vmem [shape: bf16[32,32], index: 4, kind: input, shape index: {}]
  %s5 = inlined_call_operand.vmem [shape: bf16[32,32], index: 5, kind: input, shape index: {}]
  %s6 = inlined_call_operand.vmem [shape: bf16[4,256,8], index: 6, kind: input, shape index: {}]
  %s7 = inlined_call_operand.hbm [shape: f32[2,8,32], index: 7, kind: output, shape index: {}]
  %s8 = sld [smem:[#allocation0]]
  $region61: #{tpu_custom_call.1} parent=0
    _
  %s10 = ssub.s32 1, %s8
  %s11 = scalar_select 0, %s10, %s8
  $region1: #{tpu_custom_call.1} parent=0
    #allocation3 [shape = 'u8[8192]{0}', space=vmem, size = 0x2000, scoped, tag = 'output window, operand 0']
    #allocation4 [shape = 's32[2]{0}', space=sflag, size = 0x8, scoped, tag = 'scoped memory for tpu_custom_call.1']
    %12 = vsyncpa [#allocation4], 0
    %s13 = scalar_lea.sflag [#allocation4], 1
    %14 = vsyncpa %s13, 0
    loop: start=0, step=1, limit=4
    $region2: #{tpu_custom_call.1} parent=1 // loop_pre_header
      _
    $region3: #{tpu_custom_call.1} parent=1 // loop_header
      %s16 = sphi 0, %s20
      %p17 = scmp.ge.s32.totalorder %s16, 4
      %s23 = sphi 0, %s35
      %s24 = sphi 0, %s31
      %s25 = sphi 0, %s23
      %s26 = sphi 0, %s24
      %s27 = sphi 0, %s25
      %s28 = sphi 0, %s26
      %s40 = sphi 0, %s42
      %s43 = sphi 0, %s40
      %s44 = sphi 0, %s43
      %s60 = sphi 0, %s44
      %s66 = sphi 0, %s68
      %s69 = sphi 0, %s66
      %s70 = sphi 0, %s69
      %s86 = sphi 0, %s70
      %s90 = sphi 0, %s90
      %s92 = sphi 0, %s90
      %s93 = sphi 0, %s92
      %s107 = sphi 0, %s93
      %s111 = sphi 0, %s111
      %s113 = sphi 0, %s111
      %s114 = sphi 0, %s113
      %s128 = sphi 0, %s114
      %s132 = sphi 0, %s132
      %s134 = sphi 0, %s132
      %s135 = sphi 0, %s134
      %s149 = sphi 0, %s135
      %s153 = sphi 0, %s153
      %s155 = sphi 0, %s153
      %s156 = sphi 0, %s155
      %s170 = sphi 0, %s156
      %s174 = sphi 0, %s174
      %s176 = sphi 0, %s174
      %s177 = sphi 0, %s176
      %s191 = sphi 0, %s177
      %s199 = sphi 0, %s201
      %s202 = sphi 0, %s199
      %s203 = sphi 0, %s202
      %s219 = sphi 0, %s203
    $region4: #{tpu_custom_call.1} parent=1 // loop_header_branch
      %19 = sbr.rel (%p17) target = $region8
    $region5: #{tpu_custom_call.1} parent=1 // loop_body
      %s21 = ssub.s32 %s16, 1
      %s22 = ssub.s32 %s16, 2
      %s29 = sadd.s32 1, %s24
      %p30 = scmp.ge.s32.totalorder %s29, 1
      %s31 = scalar_select %p30, 0, %s29
      %s32 = sadd.s32 1, %s23
      %s33 = scalar_select %p30, %s32, %s23
      %p34 = scmp.ge.s32.totalorder %s33, 2
      %s35 = scalar_select %p34, 0, %s33
      %s36 = ssub.s32 %s23, %s35
      %s37 = ssub.s32 %s24, %s31
      %s38 = sor.u32 %s36, %s37
      %p39 = scmp.eq.s32.totalorder %s38, 0
      %s41 = sadd.s32 %s40, 1
      %s42 = scalar_select %p39, %s40, %s41
      %p45 = pneg %p39
      %p46 = scmp.eq.s32.totalorder %s16, 1
      %p47 = por %p45, %p46
      %p48 = scmp.ne.s32.totalorder %s40, %s43
      %p49 = scmp.eq.s32.totalorder %s16, 0
      %p50 = por %p48, %p49
      %p51 = scmp.ne.s32.totalorder %s40, %s43
      %p52 = scmp.eq.s32.totalorder %s21, 1
      %p53 = por %p51, %p52
      %p54 = scmp.ne.s32.totalorder %s43, %s44
      %p55 = scmp.eq.s32.totalorder %s21, 0
      %p56 = por %p54, %p55
      %p57 = scmp.ne.s32.totalorder %s43, %s44
      %p58 = scmp.eq.s32.totalorder %s22, 1
      %p59 = por %p57, %p58
      %p61 = scmp.ne.s32.totalorder %s44, %s60
      %p62 = scmp.eq.s32.totalorder %s22, 0
      %p63 = por %p61, %p62
      %s64 = ssub.s32 %s23, %s35
      %p65 = scmp.eq.s32.totalorder %s64, 0
      %s67 = sadd.s32 %s66, 1
      %s68 = scalar_select %p65, %s66, %s67
      %p71 = pneg %p65
      %p72 = scmp.eq.s32.totalorder %s16, 1
      %p73 = por %p71, %p72
      %p74 = scmp.ne.s32.totalorder %s66, %s69
      %p75 = scmp.eq.s32.totalorder %s16, 0
      %p76 = por %p74, %p75
      %p77 = scmp.ne.s32.totalorder %s66, %s69
      %p78 = scmp.eq.s32.totalorder %s21, 1
      %p79 = por %p77, %p78
      %p80 = scmp.ne.s32.totalorder %s69, %s70
      %p81 = scmp.eq.s32.totalorder %s21, 0
      %p82 = por %p80, %p81
      %p83 = scmp.ne.s32.totalorder %s69, %s70
      %p84 = scmp.eq.s32.totalorder %s22, 1
      %p85 = por %p83, %p84
      %p87 = scmp.ne.s32.totalorder %s70, %s86
      %p88 = scmp.eq.s32.totalorder %s22, 0
      %p89 = por %p87, %p88
      %s91 = sadd.s32 %s90, 1
      %p94 = scmp.eq.s32.totalorder %s16, 1
      %p95 = scmp.ne.s32.totalorder %s90, %s92
      %p96 = scmp.eq.s32.totalorder %s16, 0
      %p97 = por %p95, %p96
      %p98 = scmp.ne.s32.totalorder %s90, %s92
      %p99 = scmp.eq.s32.totalorder %s21, 1
      %p100 = por %p98, %p99
      %p101 = scmp.ne.s32.totalorder %s92, %s93
      %p102 = scmp.eq.s32.totalorder %s21, 0
      %p103 = por %p101, %p102
      %p104 = scmp.ne.s32.totalorder %s92, %s93
      %p105 = scmp.eq.s32.totalorder %s22, 1
      %p106 = por %p104, %p105
      %p108 = scmp.ne.s32.totalorder %s93, %s107
      %p109 = scmp.eq.s32.totalorder %s22, 0
      %p110 = por %p108, %p109
      %s112 = sadd.s32 %s111, 1
      %p115 = scmp.eq.s32.totalorder %s16, 1
      %p116 = scmp.ne.s32.totalorder %s111, %s113
      %p117 = scmp.eq.s32.totalorder %s16, 0
      %p118 = por %p116, %p117
      %p119 = scmp.ne.s32.totalorder %s111, %s113
      %p120 = scmp.eq.s32.totalorder %s21, 1
      %p121 = por %p119, %p120
      %p122 = scmp.ne.s32.totalorder %s113, %s114
      %p123 = scmp.eq.s32.totalorder %s21, 0
      %p124 = por %p122, %p123
      %p125 = scmp.ne.s32.totalorder %s113, %s114
      %p126 = scmp.eq.s32.totalorder %s22, 1
      %p127 = por %p125, %p126
      %p129 = scmp.ne.s32.totalorder %s114, %s128
      %p130 = scmp.eq.s32.totalorder %s22, 0
      %p131 = por %p129, %p130
      %s133 = sadd.s32 %s132, 1
      %p136 = scmp.eq.s32.totalorder %s16, 1
      %p137 = scmp.ne.s32.totalorder %s132, %s134
      %p138 = scmp.eq.s32.totalorder %s16, 0
      %p139 = por %p137, %p138
      %p140 = scmp.ne.s32.totalorder %s132, %s134
      %p141 = scmp.eq.s32.totalorder %s21, 1
      %p142 = por %p140, %p141
      %p143 = scmp.ne.s32.totalorder %s134, %s135
      %p144 = scmp.eq.s32.totalorder %s21, 0
      %p145 = por %p143, %p144
      %p146 = scmp.ne.s32.totalorder %s134, %s135
      %p147 = scmp.eq.s32.totalorder %s22, 1
      %p148 = por %p146, %p147
      %p150 = scmp.ne.s32.totalorder %s135, %s149
      %p151 = scmp.eq.s32.totalorder %s22, 0
      %p152 = por %p150, %p151
      %s154 = sadd.s32 %s153, 1
      %p157 = scmp.eq.s32.totalorder %s16, 1
      %p158 = scmp.ne.s32.totalorder %s153, %s155
      %p159 = scmp.eq.s32.totalorder %s16, 0
      %p160 = por %p158, %p159
      %p161 = scmp.ne.s32.totalorder %s153, %s155
      %p162 = scmp.eq.s32.totalorder %s21, 1
      %p163 = por %p161, %p162
      %p164 = scmp.ne.s32.totalorder %s155, %s156
      %p165 = scmp.eq.s32.totalorder %s21, 0
      %p166 = por %p164, %p165
      %p167 = scmp.ne.s32.totalorder %s155, %s156
      %p168 = scmp.eq.s32.totalorder %s22, 1
      %p169 = por %p167, %p168
      %p171 = scmp.ne.s32.totalorder %s156, %s170
      %p172 = scmp.eq.s32.totalorder %s22, 0
      %p173 = por %p171, %p172
      %s175 = sadd.s32 %s174, 1
      %p178 = scmp.eq.s32.totalorder %s16, 1
      %p179 = scmp.ne.s32.totalorder %s174, %s176
      %p180 = scmp.eq.s32.totalorder %s16, 0
      %p181 = por %p179, %p180
      %p182 = scmp.ne.s32.totalorder %s174, %s176
      %p183 = scmp.eq.s32.totalorder %s21, 1
      %p184 = por %p182, %p183
      %p185 = scmp.ne.s32.totalorder %s176, %s177
      %p186 = scmp.eq.s32.totalorder %s21, 0
      %p187 = por %p185, %p186
      %p188 = scmp.ne.s32.totalorder %s176, %s177
      %p189 = scmp.eq.s32.totalorder %s22, 1
      %p190 = por %p188, %p189
      %p192 = scmp.ne.s32.totalorder %s177, %s191
      %p193 = scmp.eq.s32.totalorder %s22, 0
      %p194 = por %p192, %p193
      %s195 = ssub.s32 %s23, %s35
      %s196 = ssub.s32 %s24, %s31
      %s197 = sor.u32 %s195, %s196
      %p198 = scmp.eq.s32.totalorder %s197, 0
      %s200 = sadd.s32 %s199, 1
      %s201 = scalar_select %p198, %s199, %s200
      %p204 = pneg %p198
      %p205 = scmp.eq.s32.totalorder %s16, 1
      %p206 = por %p204, %p205
      %p207 = scmp.ne.s32.totalorder %s199, %s202
      %p208 = scmp.eq.s32.totalorder %s16, 0
      %p209 = por %p207, %p208
      %p210 = scmp.ne.s32.totalorder %s199, %s202
      %p211 = scmp.eq.s32.totalorder %s21, 1
      %p212 = por %p210, %p211
      %p213 = scmp.ne.s32.totalorder %s202, %s203
      %p214 = scmp.eq.s32.totalorder %s21, 0
      %p215 = por %p213, %p214
      %p216 = scmp.ne.s32.totalorder %s202, %s203
      %p217 = scmp.eq.s32.totalorder %s22, 1
      %p218 = por %p216, %p217
      %p220 = scmp.ne.s32.totalorder %s203, %s219
      %p221 = scmp.eq.s32.totalorder %s22, 0
      %p222 = por %p220, %p221
      %p223 = scmp.le.s32.totalorder 1, %s16
      %p224 = scmp.lt.s32.totalorder %s16, 3
      %p225 = pnand %p223, %p224
      %p226 = pneg %p225
      // Predicated region
      $region9: #{tpu_custom_call.1} parent=5 // pred_check
        _
      $region10: #{tpu_custom_call.1} parent=5 // pred_check_branch
        %228 = sbr.rel (%p225) target = $region12
      $region11: #{tpu_custom_call.1} parent=5 // pred_region
        %s229 = ssub.s32 %s16, 1
        // Predicated region
        $region13: #{tpu_custom_call.1} parent=11 // pred_check
          %p230 = pneg %p103
        $region14: #{tpu_custom_call.1} parent=11 // pred_check_branch
          %232 = sbr.rel (%p230) target = $region16
        $region15: #{tpu_custom_call.1} parent=11 // pred_region
          _
        $region16: #{tpu_custom_call.1} parent=11 // pred_fallthru
          _
        // Predicated region
        $region17: #{tpu_custom_call.1} parent=11 // pred_check
          %p233 = pneg %p124
        $region18: #{tpu_custom_call.1} parent=11 // pred_check_branch
          %235 = sbr.rel (%p233) target = $region20
        $region19: #{tpu_custom_call.1} parent=11 // pred_region
          _
        $region20: #{tpu_custom_call.1} parent=11 // pred_fallthru
          _
        // Predicated region
        $region21: #{tpu_custom_call.1} parent=11 // pred_check
          %p236 = pneg %p145
        $region22: #{tpu_custom_call.1} parent=11 // pred_check_branch
          %238 = sbr.rel (%p236) target = $region24
        $region23: #{tpu_custom_call.1} parent=11 // pred_region
          _
        $region24: #{tpu_custom_call.1} parent=11 // pred_fallthru
          _
        // Predicated region
        $region25: #{tpu_custom_call.1} parent=11 // pred_check
          %p239 = pneg %p166
        $region26: #{tpu_custom_call.1} parent=11 // pred_check_branch
          %241 = sbr.rel (%p239) target = $region28
        $region27: #{tpu_custom_call.1} parent=11 // pred_region
          _
        $region28: #{tpu_custom_call.1} parent=11 // pred_fallthru
          _
        // Predicated region
        $region29: #{tpu_custom_call.1} parent=11 // pred_check
          %p242 = pneg %p187
        $region30: #{tpu_custom_call.1} parent=11 // pred_check_branch
          %244 = sbr.rel (%p242) target = $region32
        $region31: #{tpu_custom_call.1} parent=11 // pred_region
          _
        $region32: #{tpu_custom_call.1} parent=11 // pred_fallthru
          _
      $region12: #{tpu_custom_call.1} parent=5 // pred_fallthru
        _
      %p245 = scmp.lt.s32.totalorder %s16, 2
      // Predicated region
      $region33: #{tpu_custom_call.1} parent=5 // pred_check
        %p246 = pneg %p245
      $region34: #{tpu_custom_call.1} parent=5 // pred_check_branch
        %248 = sbr.rel (%p246) target = $region36
      $region35: #{tpu_custom_call.1} parent=5 // pred_region
        // Predicated region
        $region37: #{tpu_custom_call.1} parent=35 // pred_check
          %p249 = pneg %p50
        $region38: #{tpu_custom_call.1} parent=35 // pred_check_branch
          %251 = sbr.rel (%p249) target = $region40
        $region39: #{tpu_custom_call.1} parent=35 // pred_region
          %p252 = scmp.lt.s32.totalorder %s23, 1
          %s253 = scalar_select %p252, %s23, 1
          %p254 = scmp.lt.s32.totalorder %s24, 0
          %s255 = scalar_select %p254, %s24, 0
          %s256 = sadd.s32 %s255, %s253
          %s257 = smul.addr %s256, 4
          %s258 = scalar_lea.vmem %s0, %s257
        $region40: #{tpu_custom_call.1} parent=35 // pred_fallthru
          _
        // Predicated region
        $region41: #{tpu_custom_call.1} parent=35 // pred_check
          %p259 = pneg %p76
        $region42: #{tpu_custom_call.1} parent=35 // pred_check_branch
          %261 = sbr.rel (%p259) target = $region44
        $region43: #{tpu_custom_call.1} parent=35 // pred_region
          %p262 = scmp.lt.s32.totalorder %s23, 1
          %s263 = scalar_select %p262, %s23, 1
          %s264 = smul.addr %s263, 4
          %s265 = scalar_lea.vmem %s1, %s264
        $region44: #{tpu_custom_call.1} parent=35 // pred_fallthru
          _
      $region36: #{tpu_custom_call.1} parent=5 // pred_fallthru
        _
      %p266 = scmp.le.s32.totalorder 1, %s16
      %p267 = scmp.lt.s32.totalorder %s16, 3
      %p268 = pnand %p266, %p267
      %p269 = pneg %p268
      // Predicated region
      $region45: #{tpu_custom_call.1} parent=5 // pred_check
        _
      $region46: #{tpu_custom_call.1} parent=5 // pred_check_branch
        %271 = sbr.rel (%p268) target = $region48
      $region47: #{tpu_custom_call.1} parent=5 // pred_region
        %s272 = ssub.s32 %s16, 1
        %p273 = scmp.lt.s32.totalorder %s25, 1
        %s274 = scalar_select %p273, %s25, 1
        %p275 = scmp.lt.s32.totalorder %s26, 0
        %s276 = scalar_select %p275, %s26, 0
        %s277 = sadd.s32 %s276, %s274
        %s278 = smul.addr %s277, 4
        %s279 = scalar_lea.vmem %s0, %s278
        %p280 = pneg %p56
        %p281 = pneg %p53
        %p282 = scmp.lt.s32.totalorder %s25, 1
        %s283 = scalar_select %p282, %s25, 1
        %s284 = smul.addr %s283, 4
        %s285 = scalar_lea.vmem %s1, %s284
        %p286 = pneg %p82
        %p287 = pneg %p79
        %p288 = pneg %p103
        %p289 = pneg %p100
        %p290 = pneg %p124
        %p291 = pneg %p121
        %p292 = pneg %p145
        %p293 = pneg %p142
        %p294 = pneg %p166
        %p295 = pneg %p163
        %p296 = pneg %p187
        %p297 = pneg %p184
        %p298 = pneg %p215
        %p299 = pneg %p212
        %s300 = sand.u32 %s202, 1
        %s301 = scalar_lea.sflag [#allocation4], %s300
        %s302 = sand.u32 %s202, 1
        %s303 = smul.addr %s302, 8
        %s304 = scalar_lea.vmem [#allocation3], %s303
        %p305 = scmp.lt.s32.totalorder %s25, 1
        %s306 = scalar_select %p305, %s25, 1
        %p307 = scmp.lt.s32.totalorder %s26, 0
        %s308 = scalar_select %p307, %s26, 0
        %s309 = sadd.s32 %s308, %s306
        %s310 = smul.addr %s309, 4
        %s311 = scalar_lea.vmem %s0, %s310
        %p312 = scmp.lt.s32.totalorder %s25, 1
        %s313 = scalar_select %p312, %s25, 1
        %s314 = smul.addr %s313, 4
        %s315 = scalar_lea.vmem %s1, %s314
        %s317 = smul.u32 %s26, 8
        %v318 = vld [vmem:[%s311] sm:$0xf]
        %v319 = vld [vmem:[%s315] sm:$0xf]
        %v320 = vld [vmem:[%s2] sm:$0xf]
        %v321 = vld [vmem:[%s2 + $0x4] sm:$0xf]
        %v322 = vld [vmem:[%s2 + $0x8] sm:$0xf]
        %v323 = vld [vmem:[%s2 + $0xc] sm:$0xf]
        %v328 = vunpack.c.l.b16 %v320
        %v329 = vunpack.c.l.b16 %v321
        %v330 = vunpack.c.l.b16 %v322
        %v331 = vunpack.c.l.b16 %v323
        %v332 = vpack.c.b16 %v329, %v328
        %v333 = vpack.c.b16 %v331, %v330
        %vm336 = vcmask 261120
        %v338 = vsel %vm336, %v318, 0
        %340 = vmatprep.subr.bf16.mxu0 0
        %341 = vmatpush1.bf16.msra.mxu0 %v332
        %342 = vmatprep.subr.bf16.mxu0 0
        %343 = vmatpush1.bf16.msra.mxu0 %v333
        %344 = vmatprep.subr.bf16.mxu0 0
        %345 = vmatpush1.bf16.msra.mxu0 0
        %346 = vmatprep.subr.bf16.mxu0 0
        %347 = vmatpush1.bf16.msra.mxu0 0
        %348 = vmatprep.subr.bf16.mxu0 0
        %349 = vmatpush1.bf16.msra.mxu0 0
        %350 = vmatprep.subr.bf16.mxu0 0
        %351 = vmatpush1.bf16.msra.mxu0 0
        %352 = vmatprep.subr.bf16.mxu0 0
        %353 = vmatpush1.bf16.msra.mxu0 0
        %354 = vmatprep.subr.bf16.mxu0 0
        %355 = vmatpush1.bf16.msra.mxu0 0
        %356 = vmatprep.subr.bf16.mxu0 0
        %357 = vmatpush1.bf16.msra.mxu0 0
        %358 = vmatprep.subr.bf16.mxu0 0
        %359 = vmatpush1.bf16.msra.mxu0 0
        %360 = vmatprep.subr.bf16.mxu0 0
        %361 = vmatpush1.bf16.msra.mxu0 0
        %362 = vmatprep.subr.bf16.mxu0 0
        %363 = vmatpush1.bf16.msra.mxu0 0
        %364 = vmatprep.subr.bf16.mxu0 0
        %365 = vmatpush1.bf16.msra.mxu0 0
        %366 = vmatprep.subr.bf16.mxu0 0
        %367 = vmatpush1.bf16.msra.mxu0 0
        %368 = vmatprep.subr.bf16.mxu0 0
        %369 = vmatpush1.bf16.msra.mxu0 0
        %370 = vmatprep.subr.bf16.mxu0 0
        %371 = vmatpush1.bf16.msra.mxu0 0
        %372 = vmatprep.mubr.bf16.mxu0 0
        %373 = vmatmul.mubr.bf16.gmra.mrb[0].mxu0 %v338
        %v374 = vpop.f32.mrb[0].mxu0
        %v375 = vadd.f32 0.0, %v374
        %v376 = vpop.f32.mrb[0].mxu0
        %v377 = vpop.f32.mrb[0].mxu0
        %v378 = vpop.f32.mrb[0].mxu0
        %379 = vdwg.mxu0
        %v380 = vpack.c.bf16 %v375, %v375
        %v381 = vld [vmem:[%s3] sm:$0xf]
        %v382 = vld [vmem:[%s3 + $0x4] sm:$0xf]
        %v383 = vld [vmem:[%s3 + $0x8] sm:$0xf]
        %v384 = vld [vmem:[%s3 + $0xc] sm:$0xf]
        %v389 = vunpack.c.l.b16 %v381
        %v390 = vunpack.c.l.b16 %v382
        %v391 = vunpack.c.l.b16 %v383
        %v392 = vunpack.c.l.b16 %v384
        %v393 = vpack.c.b16 %v390, %v389
        %v394 = vpack.c.b16 %v392, %v391
        %v398 = vsel %vm336, %v319, 0
        %400 = vmatprep.subr.bf16.mxu0 0
        %401 = vmatpush1.bf16.msra.mxu0 %v393
        %402 = vmatprep.subr.bf16.mxu0 0
        %403 = vmatpush1.bf16.msra.mxu0 %v394
        %404 = vmatprep.subr.bf16.mxu0 0
        %405 = vmatpush1.bf16.msra.mxu0 0
        %406 = vmatprep.subr.bf16.mxu0 0
        %407 = vmatpush1.bf16.msra.mxu0 0
        %408 = vmatprep.subr.bf16.mxu0 0
        %409 = vmatpush1.bf16.msra.mxu0 0
        %410 = vmatprep.subr.bf16.mxu0 0
        %411 = vmatpush1.bf16.msra.mxu0 0
        %412 = vmatprep.subr.bf16.mxu0 0
        %413 = vmatpush1.bf16.msra.mxu0 0
        %414 = vmatprep.subr.bf16.mxu0 0
        %415 = vmatpush1.bf16.msra.mxu0 0
        %416 = vmatprep.subr.bf16.mxu0 0
        %417 = vmatpush1.bf16.msra.mxu0 0
        %418 = vmatprep.subr.bf16.mxu0 0
        %419 = vmatpush1.bf16.msra.mxu0 0
        %420 = vmatprep.subr.bf16.mxu0 0
        %421 = vmatpush1.bf16.msra.mxu0 0
        %422 = vmatprep.subr.bf16.mxu0 0
        %423 = vmatpush1.bf16.msra.mxu0 0
        %424 = vmatprep.subr.bf16.mxu0 0
        %425 = vmatpush1.bf16.msra.mxu0 0
        %426 = vmatprep.subr.bf16.mxu0 0
        %427 = vmatpush1.bf16.msra.mxu0 0
        %428 = vmatprep.subr.bf16.mxu0 0
        %429 = vmatpush1.bf16.msra.mxu0 0
        %430 = vmatprep.subr.bf16.mxu0 0
        %431 = vmatpush1.bf16.msra.mxu0 0
        %432 = vmatprep.mubr.bf16.mxu0 0
        %433 = vmatmul.mubr.bf16.gmra.mrb[0].mxu0 %v398
        %v434 = vpop.f32.mrb[0].mxu0
        %v435 = vadd.f32 0.0, %v434
        %v436 = vpop.f32.mrb[0].mxu0
        %v437 = vpop.f32.mrb[0].mxu0
        %v438 = vpop.f32.mrb[0].mxu0
        %439 = vdwg.mxu0
        %v440 = vpack.c.bf16 %v435, %v435
        %v441 = vld [vmem:[%s4] sm:$0xf]
        %v442 = vld [vmem:[%s4 + $0x4] sm:$0xf]
        %v443 = vld [vmem:[%s4 + $0x8] sm:$0xf]
        %v444 = vld [vmem:[%s4 + $0xc] sm:$0xf]
        %v449 = vunpack.c.l.b16 %v441
        %v450 = vunpack.c.l.b16 %v442
        %v451 = vunpack.c.l.b16 %v443
        %v452 = vunpack.c.l.b16 %v444
        %v453 = vpack.c.b16 %v450, %v449
        %v454 = vpack.c.b16 %v452, %v451
        %457 = vmatprep.subr.bf16.mxu0 0
        %458 = vmatpush1.bf16.msra.mxu0 %v453
        %459 = vmatprep.subr.bf16.mxu0 0
        %460 = vmatpush1.bf16.msra.mxu0 %v454
        %461 = vmatprep.subr.bf16.mxu0 0
        %462 = vmatpush1.bf16.msra.mxu0 0
        %463 = vmatprep.subr.bf16.mxu0 0
        %464 = vmatpush1.bf16.msra.mxu0 0
        %465 = vmatprep.subr.bf16.mxu0 0
        %466 = vmatpush1.bf16.msra.mxu0 0
        %467 = vmatprep.subr.bf16.mxu0 0
        %468 = vmatpush1.bf16.msra.mxu0 0
        %469 = vmatprep.subr.bf16.mxu0 0
        %470 = vmatpush1.bf16.msra.mxu0 0
        %471 = vmatprep.subr.bf16.mxu0 0
        %472 = vmatpush1.bf16.msra.mxu0 0
        %473 = vmatprep.subr.bf16.mxu0 0
        %474 = vmatpush1.bf16.msra.mxu0 0
        %475 = vmatprep.subr.bf16.mxu0 0
        %476 = vmatpush1.bf16.msra.mxu0 0
        %477 = vmatprep.subr.bf16.mxu0 0
        %478 = vmatpush1.bf16.msra.mxu0 0
        %479 = vmatprep.subr.bf16.mxu0 0
        %480 = vmatpush1.bf16.msra.mxu0 0
        %481 = vmatprep.subr.bf16.mxu0 0
        %482 = vmatpush1.bf16.msra.mxu0 0
        %483 = vmatprep.subr.bf16.mxu0 0
        %484 = vmatpush1.bf16.msra.mxu0 0
        %485 = vmatprep.subr.bf16.mxu0 0
        %486 = vmatpush1.bf16.msra.mxu0 0
        %487 = vmatprep.subr.bf16.mxu0 0
        %488 = vmatpush1.bf16.msra.mxu0 0
        %489 = vmatprep.mubr.bf16.mxu0 0
        %490 = vmatmul.mubr.bf16.gmra.mrb[0].mxu0 %v398
        %v491 = vpop.f32.mrb[0].mxu0
        %v492 = vadd.f32 0.0, %v491
        %v493 = vpop.f32.mrb[0].mxu0
        %v494 = vpop.f32.mrb[0].mxu0
        %v495 = vpop.f32.mrb[0].mxu0
        %496 = vdwg.mxu0
        %v497 = vpack.c.bf16 %v492, %v492
        %v498 = vld [vmem:[%s6] sm:$0xf]
        %v499 = vld [vmem:[%s6 + $0x4] sm:$0xf]
        %v500 = vld [vmem:[%s6 + $0x8] sm:$0xf]
        %v501 = vld [vmem:[%s6 + $0xc] sm:$0xf]
        %v502 = vld [vmem:[%s6 + $0x10] sm:$0xf]
        %v503 = vld [vmem:[%s6 + $0x14] sm:$0xf]
        %v504 = vld [vmem:[%s6 + $0x18] sm:$0xf]
        %v505 = vld [vmem:[%s6 + $0x1c] sm:$0xf]
        %v506 = vld [vmem:[%s6 + $0x20] sm:$0xf]
        %v507 = vld [vmem:[%s6 + $0x24] sm:$0xf]
        %v508 = vld [vmem:[%s6 + $0x28] sm:$0xf]
        %v509 = vld [vmem:[%s6 + $0x2c] sm:$0xf]
        %v510 = vld [vmem:[%s6 + $0x30] sm:$0xf]
        %v511 = vld [vmem:[%s6 + $0x34] sm:$0xf]
        %v512 = vld [vmem:[%s6 + $0x38] sm:$0xf]
        %v513 = vld [vmem:[%s6 + $0x3c] sm:$0xf]
        %v514 = vld [vmem:[%s6 + $0x40] sm:$0xf]
        %v515 = vld [vmem:[%s6 + $0x44] sm:$0xf]
        %v516 = vld [vmem:[%s6 + $0x48] sm:$0xf]
        %v517 = vld [vmem:[%s6 + $0x4c] sm:$0xf]
        %v518 = vld [vmem:[%s6 + $0x50] sm:$0xf]
        %v519 = vld [vmem:[%s6 + $0x54] sm:$0xf]
        %v520 = vld [vmem:[%s6 + $0x58] sm:$0xf]
        %v521 = vld [vmem:[%s6 + $0x5c] sm:$0xf]
        %v522 = vld [vmem:[%s6 + $0x60] sm:$0xf]
        %v523 = vld [vmem:[%s6 + $0x64] sm:$0xf]
        %v524 = vld [vmem:[%s6 + $0x68] sm:$0xf]
        %v525 = vld [vmem:[%s6 + $0x6c] sm:$0xf]
        %v526 = vld [vmem:[%s6 + $0x70] sm:$0xf]
        %v527 = vld [vmem:[%s6 + $0x74] sm:$0xf]
        %v528 = vld [vmem:[%s6 + $0x78] sm:$0xf]
        %v529 = vld [vmem:[%s6 + $0x7c] sm:$0xf]
        %v562 = vunpack.c.l.b16 %v498
        %v563 = vunpack.c.l.b16 %v499
        %v564 = vunpack.c.l.b16 %v500
        %v565 = vunpack.c.l.b16 %v501
        %v566 = vunpack.c.l.b16 %v502
        %v567 = vunpack.c.l.b16 %v503
        %v568 = vunpack.c.l.b16 %v504
        %v569 = vunpack.c.l.b16 %v505
        %v570 = vunpack.c.l.b16 %v506
        %v571 = vunpack.c.l.b16 %v507
        %v572 = vunpack.c.l.b16 %v508
        %v573 = vunpack.c.l.b16 %v509
        %v574 = vunpack.c.l.b16 %v510
        %v575 = vunpack.c.l.b16 %v511
        %v576 = vunpack.c.l.b16 %v512
        %v577 = vunpack.c.l.b16 %v513
        %v578 = vunpack.c.l.b16 %v514
        %v579 = vunpack.c.l.b16 %v515
        %v580 = vunpack.c.l.b16 %v516
        %v581 = vunpack.c.l.b16 %v517
        %v582 = vunpack.c.l.b16 %v518
        %v583 = vunpack.c.l.b16 %v519
        %v584 = vunpack.c.l.b16 %v520
        %v585 = vunpack.c.l.b16 %v521
        %v586 = vunpack.c.l.b16 %v522
        %v587 = vunpack.c.l.b16 %v523
        %v588 = vunpack.c.l.b16 %v524
        %v589 = vunpack.c.l.b16 %v525
        %v590 = vunpack.c.l.b16 %v526
        %v591 = vunpack.c.l.b16 %v527
        %v592 = vunpack.c.l.b16 %v528
        %v593 = vunpack.c.l.b16 %v529
        %v594 = vpack.c.b16 %v563, %v562
        %v595 = vpack.c.b16 %v565, %v564
        %v596 = vpack.c.b16 %v567, %v566
        %v597 = vpack.c.b16 %v569, %v568
        %v598 = vpack.c.b16 %v571, %v570
        %v599 = vpack.c.b16 %v573, %v572
        %v600 = vpack.c.b16 %v575, %v574
        %v601 = vpack.c.b16 %v577, %v576
        %v602 = vpack.c.b16 %v579, %v578
        %v603 = vpack.c.b16 %v581, %v580
        %v604 = vpack.c.b16 %v583, %v582
        %v605 = vpack.c.b16 %v585, %v584
        %v606 = vpack.c.b16 %v587, %v586
        %v607 = vpack.c.b16 %v589, %v588
        %v608 = vpack.c.b16 %v591, %v590
        %v609 = vpack.c.b16 %v593, %v592
        %vm610 = vcmask 64512
        %v612 = vsel %vm610, %v380, 0
        %v615 = vsel %vm610, %v594, 0
        %v618 = vsel %vm610, %v595, 0
        %v621 = vsel %vm610, %v596, 0
        %v624 = vsel %vm610, %v597, 0
        %v627 = vsel %vm610, %v598, 0
        %v630 = vsel %vm610, %v599, 0
        %v633 = vsel %vm610, %v600, 0
        %v636 = vsel %vm610, %v601, 0
        %v639 = vsel %vm610, %v602, 0
        %v642 = vsel %vm610, %v603, 0
        %v645 = vsel %vm610, %v604, 0
        %v648 = vsel %vm610, %v605, 0
        %v651 = vsel %vm610, %v606, 0
        %v654 = vsel %vm610, %v607, 0
        %v657 = vsel %vm610, %v608, 0
        %v660 = vsel %vm610, %v609, 0
        %662 = vmatprep.subr.bf16.mxu0 0
        %663 = vmatpush1.bf16.xpose.msra.mxu0 %v615
        %664 = vmatprep.subr.bf16.mxu0 0
        %665 = vmatpush1.bf16.xpose.msra.mxu0 %v618
        %666 = vmatprep.subr.bf16.mxu0 0
        %667 = vmatpush1.bf16.xpose.msra.mxu0 %v621
        %668 = vmatprep.subr.bf16.mxu0 0
        %669 = vmatpush1.bf16.xpose.msra.mxu0 %v624
        %670 = vmatprep.subr.bf16.mxu0 0
        %671 = vmatpush1.bf16.xpose.msra.mxu0 %v627
        %672 = vmatprep.subr.bf16.mxu0 0
        %673 = vmatpush1.bf16.xpose.msra.mxu0 %v630
        %674 = vmatprep.subr.bf16.mxu0 0
        %675 = vmatpush1.bf16.xpose.msra.mxu0 %v633
        %676 = vmatprep.subr.bf16.mxu0 0
        %677 = vmatpush1.bf16.xpose.msra.mxu0 %v636
        %678 = vmatprep.subr.bf16.mxu0 0
        %679 = vmatpush1.bf16.xpose.msra.mxu0 %v639
        %680 = vmatprep.subr.bf16.mxu0 0
        %681 = vmatpush1.bf16.xpose.msra.mxu0 %v642
        %682 = vmatprep.subr.bf16.mxu0 0
        %683 = vmatpush1.bf16.xpose.msra.mxu0 %v645
        %684 = vmatprep.subr.bf16.mxu0 0
        %685 = vmatpush1.bf16.xpose.msra.mxu0 %v648
        %686 = vmatprep.subr.bf16.mxu0 0
        %687 = vmatpush1.bf16.xpose.msra.mxu0 %v651
        %688 = vmatprep.subr.bf16.mxu0 0
        %689 = vmatpush1.bf16.xpose.msra.mxu0 %v654
        %690 = vmatprep.subr.bf16.mxu0 0
        %691 = vmatpush1.bf16.xpose.msra.mxu0 %v657
        %692 = vmatprep.subr.bf16.mxu0 0
        %693 = vmatpush1.bf16.xpose.msra.mxu0 %v660
        %694 = vmatprep.mubr.bf16.mxu0 0
        %695 = vmatmul.mubr.bf16.gmra.mrb[0].mxu0 %v612
        %v696 = vpop.f32.mrb[0].mxu0
        %v697 = vadd.f32 0.0, %v696
        %v698 = vpop.f32.mrb[0].mxu0
        %v699 = vadd.f32 0.0, %v698
        %v700 = vpop.f32.mrb[0].mxu0
        %v701 = vpop.f32.mrb[0].mxu0
        %702 = vdwg.mxu0
        %s703 = sand.u32 %s317, 255
        %s704 = sand.u32 %s703, 255
        %s705 = sand.u32 %s704, 127
        %s706 = sshrl.u32 %s704, 7
        %s707 = sand.u32 %s705, 255
        %s709 = sor.u32 256, %s707
        %710 = vrot.lane.b32.xlu0 %v697, %s709
        %v711 = vpop.permute.xlu0 %710
        %s712 = sand.u32 %s705, 255
        %s714 = sor.u32 256, %s712
        %715 = vrot.lane.b32.xlu0 %v699, %s714
        %v716 = vpop.permute.xlu0 %715
        %v717 = vstv %s705
        %v718 = vlaneseq
        %v719 = vshrl.u32 %v718, 7
        %v720 = vadd.s32 %v717, %v719
        %v721 = vlaneseq
        %v722 = vand.u32 %v721, 127
        %vm723 = vcmp.lt.s32.totalorder %v722, %v720
        %v724 = vsel %vm723, %v711, %v716
        %v725 = vsel %vm723, %v716, %v711
        %s726 = sand.u32 %s706, 1
        %v727 = vstv %s726
        %vm728 = vcmp.ne.s32.totalorder %v727, 0
        %v729 = vsel %vm728, %v725, %v724
        %v731 = vsel %vm610, %v440, 0
        %733 = vmatprep.subr.bf16.mxu0 0
        %734 = vmatpush1.bf16.xpose.msra.mxu0 %v731
        %735 = vmatprep.subr.bf16.mxu0 0
        %736 = vmatpush1.bf16.xpose.msra.mxu0 0
        %737 = vmatprep.subr.bf16.mxu0 0
        %738 = vmatpush1.bf16.xpose.msra.mxu0 0
        %739 = vmatprep.subr.bf16.mxu0 0
        %740 = vmatpush1.bf16.xpose.msra.mxu0 0
        %741 = vmatprep.subr.bf16.mxu0 0
        %742 = vmatpush1.bf16.xpose.msra.mxu0 0
        %743 = vmatprep.subr.bf16.mxu0 0
        %744 = vmatpush1.bf16.xpose.msra.mxu0 0
        %745 = vmatprep.subr.bf16.mxu0 0
        %746 = vmatpush1.bf16.xpose.msra.mxu0 0
        %747 = vmatprep.subr.bf16.mxu0 0
        %748 = vmatpush1.bf16.xpose.msra.mxu0 0
        %749 = vmatprep.subr.bf16.mxu0 0
        %750 = vmatpush1.bf16.xpose.msra.mxu0 0
        %751 = vmatprep.subr.bf16.mxu0 0
        %752 = vmatpush1.bf16.xpose.msra.mxu0 0
        %753 = vmatprep.subr.bf16.mxu0 0
        %754 = vmatpush1.bf16.xpose.msra.mxu0 0
        %755 = vmatprep.subr.bf16.mxu0 0
        %756 = vmatpush1.bf16.xpose.msra.mxu0 0
        %757 = vmatprep.subr.bf16.mxu0 0
        %758 = vmatpush1.bf16.xpose.msra.mxu0 0
        %759 = vmatprep.subr.bf16.mxu0 0
        %760 = vmatpush1.bf16.xpose.msra.mxu0 0
        %761 = vmatprep.subr.bf16.mxu0 0
        %762 = vmatpush1.bf16.xpose.msra.mxu0 0
        %763 = vmatprep.subr.bf16.mxu0 0
        %764 = vmatpush1.bf16.xpose.msra.mxu0 0
        %765 = vmatprep.mubr.bf16.mxu0 0
        %766 = vmatmul.mubr.bf16.gmra.mrb[0].mxu0 %v612
        %v767 = vpop.f32.mrb[0].mxu0
        %v768 = vadd.f32 %v729, %v767
        %v769 = vpop.f32.mrb[0].mxu0
        %v770 = vpop.f32.mrb[0].mxu0
        %v771 = vpop.f32.mrb[0].mxu0
        %772 = vdwg.mxu0
        %v773 = vsel %vm610, %v768, -inf
        %774 = vmax.xlane.f32.xlu0 %v773
        %v775 = vpop.xlane.xlu0 %774
        %v776 = vsub.f32 %v768, %v775
        %v777 = vmul.f32 %v776, 1.442695
        %v778 = vpow.pop %v777
        %v779 = vsel %vm610, %v778, 0.0
        %780 = vadd.xlane.f32.xlu0 %v779
        %v781 = vpop.xlane.xlu0 %780
        %v782 = vpack.c.bf16 %v778, %v778
        %v784 = vsel %vm610, %v782, 0
        %vm786 = vcmask 1043456
        %v788 = vsel %vm786, %v497, 0
        %790 = vmatprep.subr.bf16.mxu0 0
        %791 = vmatpush1.bf16.msra.mxu0 %v788
        %792 = vmatprep.subr.bf16.mxu0 0
        %793 = vmatpush1.bf16.msra.mxu0 0
        %794 = vmatprep.subr.bf16.mxu0 0
        %795 = vmatpush1.bf16.msra.mxu0 0
        %796 = vmatprep.subr.bf16.mxu0 0
        %797 = vmatpush1.bf16.msra.mxu0 0
        %798 = vmatprep.subr.bf16.mxu0 0
        %799 = vmatpush1.bf16.msra.mxu0 0
        %800 = vmatprep.subr.bf16.mxu0 0
        %801 = vmatpush1.bf16.msra.mxu0 0
        %802 = vmatprep.subr.bf16.mxu0 0
        %803 = vmatpush1.bf16.msra.mxu0 0
        %804 = vmatprep.subr.bf16.mxu0 0
        %805 = vmatpush1.bf16.msra.mxu0 0
        %806 = vmatprep.subr.bf16.mxu0 0
        %807 = vmatpush1.bf16.msra.mxu0 0
        %808 = vmatprep.subr.bf16.mxu0 0
        %809 = vmatpush1.bf16.msra.mxu0 0
        %810 = vmatprep.subr.bf16.mxu0 0
        %811 = vmatpush1.bf16.msra.mxu0 0
        %812 = vmatprep.subr.bf16.mxu0 0
        %813 = vmatpush1.bf16.msra.mxu0 0
        %814 = vmatprep.subr.bf16.mxu0 0
        %815 = vmatpush1.bf16.msra.mxu0 0
        %816 = vmatprep.subr.bf16.mxu0 0
        %817 = vmatpush1.bf16.msra.mxu0 0
        %818 = vmatprep.subr.bf16.mxu0 0
        %819 = vmatpush1.bf16.msra.mxu0 0
        %820 = vmatprep.subr.bf16.mxu0 0
        %821 = vmatpush1.bf16.msra.mxu0 0
        %822 = vmatprep.mubr.bf16.mxu0 0
        %823 = vmatmul.mubr.bf16.gmra.mrb[0].mxu0 %v784
        %v824 = vpop.f32.mrb[0].mxu0
        %v825 = vadd.f32 0.0, %v824
        %v826 = vpop.f32.mrb[0].mxu0
        %v827 = vpop.f32.mrb[0].mxu0
        %v828 = vpop.f32.mrb[0].mxu0
        %829 = vdwg.mxu0
        %v830 = vrcp.pop %v781
        %v831 = vmul.f32 %v825, %v830
        %v832 = vpack.c.bf16 %v831, %v831
        %v833 = vld [vmem:[%s5] sm:$0xf]
        %v835 = vsel %vm610, %v832, 0
        %v838 = vsel %vm786, %v833, 0
        %840 = vmatprep.subr.bf16.mxu0 0
        %841 = vmatpush1.bf16.msra.mxu0 %v838
        %842 = vmatprep.subr.bf16.mxu0 0
        %843 = vmatpush1.bf16.msra.mxu0 0
        %844 = vmatprep.subr.bf16.mxu0 0
        %845 = vmatpush1.bf16.msra.mxu0 0
        %846 = vmatprep.subr.bf16.mxu0 0
        %847 = vmatpush1.bf16.msra.mxu0 0
        %848 = vmatprep.subr.bf16.mxu0 0
        %849 = vmatpush1.bf16.msra.mxu0 0
        %850 = vmatprep.subr.bf16.mxu0 0
        %851 = vmatpush1.bf16.msra.mxu0 0
        %852 = vmatprep.subr.bf16.mxu0 0
        %853 = vmatpush1.bf16.msra.mxu0 0
        %854 = vmatprep.subr.bf16.mxu0 0
        %855 = vmatpush1.bf16.msra.mxu0 0
        %856 = vmatprep.subr.bf16.mxu0 0
        %857 = vmatpush1.bf16.msra.mxu0 0
        %858 = vmatprep.subr.bf16.mxu0 0
        %859 = vmatpush1.bf16.msra.mxu0 0
        %860 = vmatprep.subr.bf16.mxu0 0
        %861 = vmatpush1.bf16.msra.mxu0 0
        %862 = vmatprep.subr.bf16.mxu0 0
        %863 = vmatpush1.bf16.msra.mxu0 0
        %864 = vmatprep.subr.bf16.mxu0 0
        %865 = vmatpush1.bf16.msra.mxu0 0
        %866 = vmatprep.subr.bf16.mxu0 0
        %867 = vmatpush1.bf16.msra.mxu0 0
        %868 = vmatprep.subr.bf16.mxu0 0
        %869 = vmatpush1.bf16.msra.mxu0 0
        %870 = vmatprep.subr.bf16.mxu0 0
        %871 = vmatpush1.bf16.msra.mxu0 0
        %872 = vmatprep.mubr.bf16.mxu0 0
        %873 = vmatmul.mubr.bf16.gmra.mrb[0].mxu0 %v835
        %v874 = vpop.f32.mrb[0].mxu0
        %v875 = vadd.f32 0.0, %v874
        %v876 = vpop.f32.mrb[0].mxu0
        %v877 = vpop.f32.mrb[0].mxu0
        %v878 = vpop.f32.mrb[0].mxu0
        %879 = vdwg.mxu0
        %880 = vst.msk [vmem:[#allocation2] sm:$0xff] %vm336, %v875
        %s881 = scalar_lea.vmem %s6, 128
        %v882 = vld [vmem:[%s881] sm:$0xf]
        %v883 = vld [vmem:[%s881 + $0x4] sm:$0xf]
        %v884 = vld [vmem:[%s881 + $0x8] sm:$0xf]
        %v885 = vld [vmem:[%s881 + $0xc] sm:$0xf]
        %v886 = vld [vmem:[%s881 + $0x10] sm:$0xf]
        %v887 = vld [vmem:[%s881 + $0x14] sm:$0xf]
        %v888 = vld [vmem:[%s881 + $0x18] sm:$0xf]
        %v889 = vld [vmem:[%s881 + $0x1c] sm:$0xf]
        %v890 = vld [vmem:[%s881 + $0x20] sm:$0xf]
        %v891 = vld [vmem:[%s881 + $0x24] sm:$0xf]
        %v892 = vld [vmem:[%s881 + $0x28] sm:$0xf]
        %v893 = vld [vmem:[%s881 + $0x2c] sm:$0xf]
        %v894 = vld [vmem:[%s881 + $0x30] sm:$0xf]
        %v895 = vld [vmem:[%s881 + $0x34] sm:$0xf]
        %v896 = vld [vmem:[%s881 + $0x38] sm:$0xf]
        %v897 = vld [vmem:[%s881 + $0x3c] sm:$0xf]
        %v898 = vld [vmem:[%s881 + $0x40] sm:$0xf]
        %v899 = vld [vmem:[%s881 + $0x44] sm:$0xf]
        %v900 = vld [vmem:[%s881 + $0x48] sm:$0xf]
        %v901 = vld [vmem:[%s881 + $0x4c] sm:$0xf]
        %v902 = vld [vmem:[%s881 + $0x50] sm:$0xf]
        %v903 = vld [vmem:[%s881 + $0x54] sm:$0xf]
        %v904 = vld [vmem:[%s881 + $0x58] sm:$0xf]
        %v905 = vld [vmem:[%s881 + $0x5c] sm:$0xf]
        %v906 = vld [vmem:[%s881 + $0x60] sm:$0xf]
        %v907 = vld [vmem:[%s881 + $0x64] sm:$0xf]
        %v908 = vld [vmem:[%s881 + $0x68] sm:$0xf]
        %v909 = vld [vmem:[%s881 + $0x6c] sm:$0xf]
        %v910 = vld [vmem:[%s881 + $0x70] sm:$0xf]
        %v911 = vld [vmem:[%s881 + $0x74] sm:$0xf]
        %v912 = vld [vmem:[%s881 + $0x78] sm:$0xf]
        %v913 = vld [vmem:[%s881 + $0x7c] sm:$0xf]
        %915 = vrot.lane.b32.xlu0 %v380, 120
        %v916 = vpop.permute.xlu0 %915
        %v949 = vunpack.c.l.b16 %v882
        %v950 = vunpack.c.l.b16 %v883
        %v951 = vunpack.c.l.b16 %v884
        %v952 = vunpack.c.l.b16 %v885
        %v953 = vunpack.c.l.b16 %v886
        %v954 = vunpack.c.l.b16 %v887
        %v955 = vunpack.c.l.b16 %v888
        %v956 = vunpack.c.l.b16 %v889
        %v957 = vunpack.c.l.b16 %v890
        %v958 = vunpack.c.l.b16 %v891
        %v959 = vunpack.c.l.b16 %v892
        %v960 = vunpack.c.l.b16 %v893
        %v961 = vunpack.c.l.b16 %v894
        %v962 = vunpack.c.l.b16 %v895
        %v963 = vunpack.c.l.b16 %v896
        %v964 = vunpack.c.l.b16 %v897
        %v965 = vunpack.c.l.b16 %v898
        %v966 = vunpack.c.l.b16 %v899
        %v967 = vunpack.c.l.b16 %v900
        %v968 = vunpack.c.l.b16 %v901
        %v969 = vunpack.c.l.b16 %v902
        %v970 = vunpack.c.l.b16 %v903
        %v971 = vunpack.c.l.b16 %v904
        %v972 = vunpack.c.l.b16 %v905
        %v973 = vunpack.c.l.b16 %v906
        %v974 = vunpack.c.l.b16 %v907
        %v975 = vunpack.c.l.b16 %v908
        %v976 = vunpack.c.l.b16 %v909
        %v977 = vunpack.c.l.b16 %v910
        %v978 = vunpack.c.l.b16 %v911
        %v979 = vunpack.c.l.b16 %v912
        %v980 = vunpack.c.l.b16 %v913
        %v981 = vpack.c.b16 %v950, %v949
        %v982 = vpack.c.b16 %v952, %v951
        %v983 = vpack.c.b16 %v954, %v953
        %v984 = vpack.c.b16 %v956, %v955
        %v985 = vpack.c.b16 %v958, %v957
        %v986 = vpack.c.b16 %v960, %v959
        %v987 = vpack.c.b16 %v962, %v961
        %v988 = vpack.c.b16 %v964, %v963
        %v989 = vpack.c.b16 %v966, %v965
        %v990 = vpack.c.b16 %v968, %v967
        %v991 = vpack.c.b16 %v970, %v969
        %v992 = vpack.c.b16 %v972, %v971
        %v993 = vpack.c.b16 %v974, %v973
        %v994 = vpack.c.b16 %v976, %v975
        %v995 = vpack.c.b16 %v978, %v977
        %v996 = vpack.c.b16 %v980, %v979
        %v998 = vsel %vm610, %v916, 0
        %v1001 = vsel %vm610, %v981, 0
        %v1004 = vsel %vm610, %v982, 0
        %v1007 = vsel %vm610, %v983, 0
        %v1010 = vsel %vm610, %v984, 0
        %v1013 = vsel %vm610, %v985, 0
        %v1016 = vsel %vm610, %v986, 0
        %v1019 = vsel %vm610, %v987, 0
        %v1022 = vsel %vm610, %v988, 0
        %v1025 = vsel %vm610, %v989, 0
        %v1028 = vsel %vm610, %v990, 0
        %v1031 = vsel %vm610, %v991, 0
        %v1034 = vsel %vm610, %v992, 0
        %v1037 = vsel %vm610, %v993, 0
        %v1040 = vsel %vm610, %v994, 0
        %v1043 = vsel %vm610, %v995, 0
        %v1046 = vsel %vm610, %v996, 0
        %1048 = vmatprep.subr.bf16.mxu0 0
        %1049 = vmatpush1.bf16.xpose.msra.mxu0 %v1001
        %1050 = vmatprep.subr.bf16.mxu0 0
        %1051 = vmatpush1.bf16.xpose.msra.mxu0 %v1004
        %1052 = vmatprep.subr.bf16.mxu0 0
        %1053 = vmatpush1.bf16.xpose.msra.mxu0 %v1007
        %1054 = vmatprep.subr.bf16.mxu0 0
        %1055 = vmatpush1.bf16.xpose.msra.mxu0 %v1010
        %1056 = vmatprep.subr.bf16.mxu0 0
        %1057 = vmatpush1.bf16.xpose.msra.mxu0 %v1013
        %1058 = vmatprep.subr.bf16.mxu0 0
        %1059 = vmatpush1.bf16.xpose.msra.mxu0 %v1016
        %1060 = vmatprep.subr.bf16.mxu0 0
        %1061 = vmatpush1.bf16.xpose.msra.mxu0 %v1019
        %1062 = vmatprep.subr.bf16.mxu0 0
        %1063 = vmatpush1.bf16.xpose.msra.mxu0 %v1022
        %1064 = vmatprep.subr.bf16.mxu0 0
        %1065 = vmatpush1.bf16.xpose.msra.mxu0 %v1025
        %1066 = vmatprep.subr.bf16.mxu0 0
        %1067 = vmatpush1.bf16.xpose.msra.mxu0 %v1028
        %1068 = vmatprep.subr.bf16.mxu0 0
        %1069 = vmatpush1.bf16.xpose.msra.mxu0 %v1031
        %1070 = vmatprep.subr.bf16.mxu0 0
        %1071 = vmatpush1.bf16.xpose.msra.mxu0 %v1034
        %1072 = vmatprep.subr.bf16.mxu0 0
        %1073 = vmatpush1.bf16.xpose.msra.mxu0 %v1037
        %1074 = vmatprep.subr.bf16.mxu0 0
        %1075 = vmatpush1.bf16.xpose.msra.mxu0 %v1040
        %1076 = vmatprep.subr.bf16.mxu0 0
        %1077 = vmatpush1.bf16.xpose.msra.mxu0 %v1043
        %1078 = vmatprep.subr.bf16.mxu0 0
        %1079 = vmatpush1.bf16.xpose.msra.mxu0 %v1046
        %1080 = vmatprep.mubr.bf16.mxu0 0
        %1081 = vmatmul.mubr.bf16.gmra.mrb[0].mxu0 %v998
        %v1082 = vpop.f32.mrb[0].mxu0
        %v1083 = vadd.f32 0.0, %v1082
        %v1084 = vpop.f32.mrb[0].mxu0
        %v1085 = vadd.f32 0.0, %v1084
        %v1086 = vpop.f32.mrb[0].mxu0
        %v1087 = vpop.f32.mrb[0].mxu0
        %1088 = vdwg.mxu0
        %s1089 = sand.u32 %s705, 255
        %s1091 = sor.u32 256, %s1089
        %1092 = vrot.lane.b32.xlu0 %v1083, %s1091
        %v1093 = vpop.permute.xlu0 %1092
        %s1094 = sand.u32 %s705, 255
        %s1096 = sor.u32 256, %s1094
        %1097 = vrot.lane.b32.xlu0 %v1085, %s1096
        %v1098 = vpop.permute.xlu0 %1097
        %v1099 = vsel %vm723, %v1093, %v1098
        %v1100 = vsel %vm723, %v1098, %v1093
        %v1101 = vsel %vm728, %v1100, %v1099
        %1103 = vrot.lane.b32.xlu0 %v440, 120
        %v1104 = vpop.permute.xlu0 %1103
        %v1106 = vsel %vm610, %v1104, 0
        %1108 = vmatprep.subr.bf16.mxu0 0
        %1109 = vmatpush1.bf16.xpose.msra.mxu0 %v1106
        %1110 = vmatprep.subr.bf16.mxu0 0
        %1111 = vmatpush1.bf16.xpose.msra.mxu0 0
        %1112 = vmatprep.subr.bf16.mxu0 0
        %1113 = vmatpush1.bf16.xpose.msra.mxu0 0
        %1114 = vmatprep.subr.bf16.mxu0 0
        %1115 = vmatpush1.bf16.xpose.msra.mxu0 0
        %1116 = vmatprep.subr.bf16.mxu0 0
        %1117 = vmatpush1.bf16.xpose.msra.mxu0 0
        %1118 = vmatprep.subr.bf16.mxu0 0
        %1119 = vmatpush1.bf16.xpose.msra.mxu0 0
        %1120 = vmatprep.subr.bf16.mxu0 0
        %1121 = vmatpush1.bf16.xpose.msra.mxu0 0
        %1122 = vmatprep.subr.bf16.mxu0 0
        %1123 = vmatpush1.bf16.xpose.msra.mxu0 0
        %1124 = vmatprep.subr.bf16.mxu0 0
        %1125 = vmatpush1.bf16.xpose.msra.mxu0 0
        %1126 = vmatprep.subr.bf16.mxu0 0
        %1127 = vmatpush1.bf16.xpose.msra.mxu0 0
        %1128 = vmatprep.subr.bf16.mxu0 0
        %1129 = vmatpush1.bf16.xpose.msra.mxu0 0
        %1130 = vmatprep.subr.bf16.mxu0 0
        %1131 = vmatpush1.bf16.xpose.msra.mxu0 0
        %1132 = vmatprep.subr.bf16.mxu0 0
        %1133 = vmatpush1.bf16.xpose.msra.mxu0 0
        %1134 = vmatprep.subr.bf16.mxu0 0
        %1135 = vmatpush1.bf16.xpose.msra.mxu0 0
        %1136 = vmatprep.subr.bf16.mxu0 0
        %1137 = vmatpush1.bf16.xpose.msra.mxu0 0
        %1138 = vmatprep.subr.bf16.mxu0 0
        %1139 = vmatpush1.bf16.xpose.msra.mxu0 0
        %1140 = vmatprep.mubr.bf16.mxu0 0
        %1141 = vmatmul.mubr.bf16.gmra.mrb[0].mxu0 %v998
        %v1142 = vpop.f32.mrb[0].mxu0
        %v1143 = vadd.f32 %v1101, %v1142
        %v1144 = vpop.f32.mrb[0].mxu0
        %v1145 = vpop.f32.mrb[0].mxu0
        %v1146 = vpop.f32.mrb[0].mxu0
        %1147 = vdwg.mxu0
        %v1148 = vsel %vm610, %v1143, -inf
        %1149 = vmax.xlane.f32.xlu0 %v1148
        %v1150 = vpop.xlane.xlu0 %1149
        %v1151 = vsub.f32 %v1143, %v1150
        %v1152 = vmul.f32 %v1151, 1.442695
        %v1153 = vpow.pop %v1152
        %v1154 = vsel %vm610, %v1153, 0.0
        %1155 = vadd.xlane.f32.xlu0 %v1154
        %v1156 = vpop.xlane.xlu0 %1155
        %v1157 = vpack.c.bf16 %v1153, %v1153
        %1159 = vrot.lane.b32.xlu0 %v497, 120
        %v1160 = vpop.permute.xlu0 %1159
        %v1162 = vsel %vm610, %v1157, 0
        %v1165 = vsel %vm786, %v1160, 0
        %1167 = vmatprep.subr.bf16.mxu0 0
        %1168 = vmatpush1.bf16.msra.mxu0 %v1165
        %1169 = vmatprep.subr.bf16.mxu0 0
        %1170 = vmatpush1.bf16.msra.mxu0 0
        %1171 = vmatprep.subr.bf16.mxu0 0
        %1172 = vmatpush1.bf16.msra.mxu0 0
        %1173 = vmatprep.subr.bf16.mxu0 0
        %1174 = vmatpush1.bf16.msra.mxu0 0
        %1175 = vmatprep.subr.bf16.mxu0 0
        %1176 = vmatpush1.bf16.msra.mxu0 0
        %1177 = vmatprep.subr.bf16.mxu0 0
        %1178 = vmatpush1.bf16.msra.mxu0 0
        %1179 = vmatprep.subr.bf16.mxu0 0
        %1180 = vmatpush1.bf16.msra.mxu0 0
        %1181 = vmatprep.subr.bf16.mxu0 0
        %1182 = vmatpush1.bf16.msra.mxu0 0
        %1183 = vmatprep.subr.bf16.mxu0 0
        %1184 = vmatpush1.bf16.msra.mxu0 0
        %1185 = vmatprep.subr.bf16.mxu0 0
        %1186 = vmatpush1.bf16.msra.mxu0 0
        %1187 = vmatprep.subr.bf16.mxu0 0
        %1188 = vmatpush1.bf16.msra.mxu0 0
        %1189 = vmatprep.subr.bf16.mxu0 0
        %1190 = vmatpush1.bf16.msra.mxu0 0
        %1191 = vmatprep.subr.bf16.mxu0 0
        %1192 = vmatpush1.bf16.msra.mxu0 0
        %1193 = vmatprep.subr.bf16.mxu0 0
        %1194 = vmatpush1.bf16.msra.mxu0 0
        %1195 = vmatprep.subr.bf16.mxu0 0
        %1196 = vmatpush1.bf16.msra.mxu0 0
        %1197 = vmatprep.subr.bf16.mxu0 0
        %1198 = vmatpush1.bf16.msra.mxu0 0
        %1199 = vmatprep.mubr.bf16.mxu0 0
        %1200 = vmatmul.mubr.bf16.gmra.mrb[0].mxu0 %v1162
        %v1201 = vpop.f32.mrb[0].mxu0
        %v1202 = vadd.f32 0.0, %v1201
        %v1203 = vpop.f32.mrb[0].mxu0
        %v1204 = vpop.f32.mrb[0].mxu0
        %v1205 = vpop.f32.mrb[0].mxu0
        %1206 = vdwg.mxu0
        %v1207 = vrcp.pop %v1156
        %v1208 = vmul.f32 %v1202, %v1207
        %v1209 = vpack.c.bf16 %v1208, %v1208
        %v1210 = vld [vmem:[%s5 + $0x4] sm:$0xf]
        %v1212 = vsel %vm610, %v1209, 0
        %v1215 = vsel %vm786, %v1210, 0
        %1217 = vmatprep.subr.bf16.mxu0 0
        %1218 = vmatpush1.bf16.msra.mxu0 %v1215
        %1219 = vmatprep.subr.bf16.mxu0 0
        %1220 = vmatpush1.bf16.msra.mxu0 0
        %1221 = vmatprep.subr.bf16.mxu0 0
        %1222 = vmatpush1.bf16.msra.mxu0 0
        %1223 = vmatprep.subr.bf16.mxu0 0
        %1224 = vmatpush1.bf16.msra.mxu0 0
        %1225 = vmatprep.subr.bf16.mxu0 0
        %1226 = vmatpush1.bf16.msra.mxu0 0
        %1227 = vmatprep.subr.bf16.mxu0 0
        %1228 = vmatpush1.bf16.msra.mxu0 0
        %1229 = vmatprep.subr.bf16.mxu0 0
        %1230 = vmatpush1.bf16.msra.mxu0 0
        %1231 = vmatprep.subr.bf16.mxu0 0
        %1232 = vmatpush1.bf16.msra.mxu0 0
        %1233 = vmatprep.subr.bf16.mxu0 0
        %1234 = vmatpush1.bf16.msra.mxu0 0
        %1235 = vmatprep.subr.bf16.mxu0 0
        %1236 = vmatpush1.bf16.msra.mxu0 0
        %1237 = vmatprep.subr.bf16.mxu0 0
        %1238 = vmatpush1.bf16.msra.mxu0 0
        %1239 = vmatprep.subr.bf16.mxu0 0
        %1240 = vmatpush1.bf16.msra.mxu0 0
        %1241 = vmatprep.subr.bf16.mxu0 0
        %1242 = vmatpush1.bf16.msra.mxu0 0
        %1243 = vmatprep.subr.bf16.mxu0 0
        %1244 = vmatpush1.bf16.msra.mxu0 0
        %1245 = vmatprep.subr.bf16.mxu0 0
        %1246 = vmatpush1.bf16.msra.mxu0 0
        %1247 = vmatprep.subr.bf16.mxu0 0
        %1248 = vmatpush1.bf16.msra.mxu0 0
        %1249 = vmatprep.mubr.bf16.mxu0 0
        %1250 = vmatmul.mubr.bf16.gmra.mrb[0].mxu0 %v1212
        %v1251 = vpop.f32.mrb[0].mxu0
        %v1252 = vadd.f32 0.0, %v1251
        %v1253 = vpop.f32.mrb[0].mxu0
        %v1254 = vpop.f32.mrb[0].mxu0
        %v1255 = vpop.f32.mrb[0].mxu0
        %1256 = vdwg.mxu0
        %v1257 = vld [vmem:[#allocation2] sm:$0xff]
        %v1258 = vadd.f32 %v1257, %v1252
        %1259 = vst.msk [vmem:[#allocation2] sm:$0xff] %vm336, %v1258
        %s1260 = scalar_lea.vmem %s6, 256
        %v1261 = vld [vmem:[%s1260] sm:$0xf]
        %v1262 = vld [vmem:[%s1260 + $0x4] sm:$0xf]
        %v1263 = vld [vmem:[%s1260 + $0x8] sm:$0xf]
        %v1264 = vld [vmem:[%s1260 + $0xc] sm:$0xf]
        %v1265 = vld [vmem:[%s1260 + $0x10] sm:$0xf]
        %v1266 = vld [vmem:[%s1260 + $0x14] sm:$0xf]
        %v1267 = vld [vmem:[%s1260 + $0x18] sm:$0xf]
        %v1268 = vld [vmem:[%s1260 + $0x1c] sm:$0xf]
        %v1269 = vld [vmem:[%s1260 + $0x20] sm:$0xf]
        %v1270 = vld [vmem:[%s1260 + $0x24] sm:$0xf]
        %v1271 = vld [vmem:[%s1260 + $0x28] sm:$0xf]
        %v1272 = vld [vmem:[%s1260 + $0x2c] sm:$0xf]
        %v1273 = vld [vmem:[%s1260 + $0x30] sm:$0xf]
        %v1274 = vld [vmem:[%s1260 + $0x34] sm:$0xf]
        %v1275 = vld [vmem:[%s1260 + $0x38] sm:$0xf]
        %v1276 = vld [vmem:[%s1260 + $0x3c] sm:$0xf]
        %v1277 = vld [vmem:[%s1260 + $0x40] sm:$0xf]
        %v1278 = vld [vmem:[%s1260 + $0x44] sm:$0xf]
        %v1279 = vld [vmem:[%s1260 + $0x48] sm:$0xf]
        %v1280 = vld [vmem:[%s1260 + $0x4c] sm:$0xf]
        %v1281 = vld [vmem:[%s1260 + $0x50] sm:$0xf]
        %v1282 = vld [vmem:[%s1260 + $0x54] sm:$0xf]
        %v1283 = vld [vmem:[%s1260 + $0x58] sm:$0xf]
        %v1284 = vld [vmem:[%s1260 + $0x5c] sm:$0xf]
        %v1285 = vld [vmem:[%s1260 + $0x60] sm:$0xf]
        %v1286 = vld [vmem:[%s1260 + $0x64] sm:$0xf]
        %v1287 = vld [vmem:[%s1260 + $0x68] sm:$0xf]
        %v1288 = vld [vmem:[%s1260 + $0x6c] sm:$0xf]
        %v1289 = vld [vmem:[%s1260 + $0x70] sm:$0xf]
        %v1290 = vld [vmem:[%s1260 + $0x74] sm:$0xf]
        %v1291 = vld [vmem:[%s1260 + $0x78] sm:$0xf]
        %v1292 = vld [vmem:[%s1260 + $0x7c] sm:$0xf]
        %1293 = vrot.lane.b32.xlu0 %v380, 112
        %v1294 = vpop.permute.xlu0 %1293
        %v1327 = vunpack.c.l.b16 %v1261
        %v1328 = vunpack.c.l.b16 %v1262
        %v1329 = vunpack.c.l.b16 %v1263
        %v1330 = vunpack.c.l.b16 %v1264
        %v1331 = vunpack.c.l.b16 %v1265
        %v1332 = vunpack.c.l.b16 %v1266
        %v1333 = vunpack.c.l.b16 %v1267
        %v1334 = vunpack.c.l.b16 %v1268
        %v1335 = vunpack.c.l.b16 %v1269
        %v1336 = vunpack.c.l.b16 %v1270
        %v1337 = vunpack.c.l.b16 %v1271
        %v1338 = vunpack.c.l.b16 %v1272
        %v1339 = vunpack.c.l.b16 %v1273
        %v1340 = vunpack.c.l.b16 %v1274
        %v1341 = vunpack.c.l.b16 %v1275
        %v1342 = vunpack.c.l.b16 %v1276
        %v1343 = vunpack.c.l.b16 %v1277
        %v1344 = vunpack.c.l.b16 %v1278
        %v1345 = vunpack.c.l.b16 %v1279
        %v1346 = vunpack.c.l.b16 %v1280
        %v1347 = vunpack.c.l.b16 %v1281
        %v1348 = vunpack.c.l.b16 %v1282
        %v1349 = vunpack.c.l.b16 %v1283
        %v1350 = vunpack.c.l.b16 %v1284
        %v1351 = vunpack.c.l.b16 %v1285
        %v1352 = vunpack.c.l.b16 %v1286
        %v1353 = vunpack.c.l.b16 %v1287
        %v1354 = vunpack.c.l.b16 %v1288
        %v1355 = vunpack.c.l.b16 %v1289
        %v1356 = vunpack.c.l.b16 %v1290
        %v1357 = vunpack.c.l.b16 %v1291
        %v1358 = vunpack.c.l.b16 %v1292
        %v1359 = vpack.c.b16 %v1328, %v1327
        %v1360 = vpack.c.b16 %v1330, %v1329
        %v1361 = vpack.c.b16 %v1332, %v1331
        %v1362 = vpack.c.b16 %v1334, %v1333
        %v1363 = vpack.c.b16 %v1336, %v1335
        %v1364 = vpack.c.b16 %v1338, %v1337
        %v1365 = vpack.c.b16 %v1340, %v1339
        %v1366 = vpack.c.b16 %v1342, %v1341
        %v1367 = vpack.c.b16 %v1344, %v1343
        %v1368 = vpack.c.b16 %v1346, %v1345
        %v1369 = vpack.c.b16 %v1348, %v1347
        %v1370 = vpack.c.b16 %v1350, %v1349
        %v1371 = vpack.c.b16 %v1352, %v1351
        %v1372 = vpack.c.b16 %v1354, %v1353
        %v1373 = vpack.c.b16 %v1356, %v1355
        %v1374 = vpack.c.b16 %v1358, %v1357
        %v1376 = vsel %vm610, %v1294, 0
        %v1379 = vsel %vm610, %v1359, 0
        %v1382 = vsel %vm610, %v1360, 0
        %v1385 = vsel %vm610, %v1361, 0
        %v1388 = vsel %vm610, %v1362, 0
        %v1391 = vsel %vm610, %v1363, 0
        %v1394 = vsel %vm610, %v1364, 0
        %v1397 = vsel %vm610, %v1365, 0
        %v1400 = vsel %vm610, %v1366, 0
        %v1403 = vsel %vm610, %v1367, 0
        %v1406 = vsel %vm610, %v1368, 0
        %v1409 = vsel %vm610, %v1369, 0
        %v1412 = vsel %vm610, %v1370, 0
        %v1415 = vsel %vm610, %v1371, 0
        %v1418 = vsel %vm610, %v1372, 0
        %v1421 = vsel %vm610, %v1373, 0
        %v1424 = vsel %vm610, %v1374, 0
        %1426 = vmatprep.subr.bf16.mxu0 0
        %1427 = vmatpush1.bf16.xpose.msra.mxu0 %v1379
        %1428 = vmatprep.subr.bf16.mxu0 0
        %1429 = vmatpush1.bf16.xpose.msra.mxu0 %v1382
        %1430 = vmatprep.subr.bf16.mxu0 0
        %1431 = vmatpush1.bf16.xpose.msra.mxu0 %v1385
        %1432 = vmatprep.subr.bf16.mxu0 0
        %1433 = vmatpush1.bf16.xpose.msra.mxu0 %v1388
        %1434 = vmatprep.subr.bf16.mxu0 0
        %1435 = vmatpush1.bf16.xpose.msra.mxu0 %v1391
        %1436 = vmatprep.subr.bf16.mxu0 0
        %1437 = vmatpush1.bf16.xpose.msra.mxu0 %v1394
        %1438 = vmatprep.subr.bf16.mxu0 0
        %1439 = vmatpush1.bf16.xpose.msra.mxu0 %v1397
        %1440 = vmatprep.subr.bf16.mxu0 0
        %1441 = vmatpush1.bf16.xpose.msra.mxu0 %v1400
        %1442 = vmatprep.subr.bf16.mxu0 0
        %1443 = vmatpush1.bf16.xpose.msra.mxu0 %v1403
        %1444 = vmatprep.subr.bf16.mxu0 0
        %1445 = vmatpush1.bf16.xpose.msra.mxu0 %v1406
        %1446 = vmatprep.subr.bf16.mxu0 0
        %1447 = vmatpush1.bf16.xpose.msra.mxu0 %v1409
        %1448 = vmatprep.subr.bf16.mxu0 0
        %1449 = vmatpush1.bf16.xpose.msra.mxu0 %v1412
        %1450 = vmatprep.subr.bf16.mxu0 0
        %1451 = vmatpush1.bf16.xpose.msra.mxu0 %v1415
        %1452 = vmatprep.subr.bf16.mxu0 0
        %1453 = vmatpush1.bf16.xpose.msra.mxu0 %v1418
        %1454 = vmatprep.subr.bf16.mxu0 0
        %1455 = vmatpush1.bf16.xpose.msra.mxu0 %v1421
        %1456 = vmatprep.subr.bf16.mxu0 0
        %1457 = vmatpush1.bf16.xpose.msra.mxu0 %v1424
        %1458 = vmatprep.mubr.bf16.mxu0 0
        %1459 = vmatmul.mubr.bf16.gmra.mrb[0].mxu0 %v1376
        %v1460 = vpop.f32.mrb[0].mxu0
        %v1461 = vadd.f32 0.0, %v1460
        %v1462 = vpop.f32.mrb[0].mxu0
        %v1463 = vadd.f32 0.0, %v1462
        %v1464 = vpop.f32.mrb[0].mxu0
        %v1465 = vpop.f32.mrb[0].mxu0
        %1466 = vdwg.mxu0
        %s1467 = sand.u32 %s705, 255
        %s1469 = sor.u32 256, %s1467
        %1470 = vrot.lane.b32.xlu0 %v1461, %s1469
        %v1471 = vpop.permute.xlu0 %1470
        %s1472 = sand.u32 %s705, 255
        %s1474 = sor.u32 256, %s1472
        %1475 = vrot.lane.b32.xlu0 %v1463, %s1474
        %v1476 = vpop.permute.xlu0 %1475
        %v1477 = vsel %vm723, %v1471, %v1476
        %v1478 = vsel %vm723, %v1476, %v1471
        %v1479 = vsel %vm728, %v1478, %v1477
        %1480 = vrot.lane.b32.xlu0 %v440, 112
        %v1481 = vpop.permute.xlu0 %1480
        %v1483 = vsel %vm610, %v1481, 0
        %1485 = vmatprep.subr.bf16.mxu0 0
        %1486 = vmatpush1.bf16.xpose.msra.mxu0 %v1483
        %1487 = vmatprep.subr.bf16.mxu0 0
        %1488 = vmatpush1.bf16.xpose.msra.mxu0 0
        %1489 = vmatprep.subr.bf16.mxu0 0
        %1490 = vmatpush1.bf16.xpose.msra.mxu0 0
        %1491 = vmatprep.subr.bf16.mxu0 0
        %1492 = vmatpush1.bf16.xpose.msra.mxu0 0
        %1493 = vmatprep.subr.bf16.mxu0 0
        %1494 = vmatpush1.bf16.xpose.msra.mxu0 0
        %1495 = vmatprep.subr.bf16.mxu0 0
        %1496 = vmatpush1.bf16.xpose.msra.mxu0 0
        %1497 = vmatprep.subr.bf16.mxu0 0
        %1498 = vmatpush1.bf16.xpose.msra.mxu0 0
        %1499 = vmatprep.subr.bf16.mxu0 0
        %1500 = vmatpush1.bf16.xpose.msra.mxu0 0
        %1501 = vmatprep.subr.bf16.mxu0 0
        %1502 = vmatpush1.bf16.xpose.msra.mxu0 0
        %1503 = vmatprep.subr.bf16.mxu0 0
        %1504 = vmatpush1.bf16.xpose.msra.mxu0 0
        %1505 = vmatprep.subr.bf16.mxu0 0
        %1506 = vmatpush1.bf16.xpose.msra.mxu0 0
        %1507 = vmatprep.subr.bf16.mxu0 0
        %1508 = vmatpush1.bf16.xpose.msra.mxu0 0
        %1509 = vmatprep.subr.bf16.mxu0 0
        %1510 = vmatpush1.bf16.xpose.msra.mxu0 0
        %1511 = vmatprep.subr.bf16.mxu0 0
        %1512 = vmatpush1.bf16.xpose.msra.mxu0 0
        %1513 = vmatprep.subr.bf16.mxu0 0
        %1514 = vmatpush1.bf16.xpose.msra.mxu0 0
        %1515 = vmatprep.subr.bf16.mxu0 0
        %1516 = vmatpush1.bf16.xpose.msra.mxu0 0
        %1517 = vmatprep.mubr.bf16.mxu0 0
        %1518 = vmatmul.mubr.bf16.gmra.mrb[0].mxu0 %v1376
        %v1519 = vpop.f32.mrb[0].mxu0
        %v1520 = vadd.f32 %v1479, %v1519
        %v1521 = vpop.f32.mrb[0].mxu0
        %v1522 = vpop.f32.mrb[0].mxu0
        %v1523 = vpop.f32.mrb[0].mxu0
        %1524 = vdwg.mxu0
        %v1525 = vsel %vm610, %v1520, -inf
        %1526 = vmax.xlane.f32.xlu0 %v1525
        %v1527 = vpop.xlane.xlu0 %1526
        %v1528 = vsub.f32 %v1520, %v1527
        %v1529 = vmul.f32 %v1528, 1.442695
        %v1530 = vpow.pop %v1529
        %v1531 = vsel %vm610, %v1530, 0.0
        %1532 = vadd.xlane.f32.xlu0 %v1531
        %v1533 = vpop.xlane.xlu0 %1532
        %v1534 = vpack.c.bf16 %v1530, %v1530
        %1535 = vrot.lane.b32.xlu0 %v497, 112
        %v1536 = vpop.permute.xlu0 %1535
        %v1538 = vsel %vm610, %v1534, 0
        %v1541 = vsel %vm786, %v1536, 0
        %1543 = vmatprep.subr.bf16.mxu0 0
        %1544 = vmatpush1.bf16.msra.mxu0 %v1541
        %1545 = vmatprep.subr.bf16.mxu0 0
        %1546 = vmatpush1.bf16.msra.mxu0 0
        %1547 = vmatprep.subr.bf16.mxu0 0
        %1548 = vmatpush1.bf16.msra.mxu0 0
        %1549 = vmatprep.subr.bf16.mxu0 0
        %1550 = vmatpush1.bf16.msra.mxu0 0
        %1551 = vmatprep.subr.bf16.mxu0 0
        %1552 = vmatpush1.bf16.msra.mxu0 0
        %1553 = vmatprep.subr.bf16.mxu0 0
        %1554 = vmatpush1.bf16.msra.mxu0 0
        %1555 = vmatprep.subr.bf16.mxu0 0
        %1556 = vmatpush1.bf16.msra.mxu0 0
        %1557 = vmatprep.subr.bf16.mxu0 0
        %1558 = vmatpush1.bf16.msra.mxu0 0
        %1559 = vmatprep.subr.bf16.mxu0 0
        %1560 = vmatpush1.bf16.msra.mxu0 0
        %1561 = vmatprep.subr.bf16.mxu0 0
        %1562 = vmatpush1.bf16.msra.mxu0 0
        %1563 = vmatprep.subr.bf16.mxu0 0
        %1564 = vmatpush1.bf16.msra.mxu0 0
        %1565 = vmatprep.subr.bf16.mxu0 0
        %1566 = vmatpush1.bf16.msra.mxu0 0
        %1567 = vmatprep.subr.bf16.mxu0 0
        %1568 = vmatpush1.bf16.msra.mxu0 0
        %1569 = vmatprep.subr.bf16.mxu0 0
        %1570 = vmatpush1.bf16.msra.mxu0 0
        %1571 = vmatprep.subr.bf16.mxu0 0
        %1572 = vmatpush1.bf16.msra.mxu0 0
        %1573 = vmatprep.subr.bf16.mxu0 0
        %1574 = vmatpush1.bf16.msra.mxu0 0
        %1575 = vmatprep.mubr.bf16.mxu0 0
        %1576 = vmatmul.mubr.bf16.gmra.mrb[0].mxu0 %v1538
        %v1577 = vpop.f32.mrb[0].mxu0
        %v1578 = vadd.f32 0.0, %v1577
        %v1579 = vpop.f32.mrb[0].mxu0
        %v1580 = vpop.f32.mrb[0].mxu0
        %v1581 = vpop.f32.mrb[0].mxu0
        %1582 = vdwg.mxu0
        %v1583 = vrcp.pop %v1533
        %v1584 = vmul.f32 %v1578, %v1583
        %v1585 = vpack.c.bf16 %v1584, %v1584
        %v1586 = vld [vmem:[%s5 + $0x8] sm:$0xf]
        %v1588 = vsel %vm610, %v1585, 0
        %v1591 = vsel %vm786, %v1586, 0
        %1593 = vmatprep.subr.bf16.mxu0 0
        %1594 = vmatpush1.bf16.msra.mxu0 %v1591
        %1595 = vmatprep.subr.bf16.mxu0 0
        %1596 = vmatpush1.bf16.msra.mxu0 0
        %1597 = vmatprep.subr.bf16.mxu0 0
        %1598 = vmatpush1.bf16.msra.mxu0 0
        %1599 = vmatprep.subr.bf16.mxu0 0
        %1600 = vmatpush1.bf16.msra.mxu0 0
        %1601 = vmatprep.subr.bf16.mxu0 0
        %1602 = vmatpush1.bf16.msra.mxu0 0
        %1603 = vmatprep.subr.bf16.mxu0 0
        %1604 = vmatpush1.bf16.msra.mxu0 0
        %1605 = vmatprep.subr.bf16.mxu0 0
        %1606 = vmatpush1.bf16.msra.mxu0 0
        %1607 = vmatprep.subr.bf16.mxu0 0
        %1608 = vmatpush1.bf16.msra.mxu0 0
        %1609 = vmatprep.subr.bf16.mxu0 0
        %1610 = vmatpush1.bf16.msra.mxu0 0
        %1611 = vmatprep.subr.bf16.mxu0 0
        %1612 = vmatpush1.bf16.msra.mxu0 0
        %1613 = vmatprep.subr.bf16.mxu0 0
        %1614 = vmatpush1.bf16.msra.mxu0 0
        %1615 = vmatprep.subr.bf16.mxu0 0
        %1616 = vmatpush1.bf16.msra.mxu0 0
        %1617 = vmatprep.subr.bf16.mxu0 0
        %1618 = vmatpush1.bf16.msra.mxu0 0
        %1619 = vmatprep.subr.bf16.mxu0 0
        %1620 = vmatpush1.bf16.msra.mxu0 0
        %1621 = vmatprep.subr.bf16.mxu0 0
        %1622 = vmatpush1.bf16.msra.mxu0 0
        %1623 = vmatprep.subr.bf16.mxu0 0
        %1624 = vmatpush1.bf16.msra.mxu0 0
        %1625 = vmatprep.mubr.bf16.mxu0 0
        %1626 = vmatmul.mubr.bf16.gmra.mrb[0].mxu0 %v1588
        %v1627 = vpop.f32.mrb[0].mxu0
        %v1628 = vadd.f32 0.0, %v1627
        %v1629 = vpop.f32.mrb[0].mxu0
        %v1630 = vpop.f32.mrb[0].mxu0
        %v1631 = vpop.f32.mrb[0].mxu0
        %1632 = vdwg.mxu0
        %v1633 = vld [vmem:[#allocation2] sm:$0xff]
        %v1634 = vadd.f32 %v1633, %v1628
        %1635 = vst.msk [vmem:[#allocation2] sm:$0xff] %vm336, %v1634
        %s1636 = scalar_lea.vmem %s6, 384
        %v1637 = vld [vmem:[%s1636] sm:$0xf]
        %v1638 = vld [vmem:[%s1636 + $0x4] sm:$0xf]
        %v1639 = vld [vmem:[%s1636 + $0x8] sm:$0xf]
        %v1640 = vld [vmem:[%s1636 + $0xc] sm:$0xf]
        %v1641 = vld [vmem:[%s1636 + $0x10] sm:$0xf]
        %v1642 = vld [vmem:[%s1636 + $0x14] sm:$0xf]
        %v1643 = vld [vmem:[%s1636 + $0x18] sm:$0xf]
        %v1644 = vld [vmem:[%s1636 + $0x1c] sm:$0xf]
        %v1645 = vld [vmem:[%s1636 + $0x20] sm:$0xf]
        %v1646 = vld [vmem:[%s1636 + $0x24] sm:$0xf]
        %v1647 = vld [vmem:[%s1636 + $0x28] sm:$0xf]
        %v1648 = vld [vmem:[%s1636 + $0x2c] sm:$0xf]
        %v1649 = vld [vmem:[%s1636 + $0x30] sm:$0xf]
        %v1650 = vld [vmem:[%s1636 + $0x34] sm:$0xf]
        %v1651 = vld [vmem:[%s1636 + $0x38] sm:$0xf]
        %v1652 = vld [vmem:[%s1636 + $0x3c] sm:$0xf]
        %v1653 = vld [vmem:[%s1636 + $0x40] sm:$0xf]
        %v1654 = vld [vmem:[%s1636 + $0x44] sm:$0xf]
        %v1655 = vld [vmem:[%s1636 + $0x48] sm:$0xf]
        %v1656 = vld [vmem:[%s1636 + $0x4c] sm:$0xf]
        %v1657 = vld [vmem:[%s1636 + $0x50] sm:$0xf]
        %v1658 = vld [vmem:[%s1636 + $0x54] sm:$0xf]
        %v1659 = vld [vmem:[%s1636 + $0x58] sm:$0xf]
        %v1660 = vld [vmem:[%s1636 + $0x5c] sm:$0xf]
        %v1661 = vld [vmem:[%s1636 + $0x60] sm:$0xf]
        %v1662 = vld [vmem:[%s1636 + $0x64] sm:$0xf]
        %v1663 = vld [vmem:[%s1636 + $0x68] sm:$0xf]
        %v1664 = vld [vmem:[%s1636 + $0x6c] sm:$0xf]
        %v1665 = vld [vmem:[%s1636 + $0x70] sm:$0xf]
        %v1666 = vld [vmem:[%s1636 + $0x74] sm:$0xf]
        %v1667 = vld [vmem:[%s1636 + $0x78] sm:$0xf]
        %v1668 = vld [vmem:[%s1636 + $0x7c] sm:$0xf]
        %1669 = vrot.lane.b32.xlu0 %v380, 104
        %v1670 = vpop.permute.xlu0 %1669
        %v1703 = vunpack.c.l.b16 %v1637
        %v1704 = vunpack.c.l.b16 %v1638
        %v1705 = vunpack.c.l.b16 %v1639
        %v1706 = vunpack.c.l.b16 %v1640
        %v1707 = vunpack.c.l.b16 %v1641
        %v1708 = vunpack.c.l.b16 %v1642
        %v1709 = vunpack.c.l.b16 %v1643
        %v1710 = vunpack.c.l.b16 %v1644
        %v1711 = vunpack.c.l.b16 %v1645
        %v1712 = vunpack.c.l.b16 %v1646
        %v1713 = vunpack.c.l.b16 %v1647
        %v1714 = vunpack.c.l.b16 %v1648
        %v1715 = vunpack.c.l.b16 %v1649
        %v1716 = vunpack.c.l.b16 %v1650
        %v1717 = vunpack.c.l.b16 %v1651
        %v1718 = vunpack.c.l.b16 %v1652
        %v1719 = vunpack.c.l.b16 %v1653
        %v1720 = vunpack.c.l.b16 %v1654
        %v1721 = vunpack.c.l.b16 %v1655
        %v1722 = vunpack.c.l.b16 %v1656
        %v1723 = vunpack.c.l.b16 %v1657
        %v1724 = vunpack.c.l.b16 %v1658
        %v1725 = vunpack.c.l.b16 %v1659
        %v1726 = vunpack.c.l.b16 %v1660
        %v1727 = vunpack.c.l.b16 %v1661
        %v1728 = vunpack.c.l.b16 %v1662
        %v1729 = vunpack.c.l.b16 %v1663
        %v1730 = vunpack.c.l.b16 %v1664
        %v1731 = vunpack.c.l.b16 %v1665
        %v1732 = vunpack.c.l.b16 %v1666
        %v1733 = vunpack.c.l.b16 %v1667
        %v1734 = vunpack.c.l.b16 %v1668
        %v1735 = vpack.c.b16 %v1704, %v1703
        %v1736 = vpack.c.b16 %v1706, %v1705
        %v1737 = vpack.c.b16 %v1708, %v1707
        %v1738 = vpack.c.b16 %v1710, %v1709
        %v1739 = vpack.c.b16 %v1712, %v1711
        %v1740 = vpack.c.b16 %v1714, %v1713
        %v1741 = vpack.c.b16 %v1716, %v1715
        %v1742 = vpack.c.b16 %v1718, %v1717
        %v1743 = vpack.c.b16 %v1720, %v1719
        %v1744 = vpack.c.b16 %v1722, %v1721
        %v1745 = vpack.c.b16 %v1724, %v1723
        %v1746 = vpack.c.b16 %v1726, %v1725
        %v1747 = vpack.c.b16 %v1728, %v1727
        %v1748 = vpack.c.b16 %v1730, %v1729
        %v1749 = vpack.c.b16 %v1732, %v1731
        %v1750 = vpack.c.b16 %v1734, %v1733
        %v1752 = vsel %vm610, %v1670, 0
        %v1755 = vsel %vm610, %v1735, 0
        %v1758 = vsel %vm610, %v1736, 0
        %v1761 = vsel %vm610, %v1737, 0
        %v1764 = vsel %vm610, %v1738, 0
        %v1767 = vsel %vm610, %v1739, 0
        %v1770 = vsel %vm610, %v1740, 0
        %v1773 = vsel %vm610, %v1741, 0
        %v1776 = vsel %vm610, %v1742, 0
        %v1779 = vsel %vm610, %v1743, 0
        %v1782 = vsel %vm610, %v1744, 0
        %v1785 = vsel %vm610, %v1745, 0
        %v1788 = vsel %vm610, %v1746, 0
        %v1791 = vsel %vm610, %v1747, 0
        %v1794 = vsel %vm610, %v1748, 0
        %v1797 = vsel %vm610, %v1749, 0
        %v1800 = vsel %vm610, %v1750, 0
        %1802 = vmatprep.subr.bf16.mxu0 0
        %1803 = vmatpush1.bf16.xpose.msra.mxu0 %v1755
        %1804 = vmatprep.subr.bf16.mxu0 0
        %1805 = vmatpush1.bf16.xpose.msra.mxu0 %v1758
        %1806 = vmatprep.subr.bf16.mxu0 0
        %1807 = vmatpush1.bf16.xpose.msra.mxu0 %v1761
        %1808 = vmatprep.subr.bf16.mxu0 0
        %1809 = vmatpush1.bf16.xpose.msra.mxu0 %v1764
        %1810 = vmatprep.subr.bf16.mxu0 0
        %1811 = vmatpush1.bf16.xpose.msra.mxu0 %v1767
        %1812 = vmatprep.subr.bf16.mxu0 0
        %1813 = vmatpush1.bf16.xpose.msra.mxu0 %v1770
        %1814 = vmatprep.subr.bf16.mxu0 0
        %1815 = vmatpush1.bf16.xpose.msra.mxu0 %v1773
        %1816 = vmatprep.subr.bf16.mxu0 0
        %1817 = vmatpush1.bf16.xpose.msra.mxu0 %v1776
        %1818 = vmatprep.subr.bf16.mxu0 0
        %1819 = vmatpush1.bf16.xpose.msra.mxu0 %v1779
        %1820 = vmatprep.subr.bf16.mxu0 0
        %1821 = vmatpush1.bf16.xpose.msra.mxu0 %v1782
        %1822 = vmatprep.subr.bf16.mxu0 0
        %1823 = vmatpush1.bf16.xpose.msra.mxu0 %v1785
        %1824 = vmatprep.subr.bf16.mxu0 0
        %1825 = vmatpush1.bf16.xpose.msra.mxu0 %v1788
        %1826 = vmatprep.subr.bf16.mxu0 0
        %1827 = vmatpush1.bf16.xpose.msra.mxu0 %v1791
        %1828 = vmatprep.subr.bf16.mxu0 0
        %1829 = vmatpush1.bf16.xpose.msra.mxu0 %v1794
        %1830 = vmatprep.subr.bf16.mxu0 0
        %1831 = vmatpush1.bf16.xpose.msra.mxu0 %v1797
        %1832 = vmatprep.subr.bf16.mxu0 0
        %1833 = vmatpush1.bf16.xpose.msra.mxu0 %v1800
        %1834 = vmatprep.mubr.bf16.mxu0 0
        %1835 = vmatmul.mubr.bf16.gmra.mrb[0].mxu0 %v1752
        %v1836 = vpop.f32.mrb[0].mxu0
        %v1837 = vadd.f32 0.0, %v1836
        %v1838 = vpop.f32.mrb[0].mxu0
        %v1839 = vadd.f32 0.0, %v1838
        %v1840 = vpop.f32.mrb[0].mxu0
        %v1841 = vpop.f32.mrb[0].mxu0
        %1842 = vdwg.mxu0
        %s1843 = sand.u32 %s705, 255
        %s1845 = sor.u32 256, %s1843
        %1846 = vrot.lane.b32.xlu0 %v1837, %s1845
        %v1847 = vpop.permute.xlu0 %1846
        %s1848 = sand.u32 %s705, 255
        %s1850 = sor.u32 256, %s1848
        %1851 = vrot.lane.b32.xlu0 %v1839, %s1850
        %v1852 = vpop.permute.xlu0 %1851
        %v1853 = vsel %vm723, %v1847, %v1852
        %v1854 = vsel %vm723, %v1852, %v1847
        %v1855 = vsel %vm728, %v1854, %v1853
        %1856 = vrot.lane.b32.xlu0 %v440, 104
        %v1857 = vpop.permute.xlu0 %1856
        %v1859 = vsel %vm610, %v1857, 0
        %1861 = vmatprep.subr.bf16.mxu0 0
        %1862 = vmatpush1.bf16.xpose.msra.mxu0 %v1859
        %1863 = vmatprep.subr.bf16.mxu0 0
        %1864 = vmatpush1.bf16.xpose.msra.mxu0 0
        %1865 = vmatprep.subr.bf16.mxu0 0
        %1866 = vmatpush1.bf16.xpose.msra.mxu0 0
        %1867 = vmatprep.subr.bf16.mxu0 0
        %1868 = vmatpush1.bf16.xpose.msra.mxu0 0
        %1869 = vmatprep.subr.bf16.mxu0 0
        %1870 = vmatpush1.bf16.xpose.msra.mxu0 0
        %1871 = vmatprep.subr.bf16.mxu0 0
        %1872 = vmatpush1.bf16.xpose.msra.mxu0 0
        %1873 = vmatprep.subr.bf16.mxu0 0
        %1874 = vmatpush1.bf16.xpose.msra.mxu0 0
        %1875 = vmatprep.subr.bf16.mxu0 0
        %1876 = vmatpush1.bf16.xpose.msra.mxu0 0
        %1877 = vmatprep.subr.bf16.mxu0 0
        %1878 = vmatpush1.bf16.xpose.msra.mxu0 0
        %1879 = vmatprep.subr.bf16.mxu0 0
        %1880 = vmatpush1.bf16.xpose.msra.mxu0 0
        %1881 = vmatprep.subr.bf16.mxu0 0
        %1882 = vmatpush1.bf16.xpose.msra.mxu0 0
        %1883 = vmatprep.subr.bf16.mxu0 0
        %1884 = vmatpush1.bf16.xpose.msra.mxu0 0
        %1885 = vmatprep.subr.bf16.mxu0 0
        %1886 = vmatpush1.bf16.xpose.msra.mxu0 0
        %1887 = vmatprep.subr.bf16.mxu0 0
        %1888 = vmatpush1.bf16.xpose.msra.mxu0 0
        %1889 = vmatprep.subr.bf16.mxu0 0
        %1890 = vmatpush1.bf16.xpose.msra.mxu0 0
        %1891 = vmatprep.subr.bf16.mxu0 0
        %1892 = vmatpush1.bf16.xpose.msra.mxu0 0
        %1893 = vmatprep.mubr.bf16.mxu0 0
        %1894 = vmatmul.mubr.bf16.gmra.mrb[0].mxu0 %v1752
        %v1895 = vpop.f32.mrb[0].mxu0
        %v1896 = vadd.f32 %v1855, %v1895
        %v1897 = vpop.f32.mrb[0].mxu0
        %v1898 = vpop.f32.mrb[0].mxu0
        %v1899 = vpop.f32.mrb[0].mxu0
        %1900 = vdwg.mxu0
        %v1901 = vsel %vm610, %v1896, -inf
        %1902 = vmax.xlane.f32.xlu0 %v1901
        %v1903 = vpop.xlane.xlu0 %1902
        %v1904 = vsub.f32 %v1896, %v1903
        %v1905 = vmul.f32 %v1904, 1.442695
        %v1906 = vpow.pop %v1905
        %v1907 = vsel %vm610, %v1906, 0.0
        %1908 = vadd.xlane.f32.xlu0 %v1907
        %v1909 = vpop.xlane.xlu0 %1908
        %v1910 = vpack.c.bf16 %v1906, %v1906
        %1911 = vrot.lane.b32.xlu0 %v497, 104
        %v1912 = vpop.permute.xlu0 %1911
        %v1914 = vsel %vm610, %v1910, 0
        %v1917 = vsel %vm786, %v1912, 0
        %1919 = vmatprep.subr.bf16.mxu0 0
        %1920 = vmatpush1.bf16.msra.mxu0 %v1917
        %1921 = vmatprep.subr.bf16.mxu0 0
        %1922 = vmatpush1.bf16.msra.mxu0 0
        %1923 = vmatprep.subr.bf16.mxu0 0
        %1924 = vmatpush1.bf16.msra.mxu0 0
        %1925 = vmatprep.subr.bf16.mxu0 0
        %1926 = vmatpush1.bf16.msra.mxu0 0
        %1927 = vmatprep.subr.bf16.mxu0 0
        %1928 = vmatpush1.bf16.msra.mxu0 0
        %1929 = vmatprep.subr.bf16.mxu0 0
        %1930 = vmatpush1.bf16.msra.mxu0 0
        %1931 = vmatprep.subr.bf16.mxu0 0
        %1932 = vmatpush1.bf16.msra.mxu0 0
        %1933 = vmatprep.subr.bf16.mxu0 0
        %1934 = vmatpush1.bf16.msra.mxu0 0
        %1935 = vmatprep.subr.bf16.mxu0 0
        %1936 = vmatpush1.bf16.msra.mxu0 0
        %1937 = vmatprep.subr.bf16.mxu0 0
        %1938 = vmatpush1.bf16.msra.mxu0 0
        %1939 = vmatprep.subr.bf16.mxu0 0
        %1940 = vmatpush1.bf16.msra.mxu0 0
        %1941 = vmatprep.subr.bf16.mxu0 0
        %1942 = vmatpush1.bf16.msra.mxu0 0
        %1943 = vmatprep.subr.bf16.mxu0 0
        %1944 = vmatpush1.bf16.msra.mxu0 0
        %1945 = vmatprep.subr.bf16.mxu0 0
        %1946 = vmatpush1.bf16.msra.mxu0 0
        %1947 = vmatprep.subr.bf16.mxu0 0
        %1948 = vmatpush1.bf16.msra.mxu0 0
        %1949 = vmatprep.subr.bf16.mxu0 0
        %1950 = vmatpush1.bf16.msra.mxu0 0
        %1951 = vmatprep.mubr.bf16.mxu0 0
        %1952 = vmatmul.mubr.bf16.gmra.mrb[0].mxu0 %v1914
        %v1953 = vpop.f32.mrb[0].mxu0
        %v1954 = vadd.f32 0.0, %v1953
        %v1955 = vpop.f32.mrb[0].mxu0
        %v1956 = vpop.f32.mrb[0].mxu0
        %v1957 = vpop.f32.mrb[0].mxu0
        %1958 = vdwg.mxu0
        %v1959 = vrcp.pop %v1909
        %v1960 = vmul.f32 %v1954, %v1959
        %v1961 = vpack.c.bf16 %v1960, %v1960
        %v1962 = vld [vmem:[%s5 + $0xc] sm:$0xf]
        %v1964 = vsel %vm610, %v1961, 0
        %v1967 = vsel %vm786, %v1962, 0
        %1969 = vmatprep.subr.bf16.mxu0 0
        %1970 = vmatpush1.bf16.msra.mxu0 %v1967
        %1971 = vmatprep.subr.bf16.mxu0 0
        %1972 = vmatpush1.bf16.msra.mxu0 0
        %1973 = vmatprep.subr.bf16.mxu0 0
        %1974 = vmatpush1.bf16.msra.mxu0 0
        %1975 = vmatprep.subr.bf16.mxu0 0
        %1976 = vmatpush1.bf16.msra.mxu0 0
        %1977 = vmatprep.subr.bf16.mxu0 0
        %1978 = vmatpush1.bf16.msra.mxu0 0
        %1979 = vmatprep.subr.bf16.mxu0 0
        %1980 = vmatpush1.bf16.msra.mxu0 0
        %1981 = vmatprep.subr.bf16.mxu0 0
        %1982 = vmatpush1.bf16.msra.mxu0 0
        %1983 = vmatprep.subr.bf16.mxu0 0
        %1984 = vmatpush1.bf16.msra.mxu0 0
        %1985 = vmatprep.subr.bf16.mxu0 0
        %1986 = vmatpush1.bf16.msra.mxu0 0
        %1987 = vmatprep.subr.bf16.mxu0 0
        %1988 = vmatpush1.bf16.msra.mxu0 0
        %1989 = vmatprep.subr.bf16.mxu0 0
        %1990 = vmatpush1.bf16.msra.mxu0 0
        %1991 = vmatprep.subr.bf16.mxu0 0
        %1992 = vmatpush1.bf16.msra.mxu0 0
        %1993 = vmatprep.subr.bf16.mxu0 0
        %1994 = vmatpush1.bf16.msra.mxu0 0
        %1995 = vmatprep.subr.bf16.mxu0 0
        %1996 = vmatpush1.bf16.msra.mxu0 0
        %1997 = vmatprep.subr.bf16.mxu0 0
        %1998 = vmatpush1.bf16.msra.mxu0 0
        %1999 = vmatprep.subr.bf16.mxu0 0
        %2000 = vmatpush1.bf16.msra.mxu0 0
        %2001 = vmatprep.mubr.bf16.mxu0 0
        %2002 = vmatmul.mubr.bf16.gmra.mrb[0].mxu0 %v1964
        %v2003 = vpop.f32.mrb[0].mxu0
        %v2004 = vadd.f32 0.0, %v2003
        %v2005 = vpop.f32.mrb[0].mxu0
        %v2006 = vpop.f32.mrb[0].mxu0
        %v2007 = vpop.f32.mrb[0].mxu0
        %2008 = vdwg.mxu0
        %v2009 = vld [vmem:[#allocation2] sm:$0xff]
        %v2010 = vadd.f32 %v2009, %v2004
        %2011 = vst.msk [vmem:[#allocation2] sm:$0xff] %vm336, %v2010
        %v2012 = vld [vmem:[#allocation2] sm:$0xff]
        %2013 = vst.msk [vmem:[%s304] sm:$0xff] %vm336, %v2012
        %s2014 = sand.u32 %s202, 1
        %s2015 = scalar_lea.sflag [#allocation4], %s2014
        %s2016 = sand.u32 %s202, 1
        %s2017 = smul.addr %s2016, 8
        %s2018 = scalar_lea.vmem [#allocation3], %s2017
        // Predicated region
        $region49: #{tpu_custom_call.1} parent=47 // pred_check
          %p2019 = pneg %p212
        $region50: #{tpu_custom_call.1} parent=47 // pred_check_branch
          %2021 = sbr.rel (%p2019) target = $region52
        $region51: #{tpu_custom_call.1} parent=47 // pred_region
          %s2023 = ssub.s32 128, 128
          %2024 = vsyncadd %s2015, %s2023
          %s2025 = sadd.s32 %s26, %s25
          %s2026 = smul.addr %s2025, 128
          %s2027 = scalar_lea.hbm %s7, %s2026
          %s2029 = sshll.u32 %s2018, 4
          %s2030 = int_to_ptr.vmem [resolvable:$true] %s2029
          %2032 = dma.vmem_to_hbm [thread:$0]  %s2030, 128, %s2027, %s2015
        $region52: #{tpu_custom_call.1} parent=47 // pred_fallthru
          _
      $region48: #{tpu_custom_call.1} parent=5 // pred_fallthru
        _
      %p2033 = scmp.le.s32.totalorder 2, %s16
      // Predicated region
      $region53: #{tpu_custom_call.1} parent=5 // pred_check
        %p2034 = pneg %p2033
      $region54: #{tpu_custom_call.1} parent=5 // pred_check_branch
        %2036 = sbr.rel (%p2034) target = $region56
      $region55: #{tpu_custom_call.1} parent=5 // pred_region
        %s2037 = ssub.s32 %s16, 2
        // Predicated region
        $region57: #{tpu_custom_call.1} parent=55 // pred_check
          %p2038 = pneg %p218
        $region58: #{tpu_custom_call.1} parent=55 // pred_check_branch
          %2040 = sbr.rel (%p2038) target = $region60
        $region59: #{tpu_custom_call.1} parent=55 // pred_region
          %s2041 = sand.u32 %s203, 1
          %s2042 = scalar_lea.sflag [#allocation4], %s2041
          %s2043 = sand.u32 %s203, 1
          %s2044 = smul.addr %s2043, 8
          %s2045 = scalar_lea.vmem [#allocation3], %s2044
          %2046 = dma.done %s2042, 128
        $region60: #{tpu_custom_call.1} parent=55 // pred_fallthru
          _
      $region56: #{tpu_custom_call.1} parent=5 // pred_fallthru
        _
    $region6: #{tpu_custom_call.1} parent=1 // loop_footer
      %s20 = sadd.s32 1, %s16
    $region7: #{tpu_custom_call.1} parent=1 // loop_footer_branch
      %15 = sbr.rel target = $region3
    $region8: #{tpu_custom_call.1} parent=1 // loop_exit
      _
    %2047 = vsyncpa [#allocation4], 1
    %s2048 = scalar_lea.sflag [#allocation4], 1
    %2049 = vsyncpa %s2048, 1

// kernel: tpu_custom_call.1
$region0: #{tpu_custom_call.1}
  #allocation0 [shape = 'u32[]', space=smem, size = 0x4, offset = 0x4, fixed_abs, tag = 'smem constant byte address 0x4 - core index']
  #allocation1 [shape = 'u32[144,128]{1,0:T(1,128)}', space=vmem, size = 0x12000, scoped, tag = 'internal scratch']
  #allocation2 [shape = 'f32[8,32]{1,0:T(8,128)}', space=vmem, size = 0x1000, scoped, tag = 'scratch operand']
  %s0 = inlined_call_operand.vmem [shape: bf16[2,8,32], index: 0, kind: input, shape index: {}]
  %s1 = inlined_call_operand.vmem [shape: bf16[2,8,32], index: 1, kind: input, shape index: {}]
  %s2 = inlined_call_operand.vmem [shape: bf16[32,32], index: 2, kind: input, shape index: {}]
  %s3 = inlined_call_operand.vmem [shape: bf16[32,32], index: 3, kind: input, shape index: {}]
  %s4 = inlined_call_operand.vmem [shape: bf16[32,32], index: 4, kind: input, shape index: {}]
  %s5 = inlined_call_operand.vmem [shape: bf16[32,32], index: 5, kind: input, shape index: {}]
  %s6 = inlined_call_operand.vmem [shape: bf16[4,256,8], index: 6, kind: input, shape index: {}]
  %s7 = inlined_call_operand.hbm [shape: f32[2,8,32], index: 7, kind: output, shape index: {}]
  %s8 = sld [smem:[#allocation0]]
  $region61: #{tpu_custom_call.1} parent=0
    _
  %s10 = ssub.s32 1, %s8
  %s11 = scalar_select 0, %s10, %s8
  $region1: #{tpu_custom_call.1} parent=0
    #allocation3 [shape = 'u8[8192]{0}', space=vmem, size = 0x2000, scoped, tag = 'output window, operand 0']
    #allocation4 [shape = 's32[2]{0}', space=sflag, size = 0x8, scoped, tag = 'scoped memory for tpu_custom_call.1']
    %12 = vsyncpa [#allocation4], 0
    %s13 = scalar_lea.sflag [#allocation4], 1
    %14 = vsyncpa %s13, 0
    loop: start=0, step=1, limit=4
    $region2: #{tpu_custom_call.1} parent=1 // loop_pre_header
      _
    $region3: #{tpu_custom_call.1} parent=1 // loop_header
      %s16 = sphi 0, %s20
      %p17 = scmp.ge.s32.totalorder %s16, 4
      %s23 = sphi 0, %s35
      %s24 = sphi 0, %s31
      %s25 = sphi 0, %s23
      %s26 = sphi 0, %s24
      %s27 = sphi 0, %s25
      %s28 = sphi 0, %s26
      %s40 = sphi 0, %s42
      %s43 = sphi 0, %s40
      %s44 = sphi 0, %s43
      %s60 = sphi 0, %s44
      %s66 = sphi 0, %s68
      %s69 = sphi 0, %s66
      %s70 = sphi 0, %s69
      %s86 = sphi 0, %s70
      %s90 = sphi 0, %s90
      %s92 = sphi 0, %s90
      %s93 = sphi 0, %s92
      %s107 = sphi 0, %s93
      %s111 = sphi 0, %s111
      %s113 = sphi 0, %s111
      %s114 = sphi 0, %s113
      %s128 = sphi 0, %s114
      %s132 = sphi 0, %s132
      %s134 = sphi 0, %s132
      %s135 = sphi 0, %s134
      %s149 = sphi 0, %s135
      %s153 = sphi 0, %s153
      %s155 = sphi 0, %s153
      %s156 = sphi 0, %s155
      %s170 = sphi 0, %s156
      %s174 = sphi 0, %s174
      %s176 = sphi 0, %s174
      %s177 = sphi 0, %s176
      %s191 = sphi 0, %s177
      %s199 = sphi 0, %s201
      %s202 = sphi 0, %s199
      %s203 = sphi 0, %s202
      %s219 = sphi 0, %s203
    $region4: #{tpu_custom_call.1} parent=1 // loop_header_branch
      %19 = sbr.rel (%p17) target = $region8
    $region5: #{tpu_custom_call.1} parent=1 // loop_body
      %s21 = ssub.s32 %s16, 1
      %s22 = ssub.s32 %s16, 2
      %s29 = sadd.s32 1, %s24
      %p30 = scmp.ge.s32.totalorder %s29, 1
      %s31 = scalar_select %p30, 0, %s29
      %s32 = sadd.s32 1, %s23
      %s33 = scalar_select %p30, %s32, %s23
      %p34 = scmp.ge.s32.totalorder %s33, 2
      %s35 = scalar_select %p34, 0, %s33
      %s36 = ssub.s32 %s23, %s35
      %s37 = ssub.s32 %s24, %s31
      %s38 = sor.u32 %s36, %s37
      %p39 = scmp.eq.s32.totalorder %s38, 0
      %s41 = sadd.s32 %s40, 1
      %s42 = scalar_select %p39, %s40, %s41
      %p45 = pneg %p39
      %p46 = scmp.eq.s32.totalorder %s16, 1
      %p47 = por %p45, %p46
      %p48 = scmp.ne.s32.totalorder %s40, %s43
      %p49 = scmp.eq.s32.totalorder %s16, 0
      %p50 = por %p48, %p49
      %p51 = scmp.ne.s32.totalorder %s40, %s43
      %p52 = scmp.eq.s32.totalorder %s21, 1
      %p53 = por %p51, %p52
      %p54 = scmp.ne.s32.totalorder %s43, %s44
      %p55 = scmp.eq.s32.totalorder %s21, 0
      %p56 = por %p54, %p55
      %p57 = scmp.ne.s32.totalorder %s43, %s44
      %p58 = scmp.eq.s32.totalorder %s22, 1
      %p59 = por %p57, %p58
      %p61 = scmp.ne.s32.totalorder %s44, %s60
      %p62 = scmp.eq.s32.totalorder %s22, 0
      %p63 = por %p61, %p62
      %s64 = ssub.s32 %s23, %s35
      %p65 = scmp.eq.s32.totalorder %s64, 0
      %s67 = sadd.s32 %s66, 1
      %s68 = scalar_select %p65, %s66, %s67
      %p71 = pneg %p65
      %p72 = scmp.eq.s32.totalorder %s16, 1
      %p73 = por %p71, %p72
      %p74 = scmp.ne.s32.totalorder %s66, %s69
      %p75 = scmp.eq.s32.totalorder %s16, 0
      %p76 = por %p74, %p75
      %p77 = scmp.ne.s32.totalorder %s66, %s69
      %p78 = scmp.eq.s32.totalorder %s21, 1
      %p79 = por %p77, %p78
      %p80 = scmp.ne.s32.totalorder %s69, %s70
      %p81 = scmp.eq.s32.totalorder %s21, 0
      %p82 = por %p80, %p81
      %p83 = scmp.ne.s32.totalorder %s69, %s70
      %p84 = scmp.eq.s32.totalorder %s22, 1
      %p85 = por %p83, %p84
      %p87 = scmp.ne.s32.totalorder %s70, %s86
      %p88 = scmp.eq.s32.totalorder %s22, 0
      %p89 = por %p87, %p88
      %s91 = sadd.s32 %s90, 1
      %p94 = scmp.eq.s32.totalorder %s16, 1
      %p95 = scmp.ne.s32.totalorder %s90, %s92
      %p96 = scmp.eq.s32.totalorder %s16, 0
      %p97 = por %p95, %p96
      %p98 = scmp.ne.s32.totalorder %s90, %s92
      %p99 = scmp.eq.s32.totalorder %s21, 1
      %p100 = por %p98, %p99
      %p101 = scmp.ne.s32.totalorder %s92, %s93
      %p102 = scmp.eq.s32.totalorder %s21, 0
      %p103 = por %p101, %p102
      %p104 = scmp.ne.s32.totalorder %s92, %s93
      %p105 = scmp.eq.s32.totalorder %s22, 1
      %p106 = por %p104, %p105
      %p108 = scmp.ne.s32.totalorder %s93, %s107
      %p109 = scmp.eq.s32.totalorder %s22, 0
      %p110 = por %p108, %p109
      %s112 = sadd.s32 %s111, 1
      %p115 = scmp.eq.s32.totalorder %s16, 1
      %p116 = scmp.ne.s32.totalorder %s111, %s113
      %p117 = scmp.eq.s32.totalorder %s16, 0
      %p118 = por %p116, %p117
      %p119 = scmp.ne.s32.totalorder %s111, %s113
      %p120 = scmp.eq.s32.totalorder %s21, 1
      %p121 = por %p119, %p120
      %p122 = scmp.ne.s32.totalorder %s113, %s114
      %p123 = scmp.eq.s32.totalorder %s21, 0
      %p124 = por %p122, %p123
      %p125 = scmp.ne.s32.totalorder %s113, %s114
      %p126 = scmp.eq.s32.totalorder %s22, 1
      %p127 = por %p125, %p126
      %p129 = scmp.ne.s32.totalorder %s114, %s128
      %p130 = scmp.eq.s32.totalorder %s22, 0
      %p131 = por %p129, %p130
      %s133 = sadd.s32 %s132, 1
      %p136 = scmp.eq.s32.totalorder %s16, 1
      %p137 = scmp.ne.s32.totalorder %s132, %s134
      %p138 = scmp.eq.s32.totalorder %s16, 0
      %p139 = por %p137, %p138
      %p140 = scmp.ne.s32.totalorder %s132, %s134
      %p141 = scmp.eq.s32.totalorder %s21, 1
      %p142 = por %p140, %p141
      %p143 = scmp.ne.s32.totalorder %s134, %s135
      %p144 = scmp.eq.s32.totalorder %s21, 0
      %p145 = por %p143, %p144
      %p146 = scmp.ne.s32.totalorder %s134, %s135
      %p147 = scmp.eq.s32.totalorder %s22, 1
      %p148 = por %p146, %p147
      %p150 = scmp.ne.s32.totalorder %s135, %s149
      %p151 = scmp.eq.s32.totalorder %s22, 0
      %p152 = por %p150, %p151
      %s154 = sadd.s32 %s153, 1
      %p157 = scmp.eq.s32.totalorder %s16, 1
      %p158 = scmp.ne.s32.totalorder %s153, %s155
      %p159 = scmp.eq.s32.totalorder %s16, 0
      %p160 = por %p158, %p159
      %p161 = scmp.ne.s32.totalorder %s153, %s155
      %p162 = scmp.eq.s32.totalorder %s21, 1
      %p163 = por %p161, %p162
      %p164 = scmp.ne.s32.totalorder %s155, %s156
      %p165 = scmp.eq.s32.totalorder %s21, 0
      %p166 = por %p164, %p165
      %p167 = scmp.ne.s32.totalorder %s155, %s156
      %p168 = scmp.eq.s32.totalorder %s22, 1
      %p169 = por %p167, %p168
      %p171 = scmp.ne.s32.totalorder %s156, %s170
      %p172 = scmp.eq.s32.totalorder %s22, 0
      %p173 = por %p171, %p172
      %s175 = sadd.s32 %s174, 1
      %p178 = scmp.eq.s32.totalorder %s16, 1
      %p179 = scmp.ne.s32.totalorder %s174, %s176
      %p180 = scmp.eq.s32.totalorder %s16, 0
      %p181 = por %p179, %p180
      %p182 = scmp.ne.s32.totalorder %s174, %s176
      %p183 = scmp.eq.s32.totalorder %s21, 1
      %p184 = por %p182, %p183
      %p185 = scmp.ne.s32.totalorder %s176, %s177
      %p186 = scmp.eq.s32.totalorder %s21, 0
      %p187 = por %p185, %p186
      %p188 = scmp.ne.s32.totalorder %s176, %s177
      %p189 = scmp.eq.s32.totalorder %s22, 1
      %p190 = por %p188, %p189
      %p192 = scmp.ne.s32.totalorder %s177, %s191
      %p193 = scmp.eq.s32.totalorder %s22, 0
      %p194 = por %p192, %p193
      %s195 = ssub.s32 %s23, %s35
      %s196 = ssub.s32 %s24, %s31
      %s197 = sor.u32 %s195, %s196
      %p198 = scmp.eq.s32.totalorder %s197, 0
      %s200 = sadd.s32 %s199, 1
      %s201 = scalar_select %p198, %s199, %s200
      %p204 = pneg %p198
      %p205 = scmp.eq.s32.totalorder %s16, 1
      %p206 = por %p204, %p205
      %p207 = scmp.ne.s32.totalorder %s199, %s202
      %p208 = scmp.eq.s32.totalorder %s16, 0
      %p209 = por %p207, %p208
      %p210 = scmp.ne.s32.totalorder %s199, %s202
      %p211 = scmp.eq.s32.totalorder %s21, 1
      %p212 = por %p210, %p211
      %p213 = scmp.ne.s32.totalorder %s202, %s203
      %p214 = scmp.eq.s32.totalorder %s21, 0
      %p215 = por %p213, %p214
      %p216 = scmp.ne.s32.totalorder %s202, %s203
      %p217 = scmp.eq.s32.totalorder %s22, 1
      %p218 = por %p216, %p217
      %p220 = scmp.ne.s32.totalorder %s203, %s219
      %p221 = scmp.eq.s32.totalorder %s22, 0
      %p222 = por %p220, %p221
      %p223 = scmp.le.s32.totalorder 1, %s16
      %p224 = scmp.lt.s32.totalorder %s16, 3
      %p225 = pnand %p223, %p224
      %p226 = pneg %p225
      // Predicated region
      $region9: #{tpu_custom_call.1} parent=5 // pred_check
        _
      $region10: #{tpu_custom_call.1} parent=5 // pred_check_branch
        %228 = sbr.rel (%p225) target = $region12
      $region11: #{tpu_custom_call.1} parent=5 // pred_region
        %s229 = ssub.s32 %s16, 1
        // Predicated region
        $region13: #{tpu_custom_call.1} parent=11 // pred_check
          %p230 = pneg %p103
        $region14: #{tpu_custom_call.1} parent=11 // pred_check_branch
          %232 = sbr.rel (%p230) target = $region16
        $region15: #{tpu_custom_call.1} parent=11 // pred_region
          _
        $region16: #{tpu_custom_call.1} parent=11 // pred_fallthru
          _
        // Predicated region
        $region17: #{tpu_custom_call.1} parent=11 // pred_check
          %p233 = pneg %p124
        $region18: #{tpu_custom_call.1} parent=11 // pred_check_branch
          %235 = sbr.rel (%p233) target = $region20
        $region19: #{tpu_custom_call.1} parent=11 // pred_region
          _
        $region20: #{tpu_custom_call.1} parent=11 // pred_fallthru
          _
        // Predicated region
        $region21: #{tpu_custom_call.1} parent=11 // pred_check
          %p236 = pneg %p145
        $region22: #{tpu_custom_call.1} parent=11 // pred_check_branch
          %238 = sbr.rel (%p236) target = $region24
        $region23: #{tpu_custom_call.1} parent=11 // pred_region
          _
        $region24: #{tpu_custom_call.1} parent=11 // pred_fallthru
          _
        // Predicated region
        $region25: #{tpu_custom_call.1} parent=11 // pred_check
          %p239 = pneg %p166
        $region26: #{tpu_custom_call.1} parent=11 // pred_check_branch
          %241 = sbr.rel (%p239) target = $region28
        $region27: #{tpu_custom_call.1} parent=11 // pred_region
          _
        $region28: #{tpu_custom_call.1} parent=11 // pred_fallthru
          _
        // Predicated region
        $region29: #{tpu_custom_call.1} parent=11 // pred_check
          %p242 = pneg %p187
        $region30: #{tpu_custom_call.1} parent=11 // pred_check_branch
          %244 = sbr.rel (%p242) target = $region32
        $region31: #{tpu_custom_call.1} parent=11 // pred_region
          _
        $region32: #{tpu_custom_call.1} parent=11 // pred_fallthru
          _
      $region12: #{tpu_custom_call.1} parent=5 // pred_fallthru
        _
      %p245 = scmp.lt.s32.totalorder %s16, 2
      // Predicated region
      $region33: #{tpu_custom_call.1} parent=5 // pred_check
        %p246 = pneg %p245
      $region34: #{tpu_custom_call.1} parent=5 // pred_check_branch
        %248 = sbr.rel (%p246) target = $region36
      $region35: #{tpu_custom_call.1} parent=5 // pred_region
        // Predicated region
        $region37: #{tpu_custom_call.1} parent=35 // pred_check
          %p249 = pneg %p50
        $region38: #{tpu_custom_call.1} parent=35 // pred_check_branch
          %251 = sbr.rel (%p249) target = $region40
        $region39: #{tpu_custom_call.1} parent=35 // pred_region
          %p252 = scmp.lt.s32.totalorder %s23, 1
          %s253 = scalar_select %p252, %s23, 1
          %p254 = scmp.lt.s32.totalorder %s24, 0
          %s255 = scalar_select %p254, %s24, 0
          %s256 = sadd.s32 %s255, %s253
          %s257 = smul.addr %s256, 4
          %s258 = scalar_lea.vmem %s0, %s257
        $region40: #{tpu_custom_call.1} parent=35 // pred_fallthru
          _
        // Predicated region
        $region41: #{tpu_custom_call.1} parent=35 // pred_check
          %p259 = pneg %p76
        $region42: #{tpu_custom_call.1} parent=35 // pred_check_branch
          %261 = sbr.rel (%p259) target = $region44
        $region43: #{tpu_custom_call.1} parent=35 // pred_region
          %p262 = scmp.lt.s32.totalorder %s23, 1
          %s263 = scalar_select %p262, %s23, 1
          %s264 = smul.addr %s263, 4
          %s265 = scalar_lea.vmem %s1, %s264
        $region44: #{tpu_custom_call.1} parent=35 // pred_fallthru
          _
      $region36: #{tpu_custom_call.1} parent=5 // pred_fallthru
        _
      %p266 = scmp.le.s32.totalorder 1, %s16
      %p267 = scmp.lt.s32.totalorder %s16, 3
      %p268 = pnand %p266, %p267
      %p269 = pneg %p268
      // Predicated region
      $region45: #{tpu_custom_call.1} parent=5 // pred_check
        _
      $region46: #{tpu_custom_call.1} parent=5 // pred_check_branch
        %271 = sbr.rel (%p268) target = $region48
      $region47: #{tpu_custom_call.1} parent=5 // pred_region
        %s272 = ssub.s32 %s16, 1
        %p273 = scmp.lt.s32.totalorder %s25, 1
        %s274 = scalar_select %p273, %s25, 1
        %p275 = scmp.lt.s32.totalorder %s26, 0
        %s276 = scalar_select %p275, %s26, 0
        %s277 = sadd.s32 %s276, %s274
        %s278 = smul.addr %s277, 4
        %s279 = scalar_lea.vmem %s0, %s278
        %p280 = pneg %p56
        %p281 = pneg %p53
        %p282 = scmp.lt.s32.totalorder %s25, 1
        %s283 = scalar_select %p282, %s25, 1
        %s284 = smul.addr %s283, 4
        %s285 = scalar_lea.vmem %s1, %s284
        %p286 = pneg %p82
        %p287 = pneg %p79
        %p288 = pneg %p103
        %p289 = pneg %p100
        %p290 = pneg %p124
        %p291 = pneg %p121
        %p292 = pneg %p145
        %p293 = pneg %p142
        %p294 = pneg %p166
        %p295 = pneg %p163
        %p296 = pneg %p187
        %p297 = pneg %p184
        %p298 = pneg %p215
        %p299 = pneg %p212
        %s300 = sand.u32 %s202, 1
        %s301 = scalar_lea.sflag [#allocation4], %s300
        %s302 = sand.u32 %s202, 1
        %s303 = smul.addr %s302, 8
        %s304 = scalar_lea.vmem [#allocation3], %s303
        %p305 = scmp.lt.s32.totalorder %s25, 1
        %s306 = scalar_select %p305, %s25, 1
        %p307 = scmp.lt.s32.totalorder %s26, 0
        %s308 = scalar_select %p307, %s26, 0
        %s309 = sadd.s32 %s308, %s306
        %s310 = smul.addr %s309, 4
        %s311 = scalar_lea.vmem %s0, %s310
        %p312 = scmp.lt.s32.totalorder %s25, 1
        %s313 = scalar_select %p312, %s25, 1
        %s314 = smul.addr %s313, 4
        %s315 = scalar_lea.vmem %s1, %s314
        %v317 = vld [vmem:[%s311] sm:$0xf]
        %v318 = vld [vmem:[%s315] sm:$0xf]
        %v319 = vld [vmem:[%s2] sm:$0xf]
        %v320 = vld [vmem:[%s2 + $0x4] sm:$0xf]
        %v321 = vld [vmem:[%s2 + $0x8] sm:$0xf]
        %v322 = vld [vmem:[%s2 + $0xc] sm:$0xf]
        %v327 = vunpack.c.l.b16 %v319
        %v328 = vunpack.c.l.b16 %v320
        %v329 = vunpack.c.l.b16 %v321
        %v330 = vunpack.c.l.b16 %v322
        %v331 = vpack.c.b16 %v328, %v327
        %v332 = vpack.c.b16 %v330, %v329
        %vm335 = vcmask 261120
        %v337 = vsel %vm335, %v317, 0
        %339 = vmatprep.subr.bf16.mxu0 0
        %340 = vmatpush1.bf16.msra.mxu0 %v331
        %341 = vmatprep.subr.bf16.mxu0 0
        %342 = vmatpush1.bf16.msra.mxu0 %v332
        %343 = vmatprep.subr.bf16.mxu0 0
        %344 = vmatpush1.bf16.msra.mxu0 0
        %345 = vmatprep.subr.bf16.mxu0 0
        %346 = vmatpush1.bf16.msra.mxu0 0
        %347 = vmatprep.subr.bf16.mxu0 0
        %348 = vmatpush1.bf16.msra.mxu0 0
        %349 = vmatprep.subr.bf16.mxu0 0
        %350 = vmatpush1.bf16.msra.mxu0 0
        %351 = vmatprep.subr.bf16.mxu0 0
        %352 = vmatpush1.bf16.msra.mxu0 0
        %353 = vmatprep.subr.bf16.mxu0 0
        %354 = vmatpush1.bf16.msra.mxu0 0
        %355 = vmatprep.subr.bf16.mxu0 0
        %356 = vmatpush1.bf16.msra.mxu0 0
        %357 = vmatprep.subr.bf16.mxu0 0
        %358 = vmatpush1.bf16.msra.mxu0 0
        %359 = vmatprep.subr.bf16.mxu0 0
        %360 = vmatpush1.bf16.msra.mxu0 0
        %361 = vmatprep.subr.bf16.mxu0 0
        %362 = vmatpush1.bf16.msra.mxu0 0
        %363 = vmatprep.subr.bf16.mxu0 0
        %364 = vmatpush1.bf16.msra.mxu0 0
        %365 = vmatprep.subr.bf16.mxu0 0
        %366 = vmatpush1.bf16.msra.mxu0 0
        %367 = vmatprep.subr.bf16.mxu0 0
        %368 = vmatpush1.bf16.msra.mxu0 0
        %369 = vmatprep.subr.bf16.mxu0 0
        %370 = vmatpush1.bf16.msra.mxu0 0
        %371 = vmatprep.mubr.bf16.mxu0 0
        %372 = vmatmul.mubr.bf16.gmra.mrb[0].mxu0 %v337
        %v373 = vpop.f32.mrb[0].mxu0
        %v374 = vadd.f32 0.0, %v373
        %v375 = vpop.f32.mrb[0].mxu0
        %v376 = vpop.f32.mrb[0].mxu0
        %v377 = vpop.f32.mrb[0].mxu0
        %378 = vdwg.mxu0
        %v379 = vpack.c.bf16 %v374, %v374
        %v380 = vld [vmem:[%s3] sm:$0xf]
        %v381 = vld [vmem:[%s3 + $0x4] sm:$0xf]
        %v382 = vld [vmem:[%s3 + $0x8] sm:$0xf]
        %v383 = vld [vmem:[%s3 + $0xc] sm:$0xf]
        %v388 = vunpack.c.l.b16 %v380
        %v389 = vunpack.c.l.b16 %v381
        %v390 = vunpack.c.l.b16 %v382
        %v391 = vunpack.c.l.b16 %v383
        %v392 = vpack.c.b16 %v389, %v388
        %v393 = vpack.c.b16 %v391, %v390
        %v397 = vsel %vm335, %v318, 0
        %399 = vmatprep.subr.bf16.mxu0 0
        %400 = vmatpush1.bf16.msra.mxu0 %v392
        %401 = vmatprep.subr.bf16.mxu0 0
        %402 = vmatpush1.bf16.msra.mxu0 %v393
        %403 = vmatprep.subr.bf16.mxu0 0
        %404 = vmatpush1.bf16.msra.mxu0 0
        %405 = vmatprep.subr.bf16.mxu0 0
        %406 = vmatpush1.bf16.msra.mxu0 0
        %407 = vmatprep.subr.bf16.mxu0 0
        %408 = vmatpush1.bf16.msra.mxu0 0
        %409 = vmatprep.subr.bf16.mxu0 0
        %410 = vmatpush1.bf16.msra.mxu0 0
        %411 = vmatprep.subr.bf16.mxu0 0
        %412 = vmatpush1.bf16.msra.mxu0 0
        %413 = vmatprep.subr.bf16.mxu0 0
        %414 = vmatpush1.bf16.msra.mxu0 0
        %415 = vmatprep.subr.bf16.mxu0 0
        %416 = vmatpush1.bf16.msra.mxu0 0
        %417 = vmatprep.subr.bf16.mxu0 0
        %418 = vmatpush1.bf16.msra.mxu0 0
        %419 = vmatprep.subr.bf16.mxu0 0
        %420 = vmatpush1.bf16.msra.mxu0 0
        %421 = vmatprep.subr.bf16.mxu0 0
        %422 = vmatpush1.bf16.msra.mxu0 0
        %423 = vmatprep.subr.bf16.mxu0 0
        %424 = vmatpush1.bf16.msra.mxu0 0
        %425 = vmatprep.subr.bf16.mxu0 0
        %426 = vmatpush1.bf16.msra.mxu0 0
        %427 = vmatprep.subr.bf16.mxu0 0
        %428 = vmatpush1.bf16.msra.mxu0 0
        %429 = vmatprep.subr.bf16.mxu0 0
        %430 = vmatpush1.bf16.msra.mxu0 0
        %431 = vmatprep.mubr.bf16.mxu0 0
        %432 = vmatmul.mubr.bf16.gmra.mrb[0].mxu0 %v397
        %v433 = vpop.f32.mrb[0].mxu0
        %v434 = vadd.f32 0.0, %v433
        %v435 = vpop.f32.mrb[0].mxu0
        %v436 = vpop.f32.mrb[0].mxu0
        %v437 = vpop.f32.mrb[0].mxu0
        %438 = vdwg.mxu0
        %v439 = vpack.c.bf16 %v434, %v434
        %v440 = vld [vmem:[%s4] sm:$0xf]
        %v441 = vld [vmem:[%s4 + $0x4] sm:$0xf]
        %v442 = vld [vmem:[%s4 + $0x8] sm:$0xf]
        %v443 = vld [vmem:[%s4 + $0xc] sm:$0xf]
        %v448 = vunpack.c.l.b16 %v440
        %v449 = vunpack.c.l.b16 %v441
        %v450 = vunpack.c.l.b16 %v442
        %v451 = vunpack.c.l.b16 %v443
        %v452 = vpack.c.b16 %v449, %v448
        %v453 = vpack.c.b16 %v451, %v450
        %456 = vmatprep.subr.bf16.mxu0 0
        %457 = vmatpush1.bf16.msra.mxu0 %v452
        %458 = vmatprep.subr.bf16.mxu0 0
        %459 = vmatpush1.bf16.msra.mxu0 %v453
        %460 = vmatprep.subr.bf16.mxu0 0
        %461 = vmatpush1.bf16.msra.mxu0 0
        %462 = vmatprep.subr.bf16.mxu0 0
        %463 = vmatpush1.bf16.msra.mxu0 0
        %464 = vmatprep.subr.bf16.mxu0 0
        %465 = vmatpush1.bf16.msra.mxu0 0
        %466 = vmatprep.subr.bf16.mxu0 0
        %467 = vmatpush1.bf16.msra.mxu0 0
        %468 = vmatprep.subr.bf16.mxu0 0
        %469 = vmatpush1.bf16.msra.mxu0 0
        %470 = vmatprep.subr.bf16.mxu0 0
        %471 = vmatpush1.bf16.msra.mxu0 0
        %472 = vmatprep.subr.bf16.mxu0 0
        %473 = vmatpush1.bf16.msra.mxu0 0
        %474 = vmatprep.subr.bf16.mxu0 0
        %475 = vmatpush1.bf16.msra.mxu0 0
        %476 = vmatprep.subr.bf16.mxu0 0
        %477 = vmatpush1.bf16.msra.mxu0 0
        %478 = vmatprep.subr.bf16.mxu0 0
        %479 = vmatpush1.bf16.msra.mxu0 0
        %480 = vmatprep.subr.bf16.mxu0 0
        %481 = vmatpush1.bf16.msra.mxu0 0
        %482 = vmatprep.subr.bf16.mxu0 0
        %483 = vmatpush1.bf16.msra.mxu0 0
        %484 = vmatprep.subr.bf16.mxu0 0
        %485 = vmatpush1.bf16.msra.mxu0 0
        %486 = vmatprep.subr.bf16.mxu0 0
        %487 = vmatpush1.bf16.msra.mxu0 0
        %488 = vmatprep.mubr.bf16.mxu0 0
        %489 = vmatmul.mubr.bf16.gmra.mrb[0].mxu0 %v397
        %v490 = vpop.f32.mrb[0].mxu0
        %v491 = vadd.f32 0.0, %v490
        %v492 = vpop.f32.mrb[0].mxu0
        %v493 = vpop.f32.mrb[0].mxu0
        %v494 = vpop.f32.mrb[0].mxu0
        %495 = vdwg.mxu0
        %v496 = vpack.c.bf16 %v491, %v491
        %v497 = vld [vmem:[%s6] sm:$0xf]
        %v498 = vld [vmem:[%s6 + $0x4] sm:$0xf]
        %v499 = vld [vmem:[%s6 + $0x8] sm:$0xf]
        %v500 = vld [vmem:[%s6 + $0xc] sm:$0xf]
        %v501 = vld [vmem:[%s6 + $0x10] sm:$0xf]
        %v502 = vld [vmem:[%s6 + $0x14] sm:$0xf]
        %v503 = vld [vmem:[%s6 + $0x18] sm:$0xf]
        %v504 = vld [vmem:[%s6 + $0x1c] sm:$0xf]
        %v505 = vld [vmem:[%s6 + $0x20] sm:$0xf]
        %v506 = vld [vmem:[%s6 + $0x24] sm:$0xf]
        %v507 = vld [vmem:[%s6 + $0x28] sm:$0xf]
        %v508 = vld [vmem:[%s6 + $0x2c] sm:$0xf]
        %v509 = vld [vmem:[%s6 + $0x30] sm:$0xf]
        %v510 = vld [vmem:[%s6 + $0x34] sm:$0xf]
        %v511 = vld [vmem:[%s6 + $0x38] sm:$0xf]
        %v512 = vld [vmem:[%s6 + $0x3c] sm:$0xf]
        %v513 = vld [vmem:[%s6 + $0x40] sm:$0xf]
        %v514 = vld [vmem:[%s6 + $0x44] sm:$0xf]
        %v515 = vld [vmem:[%s6 + $0x48] sm:$0xf]
        %v516 = vld [vmem:[%s6 + $0x4c] sm:$0xf]
        %v517 = vld [vmem:[%s6 + $0x50] sm:$0xf]
        %v518 = vld [vmem:[%s6 + $0x54] sm:$0xf]
        %v519 = vld [vmem:[%s6 + $0x58] sm:$0xf]
        %v520 = vld [vmem:[%s6 + $0x5c] sm:$0xf]
        %v521 = vld [vmem:[%s6 + $0x60] sm:$0xf]
        %v522 = vld [vmem:[%s6 + $0x64] sm:$0xf]
        %v523 = vld [vmem:[%s6 + $0x68] sm:$0xf]
        %v524 = vld [vmem:[%s6 + $0x6c] sm:$0xf]
        %v525 = vld [vmem:[%s6 + $0x70] sm:$0xf]
        %v526 = vld [vmem:[%s6 + $0x74] sm:$0xf]
        %v527 = vld [vmem:[%s6 + $0x78] sm:$0xf]
        %v528 = vld [vmem:[%s6 + $0x7c] sm:$0xf]
        %v561 = vunpack.c.l.b16 %v497
        %v562 = vunpack.c.l.b16 %v498
        %v563 = vunpack.c.l.b16 %v499
        %v564 = vunpack.c.l.b16 %v500
        %v565 = vunpack.c.l.b16 %v501
        %v566 = vunpack.c.l.b16 %v502
        %v567 = vunpack.c.l.b16 %v503
        %v568 = vunpack.c.l.b16 %v504
        %v569 = vunpack.c.l.b16 %v505
        %v570 = vunpack.c.l.b16 %v506
        %v571 = vunpack.c.l.b16 %v507
        %v572 = vunpack.c.l.b16 %v508
        %v573 = vunpack.c.l.b16 %v509
        %v574 = vunpack.c.l.b16 %v510
        %v575 = vunpack.c.l.b16 %v511
        %v576 = vunpack.c.l.b16 %v512
        %v577 = vunpack.c.l.b16 %v513
        %v578 = vunpack.c.l.b16 %v514
        %v579 = vunpack.c.l.b16 %v515
        %v580 = vunpack.c.l.b16 %v516
        %v581 = vunpack.c.l.b16 %v517
        %v582 = vunpack.c.l.b16 %v518
        %v583 = vunpack.c.l.b16 %v519
        %v584 = vunpack.c.l.b16 %v520
        %v585 = vunpack.c.l.b16 %v521
        %v586 = vunpack.c.l.b16 %v522
        %v587 = vunpack.c.l.b16 %v523
        %v588 = vunpack.c.l.b16 %v524
        %v589 = vunpack.c.l.b16 %v525
        %v590 = vunpack.c.l.b16 %v526
        %v591 = vunpack.c.l.b16 %v527
        %v592 = vunpack.c.l.b16 %v528
        %v593 = vpack.c.b16 %v562, %v561
        %v594 = vpack.c.b16 %v564, %v563
        %v595 = vpack.c.b16 %v566, %v565
        %v596 = vpack.c.b16 %v568, %v567
        %v597 = vpack.c.b16 %v570, %v569
        %v598 = vpack.c.b16 %v572, %v571
        %v599 = vpack.c.b16 %v574, %v573
        %v600 = vpack.c.b16 %v576, %v575
        %v601 = vpack.c.b16 %v578, %v577
        %v602 = vpack.c.b16 %v580, %v579
        %v603 = vpack.c.b16 %v582, %v581
        %v604 = vpack.c.b16 %v584, %v583
        %v605 = vpack.c.b16 %v586, %v585
        %v606 = vpack.c.b16 %v588, %v587
        %v607 = vpack.c.b16 %v590, %v589
        %v608 = vpack.c.b16 %v592, %v591
        %vm609 = vcmask 64512
        %v611 = vsel %vm609, %v379, 0
        %v614 = vsel %vm609, %v593, 0
        %v617 = vsel %vm609, %v594, 0
        %v620 = vsel %vm609, %v595, 0
        %v623 = vsel %vm609, %v596, 0
        %v626 = vsel %vm609, %v597, 0
        %v629 = vsel %vm609, %v598, 0
        %v632 = vsel %vm609, %v599, 0
        %v635 = vsel %vm609, %v600, 0
        %v638 = vsel %vm609, %v601, 0
        %v641 = vsel %vm609, %v602, 0
        %v644 = vsel %vm609, %v603, 0
        %v647 = vsel %vm609, %v604, 0
        %v650 = vsel %vm609, %v605, 0
        %v653 = vsel %vm609, %v606, 0
        %v656 = vsel %vm609, %v607, 0
        %v659 = vsel %vm609, %v608, 0
        %661 = vmatprep.subr.bf16.mxu0 0
        %662 = vmatpush1.bf16.xpose.msra.mxu0 %v614
        %663 = vmatprep.subr.bf16.mxu0 0
        %664 = vmatpush1.bf16.xpose.msra.mxu0 %v617
        %665 = vmatprep.subr.bf16.mxu0 0
        %666 = vmatpush1.bf16.xpose.msra.mxu0 %v620
        %667 = vmatprep.subr.bf16.mxu0 0
        %668 = vmatpush1.bf16.xpose.msra.mxu0 %v623
        %669 = vmatprep.subr.bf16.mxu0 0
        %670 = vmatpush1.bf16.xpose.msra.mxu0 %v626
        %671 = vmatprep.subr.bf16.mxu0 0
        %672 = vmatpush1.bf16.xpose.msra.mxu0 %v629
        %673 = vmatprep.subr.bf16.mxu0 0
        %674 = vmatpush1.bf16.xpose.msra.mxu0 %v632
        %675 = vmatprep.subr.bf16.mxu0 0
        %676 = vmatpush1.bf16.xpose.msra.mxu0 %v635
        %677 = vmatprep.subr.bf16.mxu0 0
        %678 = vmatpush1.bf16.xpose.msra.mxu0 %v638
        %679 = vmatprep.subr.bf16.mxu0 0
        %680 = vmatpush1.bf16.xpose.msra.mxu0 %v641
        %681 = vmatprep.subr.bf16.mxu0 0
        %682 = vmatpush1.bf16.xpose.msra.mxu0 %v644
        %683 = vmatprep.subr.bf16.mxu0 0
        %684 = vmatpush1.bf16.xpose.msra.mxu0 %v647
        %685 = vmatprep.subr.bf16.mxu0 0
        %686 = vmatpush1.bf16.xpose.msra.mxu0 %v650
        %687 = vmatprep.subr.bf16.mxu0 0
        %688 = vmatpush1.bf16.xpose.msra.mxu0 %v653
        %689 = vmatprep.subr.bf16.mxu0 0
        %690 = vmatpush1.bf16.xpose.msra.mxu0 %v656
        %691 = vmatprep.subr.bf16.mxu0 0
        %692 = vmatpush1.bf16.xpose.msra.mxu0 %v659
        %693 = vmatprep.mubr.bf16.mxu0 0
        %694 = vmatmul.mubr.bf16.gmra.mrb[0].mxu0 %v611
        %v695 = vpop.f32.mrb[0].mxu0
        %v696 = vadd.f32 0.0, %v695
        %v697 = vpop.f32.mrb[0].mxu0
        %v698 = vadd.f32 0.0, %v697
        %v699 = vpop.f32.mrb[0].mxu0
        %v700 = vpop.f32.mrb[0].mxu0
        %701 = vdwg.mxu0
        %704 = vrot.lane.b32.xlu0 %v696, 1
        %v705 = vpop.permute.xlu0 %704
        %706 = vrot.lane.b32.xlu0 %v698, 1
        %v707 = vpop.permute.xlu0 %706
        %vm708 = vcmask 7168
        %v709 = vsel %vm708, %v705, %v707
        %711 = vrot.lane.b32.xlu0 %v696, 2
        %v712 = vpop.permute.xlu0 %711
        %713 = vrot.lane.b32.xlu0 %v698, 2
        %v714 = vpop.permute.xlu0 %713
        %vm715 = vcmask 15360
        %v716 = vsel %vm715, %v712, %v714
        %718 = vrot.lane.b32.xlu0 %v696, 3
        %v719 = vpop.permute.xlu0 %718
        %720 = vrot.lane.b32.xlu0 %v698, 3
        %v721 = vpop.permute.xlu0 %720
        %vm722 = vcmask 23552
        %v723 = vsel %vm722, %v719, %v721
        %725 = vrot.lane.b32.xlu0 %v696, 4
        %v726 = vpop.permute.xlu0 %725
        %727 = vrot.lane.b32.xlu0 %v698, 4
        %v728 = vpop.permute.xlu0 %727
        %vm729 = vcmask 31744
        %v730 = vsel %vm729, %v726, %v728
        %732 = vrot.lane.b32.xlu0 %v696, 5
        %v733 = vpop.permute.xlu0 %732
        %734 = vrot.lane.b32.xlu0 %v698, 5
        %v735 = vpop.permute.xlu0 %734
        %vm736 = vcmask 39936
        %v737 = vsel %vm736, %v733, %v735
        %739 = vrot.lane.b32.xlu0 %v696, 6
        %v740 = vpop.permute.xlu0 %739
        %741 = vrot.lane.b32.xlu0 %v698, 6
        %v742 = vpop.permute.xlu0 %741
        %vm743 = vcmask 48128
        %v744 = vsel %vm743, %v740, %v742
        %746 = vrot.lane.b32.xlu0 %v696, 7
        %v747 = vpop.permute.xlu0 %746
        %748 = vrot.lane.b32.xlu0 %v698, 7
        %v749 = vpop.permute.xlu0 %748
        %vm750 = vcmask 56320
        %v751 = vsel %vm750, %v747, %v749
        %vm753 = vcmask 1040384
        %v754 = vsel %vm753, %v698, %v709
        %vm755 = vcmask 1041408
        %v756 = vsel %vm755, %v754, %v716
        %vm757 = vcmask 1042432
        %v758 = vsel %vm757, %v756, %v723
        %vm759 = vcmask 1043456
        %v760 = vsel %vm759, %v758, %v730
        %vm761 = vcmask 1044480
        %v762 = vsel %vm761, %v760, %v737
        %vm763 = vcmask 1045504
        %v764 = vsel %vm763, %v762, %v744
        %vm765 = vcmask 1046528
        %v766 = vsel %vm765, %v764, %v751
        %v768 = vsel %vm609, %v439, 0
        %770 = vmatprep.subr.bf16.mxu0 0
        %771 = vmatpush1.bf16.xpose.msra.mxu0 %v768
        %772 = vmatprep.subr.bf16.mxu0 0
        %773 = vmatpush1.bf16.xpose.msra.mxu0 0
        %774 = vmatprep.subr.bf16.mxu0 0
        %775 = vmatpush1.bf16.xpose.msra.mxu0 0
        %776 = vmatprep.subr.bf16.mxu0 0
        %777 = vmatpush1.bf16.xpose.msra.mxu0 0
        %778 = vmatprep.subr.bf16.mxu0 0
        %779 = vmatpush1.bf16.xpose.msra.mxu0 0
        %780 = vmatprep.subr.bf16.mxu0 0
        %781 = vmatpush1.bf16.xpose.msra.mxu0 0
        %782 = vmatprep.subr.bf16.mxu0 0
        %783 = vmatpush1.bf16.xpose.msra.mxu0 0
        %784 = vmatprep.subr.bf16.mxu0 0
        %785 = vmatpush1.bf16.xpose.msra.mxu0 0
        %786 = vmatprep.subr.bf16.mxu0 0
        %787 = vmatpush1.bf16.xpose.msra.mxu0 0
        %788 = vmatprep.subr.bf16.mxu0 0
        %789 = vmatpush1.bf16.xpose.msra.mxu0 0
        %790 = vmatprep.subr.bf16.mxu0 0
        %791 = vmatpush1.bf16.xpose.msra.mxu0 0
        %792 = vmatprep.subr.bf16.mxu0 0
        %793 = vmatpush1.bf16.xpose.msra.mxu0 0
        %794 = vmatprep.subr.bf16.mxu0 0
        %795 = vmatpush1.bf16.xpose.msra.mxu0 0
        %796 = vmatprep.subr.bf16.mxu0 0
        %797 = vmatpush1.bf16.xpose.msra.mxu0 0
        %798 = vmatprep.subr.bf16.mxu0 0
        %799 = vmatpush1.bf16.xpose.msra.mxu0 0
        %800 = vmatprep.subr.bf16.mxu0 0
        %801 = vmatpush1.bf16.xpose.msra.mxu0 0
        %802 = vmatprep.mubr.bf16.mxu0 0
        %803 = vmatmul.mubr.bf16.gmra.mrb[0].mxu0 %v611
        %v804 = vpop.f32.mrb[0].mxu0
        %v805 = vadd.f32 %v766, %v804
        %v806 = vpop.f32.mrb[0].mxu0
        %v807 = vpop.f32.mrb[0].mxu0
        %v808 = vpop.f32.mrb[0].mxu0
        %809 = vdwg.mxu0
        %v810 = vsel %vm609, %v805, -inf
        %811 = vmax.xlane.f32.xlu0 %v810
        %v812 = vpop.xlane.xlu0 %811
        %v813 = vsub.f32 %v805, %v812
        %v814 = vmul.f32 %v813, 1.442695
        %v815 = vpow.pop %v814
        %v816 = vsel %vm609, %v815, 0.0
        %817 = vadd.xlane.f32.xlu0 %v816
        %v818 = vpop.xlane.xlu0 %817
        %v819 = vpack.c.bf16 %v815, %v815
        %v821 = vsel %vm609, %v819, 0
        %v824 = vsel %vm759, %v496, 0
        %826 = vmatprep.subr.bf16.mxu0 0
        %827 = vmatpush1.bf16.msra.mxu0 %v824
        %828 = vmatprep.subr.bf16.mxu0 0
        %829 = vmatpush1.bf16.msra.mxu0 0
        %830 = vmatprep.subr.bf16.mxu0 0
        %831 = vmatpush1.bf16.msra.mxu0 0
        %832 = vmatprep.subr.bf16.mxu0 0
        %833 = vmatpush1.bf16.msra.mxu0 0
        %834 = vmatprep.subr.bf16.mxu0 0
        %835 = vmatpush1.bf16.msra.mxu0 0
        %836 = vmatprep.subr.bf16.mxu0 0
        %837 = vmatpush1.bf16.msra.mxu0 0
        %838 = vmatprep.subr.bf16.mxu0 0
        %839 = vmatpush1.bf16.msra.mxu0 0
        %840 = vmatprep.subr.bf16.mxu0 0
        %841 = vmatpush1.bf16.msra.mxu0 0
        %842 = vmatprep.subr.bf16.mxu0 0
        %843 = vmatpush1.bf16.msra.mxu0 0
        %844 = vmatprep.subr.bf16.mxu0 0
        %845 = vmatpush1.bf16.msra.mxu0 0
        %846 = vmatprep.subr.bf16.mxu0 0
        %847 = vmatpush1.bf16.msra.mxu0 0
        %848 = vmatprep.subr.bf16.mxu0 0
        %849 = vmatpush1.bf16.msra.mxu0 0
        %850 = vmatprep.subr.bf16.mxu0 0
        %851 = vmatpush1.bf16.msra.mxu0 0
        %852 = vmatprep.subr.bf16.mxu0 0
        %853 = vmatpush1.bf16.msra.mxu0 0
        %854 = vmatprep.subr.bf16.mxu0 0
        %855 = vmatpush1.bf16.msra.mxu0 0
        %856 = vmatprep.subr.bf16.mxu0 0
        %857 = vmatpush1.bf16.msra.mxu0 0
        %858 = vmatprep.mubr.bf16.mxu0 0
        %859 = vmatmul.mubr.bf16.gmra.mrb[0].mxu0 %v821
        %v860 = vpop.f32.mrb[0].mxu0
        %v861 = vadd.f32 0.0, %v860
        %v862 = vpop.f32.mrb[0].mxu0
        %v863 = vpop.f32.mrb[0].mxu0
        %v864 = vpop.f32.mrb[0].mxu0
        %865 = vdwg.mxu0
        %v866 = vrcp.pop %v818
        %v867 = vmul.f32 %v861, %v866
        %v868 = vpack.c.bf16 %v867, %v867
        %v869 = vld [vmem:[%s5] sm:$0xf]
        %v871 = vsel %vm609, %v868, 0
        %v874 = vsel %vm759, %v869, 0
        %876 = vmatprep.subr.bf16.mxu0 0
        %877 = vmatpush1.bf16.msra.mxu0 %v874
        %878 = vmatprep.subr.bf16.mxu0 0
        %879 = vmatpush1.bf16.msra.mxu0 0
        %880 = vmatprep.subr.bf16.mxu0 0
        %881 = vmatpush1.bf16.msra.mxu0 0
        %882 = vmatprep.subr.bf16.mxu0 0
        %883 = vmatpush1.bf16.msra.mxu0 0
        %884 = vmatprep.subr.bf16.mxu0 0
        %885 = vmatpush1.bf16.msra.mxu0 0
        %886 = vmatprep.subr.bf16.mxu0 0
        %887 = vmatpush1.bf16.msra.mxu0 0
        %888 = vmatprep.subr.bf16.mxu0 0
        %889 = vmatpush1.bf16.msra.mxu0 0
        %890 = vmatprep.subr.bf16.mxu0 0
        %891 = vmatpush1.bf16.msra.mxu0 0
        %892 = vmatprep.subr.bf16.mxu0 0
        %893 = vmatpush1.bf16.msra.mxu0 0
        %894 = vmatprep.subr.bf16.mxu0 0
        %895 = vmatpush1.bf16.msra.mxu0 0
        %896 = vmatprep.subr.bf16.mxu0 0
        %897 = vmatpush1.bf16.msra.mxu0 0
        %898 = vmatprep.subr.bf16.mxu0 0
        %899 = vmatpush1.bf16.msra.mxu0 0
        %900 = vmatprep.subr.bf16.mxu0 0
        %901 = vmatpush1.bf16.msra.mxu0 0
        %902 = vmatprep.subr.bf16.mxu0 0
        %903 = vmatpush1.bf16.msra.mxu0 0
        %904 = vmatprep.subr.bf16.mxu0 0
        %905 = vmatpush1.bf16.msra.mxu0 0
        %906 = vmatprep.subr.bf16.mxu0 0
        %907 = vmatpush1.bf16.msra.mxu0 0
        %908 = vmatprep.mubr.bf16.mxu0 0
        %909 = vmatmul.mubr.bf16.gmra.mrb[0].mxu0 %v871
        %v910 = vpop.f32.mrb[0].mxu0
        %v911 = vadd.f32 0.0, %v910
        %v912 = vpop.f32.mrb[0].mxu0
        %v913 = vpop.f32.mrb[0].mxu0
        %v914 = vpop.f32.mrb[0].mxu0
        %915 = vdwg.mxu0
        %916 = vst.msk [vmem:[#allocation2] sm:$0xff] %vm335, %v911
        %s917 = scalar_lea.vmem %s6, 128
        %v918 = vld [vmem:[%s917] sm:$0xf]
        %v919 = vld [vmem:[%s917 + $0x4] sm:$0xf]
        %v920 = vld [vmem:[%s917 + $0x8] sm:$0xf]
        %v921 = vld [vmem:[%s917 + $0xc] sm:$0xf]
        %v922 = vld [vmem:[%s917 + $0x10] sm:$0xf]
        %v923 = vld [vmem:[%s917 + $0x14] sm:$0xf]
        %v924 = vld [vmem:[%s917 + $0x18] sm:$0xf]
        %v925 = vld [vmem:[%s917 + $0x1c] sm:$0xf]
        %v926 = vld [vmem:[%s917 + $0x20] sm:$0xf]
        %v927 = vld [vmem:[%s917 + $0x24] sm:$0xf]
        %v928 = vld [vmem:[%s917 + $0x28] sm:$0xf]
        %v929 = vld [vmem:[%s917 + $0x2c] sm:$0xf]
        %v930 = vld [vmem:[%s917 + $0x30] sm:$0xf]
        %v931 = vld [vmem:[%s917 + $0x34] sm:$0xf]
        %v932 = vld [vmem:[%s917 + $0x38] sm:$0xf]
        %v933 = vld [vmem:[%s917 + $0x3c] sm:$0xf]
        %v934 = vld [vmem:[%s917 + $0x40] sm:$0xf]
        %v935 = vld [vmem:[%s917 + $0x44] sm:$0xf]
        %v936 = vld [vmem:[%s917 + $0x48] sm:$0xf]
        %v937 = vld [vmem:[%s917 + $0x4c] sm:$0xf]
        %v938 = vld [vmem:[%s917 + $0x50] sm:$0xf]
        %v939 = vld [vmem:[%s917 + $0x54] sm:$0xf]
        %v940 = vld [vmem:[%s917 + $0x58] sm:$0xf]
        %v941 = vld [vmem:[%s917 + $0x5c] sm:$0xf]
        %v942 = vld [vmem:[%s917 + $0x60] sm:$0xf]
        %v943 = vld [vmem:[%s917 + $0x64] sm:$0xf]
        %v944 = vld [vmem:[%s917 + $0x68] sm:$0xf]
        %v945 = vld [vmem:[%s917 + $0x6c] sm:$0xf]
        %v946 = vld [vmem:[%s917 + $0x70] sm:$0xf]
        %v947 = vld [vmem:[%s917 + $0x74] sm:$0xf]
        %v948 = vld [vmem:[%s917 + $0x78] sm:$0xf]
        %v949 = vld [vmem:[%s917 + $0x7c] sm:$0xf]
        %951 = vrot.lane.b32.xlu0 %v379, 120
        %v952 = vpop.permute.xlu0 %951
        %v985 = vunpack.c.l.b16 %v918
        %v986 = vunpack.c.l.b16 %v919
        %v987 = vunpack.c.l.b16 %v920
        %v988 = vunpack.c.l.b16 %v921
        %v989 = vunpack.c.l.b16 %v922
        %v990 = vunpack.c.l.b16 %v923
        %v991 = vunpack.c.l.b16 %v924
        %v992 = vunpack.c.l.b16 %v925
        %v993 = vunpack.c.l.b16 %v926
        %v994 = vunpack.c.l.b16 %v927
        %v995 = vunpack.c.l.b16 %v928
        %v996 = vunpack.c.l.b16 %v929
        %v997 = vunpack.c.l.b16 %v930
        %v998 = vunpack.c.l.b16 %v931
        %v999 = vunpack.c.l.b16 %v932
        %v1000 = vunpack.c.l.b16 %v933
        %v1001 = vunpack.c.l.b16 %v934
        %v1002 = vunpack.c.l.b16 %v935
        %v1003 = vunpack.c.l.b16 %v936
        %v1004 = vunpack.c.l.b16 %v937
        %v1005 = vunpack.c.l.b16 %v938
        %v1006 = vunpack.c.l.b16 %v939
        %v1007 = vunpack.c.l.b16 %v940
        %v1008 = vunpack.c.l.b16 %v941
        %v1009 = vunpack.c.l.b16 %v942
        %v1010 = vunpack.c.l.b16 %v943
        %v1011 = vunpack.c.l.b16 %v944
        %v1012 = vunpack.c.l.b16 %v945
        %v1013 = vunpack.c.l.b16 %v946
        %v1014 = vunpack.c.l.b16 %v947
        %v1015 = vunpack.c.l.b16 %v948
        %v1016 = vunpack.c.l.b16 %v949
        %v1017 = vpack.c.b16 %v986, %v985
        %v1018 = vpack.c.b16 %v988, %v987
        %v1019 = vpack.c.b16 %v990, %v989
        %v1020 = vpack.c.b16 %v992, %v991
        %v1021 = vpack.c.b16 %v994, %v993
        %v1022 = vpack.c.b16 %v996, %v995
        %v1023 = vpack.c.b16 %v998, %v997
        %v1024 = vpack.c.b16 %v1000, %v999
        %v1025 = vpack.c.b16 %v1002, %v1001
        %v1026 = vpack.c.b16 %v1004, %v1003
        %v1027 = vpack.c.b16 %v1006, %v1005
        %v1028 = vpack.c.b16 %v1008, %v1007
        %v1029 = vpack.c.b16 %v1010, %v1009
        %v1030 = vpack.c.b16 %v1012, %v1011
        %v1031 = vpack.c.b16 %v1014, %v1013
        %v1032 = vpack.c.b16 %v1016, %v1015
        %v1034 = vsel %vm609, %v952, 0
        %v1037 = vsel %vm609, %v1017, 0
        %v1040 = vsel %vm609, %v1018, 0
        %v1043 = vsel %vm609, %v1019, 0
        %v1046 = vsel %vm609, %v1020, 0
        %v1049 = vsel %vm609, %v1021, 0
        %v1052 = vsel %vm609, %v1022, 0
        %v1055 = vsel %vm609, %v1023, 0
        %v1058 = vsel %vm609, %v1024, 0
        %v1061 = vsel %vm609, %v1025, 0
        %v1064 = vsel %vm609, %v1026, 0
        %v1067 = vsel %vm609, %v1027, 0
        %v1070 = vsel %vm609, %v1028, 0
        %v1073 = vsel %vm609, %v1029, 0
        %v1076 = vsel %vm609, %v1030, 0
        %v1079 = vsel %vm609, %v1031, 0
        %v1082 = vsel %vm609, %v1032, 0
        %1084 = vmatprep.subr.bf16.mxu0 0
        %1085 = vmatpush1.bf16.xpose.msra.mxu0 %v1037
        %1086 = vmatprep.subr.bf16.mxu0 0
        %1087 = vmatpush1.bf16.xpose.msra.mxu0 %v1040
        %1088 = vmatprep.subr.bf16.mxu0 0
        %1089 = vmatpush1.bf16.xpose.msra.mxu0 %v1043
        %1090 = vmatprep.subr.bf16.mxu0 0
        %1091 = vmatpush1.bf16.xpose.msra.mxu0 %v1046
        %1092 = vmatprep.subr.bf16.mxu0 0
        %1093 = vmatpush1.bf16.xpose.msra.mxu0 %v1049
        %1094 = vmatprep.subr.bf16.mxu0 0
        %1095 = vmatpush1.bf16.xpose.msra.mxu0 %v1052
        %1096 = vmatprep.subr.bf16.mxu0 0
        %1097 = vmatpush1.bf16.xpose.msra.mxu0 %v1055
        %1098 = vmatprep.subr.bf16.mxu0 0
        %1099 = vmatpush1.bf16.xpose.msra.mxu0 %v1058
        %1100 = vmatprep.subr.bf16.mxu0 0
        %1101 = vmatpush1.bf16.xpose.msra.mxu0 %v1061
        %1102 = vmatprep.subr.bf16.mxu0 0
        %1103 = vmatpush1.bf16.xpose.msra.mxu0 %v1064
        %1104 = vmatprep.subr.bf16.mxu0 0
        %1105 = vmatpush1.bf16.xpose.msra.mxu0 %v1067
        %1106 = vmatprep.subr.bf16.mxu0 0
        %1107 = vmatpush1.bf16.xpose.msra.mxu0 %v1070
        %1108 = vmatprep.subr.bf16.mxu0 0
        %1109 = vmatpush1.bf16.xpose.msra.mxu0 %v1073
        %1110 = vmatprep.subr.bf16.mxu0 0
        %1111 = vmatpush1.bf16.xpose.msra.mxu0 %v1076
        %1112 = vmatprep.subr.bf16.mxu0 0
        %1113 = vmatpush1.bf16.xpose.msra.mxu0 %v1079
        %1114 = vmatprep.subr.bf16.mxu0 0
        %1115 = vmatpush1.bf16.xpose.msra.mxu0 %v1082
        %1116 = vmatprep.mubr.bf16.mxu0 0
        %1117 = vmatmul.mubr.bf16.gmra.mrb[0].mxu0 %v1034
        %v1118 = vpop.f32.mrb[0].mxu0
        %v1119 = vadd.f32 0.0, %v1118
        %v1120 = vpop.f32.mrb[0].mxu0
        %v1121 = vadd.f32 0.0, %v1120
        %v1122 = vpop.f32.mrb[0].mxu0
        %v1123 = vpop.f32.mrb[0].mxu0
        %1124 = vdwg.mxu0
        %1127 = vrot.lane.b32.xlu0 %v1119, 1
        %v1128 = vpop.permute.xlu0 %1127
        %1129 = vrot.lane.b32.xlu0 %v1121, 1
        %v1130 = vpop.permute.xlu0 %1129
        %v1131 = vsel %vm708, %v1128, %v1130
        %1133 = vrot.lane.b32.xlu0 %v1119, 2
        %v1134 = vpop.permute.xlu0 %1133
        %1135 = vrot.lane.b32.xlu0 %v1121, 2
        %v1136 = vpop.permute.xlu0 %1135
        %v1137 = vsel %vm715, %v1134, %v1136
        %1139 = vrot.lane.b32.xlu0 %v1119, 3
        %v1140 = vpop.permute.xlu0 %1139
        %1141 = vrot.lane.b32.xlu0 %v1121, 3
        %v1142 = vpop.permute.xlu0 %1141
        %v1143 = vsel %vm722, %v1140, %v1142
        %1145 = vrot.lane.b32.xlu0 %v1119, 4
        %v1146 = vpop.permute.xlu0 %1145
        %1147 = vrot.lane.b32.xlu0 %v1121, 4
        %v1148 = vpop.permute.xlu0 %1147
        %v1149 = vsel %vm729, %v1146, %v1148
        %1151 = vrot.lane.b32.xlu0 %v1119, 5
        %v1152 = vpop.permute.xlu0 %1151
        %1153 = vrot.lane.b32.xlu0 %v1121, 5
        %v1154 = vpop.permute.xlu0 %1153
        %v1155 = vsel %vm736, %v1152, %v1154
        %1157 = vrot.lane.b32.xlu0 %v1119, 6
        %v1158 = vpop.permute.xlu0 %1157
        %1159 = vrot.lane.b32.xlu0 %v1121, 6
        %v1160 = vpop.permute.xlu0 %1159
        %v1161 = vsel %vm743, %v1158, %v1160
        %1163 = vrot.lane.b32.xlu0 %v1119, 7
        %v1164 = vpop.permute.xlu0 %1163
        %1165 = vrot.lane.b32.xlu0 %v1121, 7
        %v1166 = vpop.permute.xlu0 %1165
        %v1167 = vsel %vm750, %v1164, %v1166
        %v1169 = vsel %vm753, %v1121, %v1131
        %v1170 = vsel %vm755, %v1169, %v1137
        %v1171 = vsel %vm757, %v1170, %v1143
        %v1172 = vsel %vm759, %v1171, %v1149
        %v1173 = vsel %vm761, %v1172, %v1155
        %v1174 = vsel %vm763, %v1173, %v1161
        %v1175 = vsel %vm765, %v1174, %v1167
        %1177 = vrot.lane.b32.xlu0 %v439, 120
        %v1178 = vpop.permute.xlu0 %1177
        %v1180 = vsel %vm609, %v1178, 0
        %1182 = vmatprep.subr.bf16.mxu0 0
        %1183 = vmatpush1.bf16.xpose.msra.mxu0 %v1180
        %1184 = vmatprep.subr.bf16.mxu0 0
        %1185 = vmatpush1.bf16.xpose.msra.mxu0 0
        %1186 = vmatprep.subr.bf16.mxu0 0
        %1187 = vmatpush1.bf16.xpose.msra.mxu0 0
        %1188 = vmatprep.subr.bf16.mxu0 0
        %1189 = vmatpush1.bf16.xpose.msra.mxu0 0
        %1190 = vmatprep.subr.bf16.mxu0 0
        %1191 = vmatpush1.bf16.xpose.msra.mxu0 0
        %1192 = vmatprep.subr.bf16.mxu0 0
        %1193 = vmatpush1.bf16.xpose.msra.mxu0 0
        %1194 = vmatprep.subr.bf16.mxu0 0
        %1195 = vmatpush1.bf16.xpose.msra.mxu0 0
        %1196 = vmatprep.subr.bf16.mxu0 0
        %1197 = vmatpush1.bf16.xpose.msra.mxu0 0
        %1198 = vmatprep.subr.bf16.mxu0 0
        %1199 = vmatpush1.bf16.xpose.msra.mxu0 0
        %1200 = vmatprep.subr.bf16.mxu0 0
        %1201 = vmatpush1.bf16.xpose.msra.mxu0 0
        %1202 = vmatprep.subr.bf16.mxu0 0
        %1203 = vmatpush1.bf16.xpose.msra.mxu0 0
        %1204 = vmatprep.subr.bf16.mxu0 0
        %1205 = vmatpush1.bf16.xpose.msra.mxu0 0
        %1206 = vmatprep.subr.bf16.mxu0 0
        %1207 = vmatpush1.bf16.xpose.msra.mxu0 0
        %1208 = vmatprep.subr.bf16.mxu0 0
        %1209 = vmatpush1.bf16.xpose.msra.mxu0 0
        %1210 = vmatprep.subr.bf16.mxu0 0
        %1211 = vmatpush1.bf16.xpose.msra.mxu0 0
        %1212 = vmatprep.subr.bf16.mxu0 0
        %1213 = vmatpush1.bf16.xpose.msra.mxu0 0
        %1214 = vmatprep.mubr.bf16.mxu0 0
        %1215 = vmatmul.mubr.bf16.gmra.mrb[0].mxu0 %v1034
        %v1216 = vpop.f32.mrb[0].mxu0
        %v1217 = vadd.f32 %v1175, %v1216
        %v1218 = vpop.f32.mrb[0].mxu0
        %v1219 = vpop.f32.mrb[0].mxu0
        %v1220 = vpop.f32.mrb[0].mxu0
        %1221 = vdwg.mxu0
        %v1222 = vsel %vm609, %v1217, -inf
        %1223 = vmax.xlane.f32.xlu0 %v1222
        %v1224 = vpop.xlane.xlu0 %1223
        %v1225 = vsub.f32 %v1217, %v1224
        %v1226 = vmul.f32 %v1225, 1.442695
        %v1227 = vpow.pop %v1226
        %v1228 = vsel %vm609, %v1227, 0.0
        %1229 = vadd.xlane.f32.xlu0 %v1228
        %v1230 = vpop.xlane.xlu0 %1229
        %v1231 = vpack.c.bf16 %v1227, %v1227
        %1233 = vrot.lane.b32.xlu0 %v496, 120
        %v1234 = vpop.permute.xlu0 %1233
        %v1236 = vsel %vm609, %v1231, 0
        %v1239 = vsel %vm759, %v1234, 0
        %1241 = vmatprep.subr.bf16.mxu0 0
        %1242 = vmatpush1.bf16.msra.mxu0 %v1239
        %1243 = vmatprep.subr.bf16.mxu0 0
        %1244 = vmatpush1.bf16.msra.mxu0 0
        %1245 = vmatprep.subr.bf16.mxu0 0
        %1246 = vmatpush1.bf16.msra.mxu0 0
        %1247 = vmatprep.subr.bf16.mxu0 0
        %1248 = vmatpush1.bf16.msra.mxu0 0
        %1249 = vmatprep.subr.bf16.mxu0 0
        %1250 = vmatpush1.bf16.msra.mxu0 0
        %1251 = vmatprep.subr.bf16.mxu0 0
        %1252 = vmatpush1.bf16.msra.mxu0 0
        %1253 = vmatprep.subr.bf16.mxu0 0
        %1254 = vmatpush1.bf16.msra.mxu0 0
        %1255 = vmatprep.subr.bf16.mxu0 0
        %1256 = vmatpush1.bf16.msra.mxu0 0
        %1257 = vmatprep.subr.bf16.mxu0 0
        %1258 = vmatpush1.bf16.msra.mxu0 0
        %1259 = vmatprep.subr.bf16.mxu0 0
        %1260 = vmatpush1.bf16.msra.mxu0 0
        %1261 = vmatprep.subr.bf16.mxu0 0
        %1262 = vmatpush1.bf16.msra.mxu0 0
        %1263 = vmatprep.subr.bf16.mxu0 0
        %1264 = vmatpush1.bf16.msra.mxu0 0
        %1265 = vmatprep.subr.bf16.mxu0 0
        %1266 = vmatpush1.bf16.msra.mxu0 0
        %1267 = vmatprep.subr.bf16.mxu0 0
        %1268 = vmatpush1.bf16.msra.mxu0 0
        %1269 = vmatprep.subr.bf16.mxu0 0
        %1270 = vmatpush1.bf16.msra.mxu0 0
        %1271 = vmatprep.subr.bf16.mxu0 0
        %1272 = vmatpush1.bf16.msra.mxu0 0
        %1273 = vmatprep.mubr.bf16.mxu0 0
        %1274 = vmatmul.mubr.bf16.gmra.mrb[0].mxu0 %v1236
        %v1275 = vpop.f32.mrb[0].mxu0
        %v1276 = vadd.f32 0.0, %v1275
        %v1277 = vpop.f32.mrb[0].mxu0
        %v1278 = vpop.f32.mrb[0].mxu0
        %v1279 = vpop.f32.mrb[0].mxu0
        %1280 = vdwg.mxu0
        %v1281 = vrcp.pop %v1230
        %v1282 = vmul.f32 %v1276, %v1281
        %v1283 = vpack.c.bf16 %v1282, %v1282
        %v1284 = vld [vmem:[%s5 + $0x4] sm:$0xf]
        %v1286 = vsel %vm609, %v1283, 0
        %v1289 = vsel %vm759, %v1284, 0
        %1291 = vmatprep.subr.bf16.mxu0 0
        %1292 = vmatpush1.bf16.msra.mxu0 %v1289
        %1293 = vmatprep.subr.bf16.mxu0 0
        %1294 = vmatpush1.bf16.msra.mxu0 0
        %1295 = vmatprep.subr.bf16.mxu0 0
        %1296 = vmatpush1.bf16.msra.mxu0 0
        %1297 = vmatprep.subr.bf16.mxu0 0
        %1298 = vmatpush1.bf16.msra.mxu0 0
        %1299 = vmatprep.subr.bf16.mxu0 0
        %1300 = vmatpush1.bf16.msra.mxu0 0
        %1301 = vmatprep.subr.bf16.mxu0 0
        %1302 = vmatpush1.bf16.msra.mxu0 0
        %1303 = vmatprep.subr.bf16.mxu0 0
        %1304 = vmatpush1.bf16.msra.mxu0 0
        %1305 = vmatprep.subr.bf16.mxu0 0
        %1306 = vmatpush1.bf16.msra.mxu0 0
        %1307 = vmatprep.subr.bf16.mxu0 0
        %1308 = vmatpush1.bf16.msra.mxu0 0
        %1309 = vmatprep.subr.bf16.mxu0 0
        %1310 = vmatpush1.bf16.msra.mxu0 0
        %1311 = vmatprep.subr.bf16.mxu0 0
        %1312 = vmatpush1.bf16.msra.mxu0 0
        %1313 = vmatprep.subr.bf16.mxu0 0
        %1314 = vmatpush1.bf16.msra.mxu0 0
        %1315 = vmatprep.subr.bf16.mxu0 0
        %1316 = vmatpush1.bf16.msra.mxu0 0
        %1317 = vmatprep.subr.bf16.mxu0 0
        %1318 = vmatpush1.bf16.msra.mxu0 0
        %1319 = vmatprep.subr.bf16.mxu0 0
        %1320 = vmatpush1.bf16.msra.mxu0 0
        %1321 = vmatprep.subr.bf16.mxu0 0
        %1322 = vmatpush1.bf16.msra.mxu0 0
        %1323 = vmatprep.mubr.bf16.mxu0 0
        %1324 = vmatmul.mubr.bf16.gmra.mrb[0].mxu0 %v1286
        %v1325 = vpop.f32.mrb[0].mxu0
        %v1326 = vadd.f32 0.0, %v1325
        %v1327 = vpop.f32.mrb[0].mxu0
        %v1328 = vpop.f32.mrb[0].mxu0
        %v1329 = vpop.f32.mrb[0].mxu0
        %1330 = vdwg.mxu0
        %v1331 = vld [vmem:[#allocation2] sm:$0xff]
        %v1332 = vadd.f32 %v1331, %v1326
        %1333 = vst.msk [vmem:[#allocation2] sm:$0xff] %vm335, %v1332
        %s1334 = scalar_lea.vmem %s6, 256
        %v1335 = vld [vmem:[%s1334] sm:$0xf]
        %v1336 = vld [vmem:[%s1334 + $0x4] sm:$0xf]
        %v1337 = vld [vmem:[%s1334 + $0x8] sm:$0xf]
        %v1338 = vld [vmem:[%s1334 + $0xc] sm:$0xf]
        %v1339 = vld [vmem:[%s1334 + $0x10] sm:$0xf]
        %v1340 = vld [vmem:[%s1334 + $0x14] sm:$0xf]
        %v1341 = vld [vmem:[%s1334 + $0x18] sm:$0xf]
        %v1342 = vld [vmem:[%s1334 + $0x1c] sm:$0xf]
        %v1343 = vld [vmem:[%s1334 + $0x20] sm:$0xf]
        %v1344 = vld [vmem:[%s1334 + $0x24] sm:$0xf]
        %v1345 = vld [vmem:[%s1334 + $0x28] sm:$0xf]
        %v1346 = vld [vmem:[%s1334 + $0x2c] sm:$0xf]
        %v1347 = vld [vmem:[%s1334 + $0x30] sm:$0xf]
        %v1348 = vld [vmem:[%s1334 + $0x34] sm:$0xf]
        %v1349 = vld [vmem:[%s1334 + $0x38] sm:$0xf]
        %v1350 = vld [vmem:[%s1334 + $0x3c] sm:$0xf]
        %v1351 = vld [vmem:[%s1334 + $0x40] sm:$0xf]
        %v1352 = vld [vmem:[%s1334 + $0x44] sm:$0xf]
        %v1353 = vld [vmem:[%s1334 + $0x48] sm:$0xf]
        %v1354 = vld [vmem:[%s1334 + $0x4c] sm:$0xf]
        %v1355 = vld [vmem:[%s1334 + $0x50] sm:$0xf]
        %v1356 = vld [vmem:[%s1334 + $0x54] sm:$0xf]
        %v1357 = vld [vmem:[%s1334 + $0x58] sm:$0xf]
        %v1358 = vld [vmem:[%s1334 + $0x5c] sm:$0xf]
        %v1359 = vld [vmem:[%s1334 + $0x60] sm:$0xf]
        %v1360 = vld [vmem:[%s1334 + $0x64] sm:$0xf]
        %v1361 = vld [vmem:[%s1334 + $0x68] sm:$0xf]
        %v1362 = vld [vmem:[%s1334 + $0x6c] sm:$0xf]
        %v1363 = vld [vmem:[%s1334 + $0x70] sm:$0xf]
        %v1364 = vld [vmem:[%s1334 + $0x74] sm:$0xf]
        %v1365 = vld [vmem:[%s1334 + $0x78] sm:$0xf]
        %v1366 = vld [vmem:[%s1334 + $0x7c] sm:$0xf]
        %1367 = vrot.lane.b32.xlu0 %v379, 112
        %v1368 = vpop.permute.xlu0 %1367
        %v1401 = vunpack.c.l.b16 %v1335
        %v1402 = vunpack.c.l.b16 %v1336
        %v1403 = vunpack.c.l.b16 %v1337
        %v1404 = vunpack.c.l.b16 %v1338
        %v1405 = vunpack.c.l.b16 %v1339
        %v1406 = vunpack.c.l.b16 %v1340
        %v1407 = vunpack.c.l.b16 %v1341
        %v1408 = vunpack.c.l.b16 %v1342
        %v1409 = vunpack.c.l.b16 %v1343
        %v1410 = vunpack.c.l.b16 %v1344
        %v1411 = vunpack.c.l.b16 %v1345
        %v1412 = vunpack.c.l.b16 %v1346
        %v1413 = vunpack.c.l.b16 %v1347
        %v1414 = vunpack.c.l.b16 %v1348
        %v1415 = vunpack.c.l.b16 %v1349
        %v1416 = vunpack.c.l.b16 %v1350
        %v1417 = vunpack.c.l.b16 %v1351
        %v1418 = vunpack.c.l.b16 %v1352
        %v1419 = vunpack.c.l.b16 %v1353
        %v1420 = vunpack.c.l.b16 %v1354
        %v1421 = vunpack.c.l.b16 %v1355
        %v1422 = vunpack.c.l.b16 %v1356
        %v1423 = vunpack.c.l.b16 %v1357
        %v1424 = vunpack.c.l.b16 %v1358
        %v1425 = vunpack.c.l.b16 %v1359
        %v1426 = vunpack.c.l.b16 %v1360
        %v1427 = vunpack.c.l.b16 %v1361
        %v1428 = vunpack.c.l.b16 %v1362
        %v1429 = vunpack.c.l.b16 %v1363
        %v1430 = vunpack.c.l.b16 %v1364
        %v1431 = vunpack.c.l.b16 %v1365
        %v1432 = vunpack.c.l.b16 %v1366
        %v1433 = vpack.c.b16 %v1402, %v1401
        %v1434 = vpack.c.b16 %v1404, %v1403
        %v1435 = vpack.c.b16 %v1406, %v1405
        %v1436 = vpack.c.b16 %v1408, %v1407
        %v1437 = vpack.c.b16 %v1410, %v1409
        %v1438 = vpack.c.b16 %v1412, %v1411
        %v1439 = vpack.c.b16 %v1414, %v1413
        %v1440 = vpack.c.b16 %v1416, %v1415
        %v1441 = vpack.c.b16 %v1418, %v1417
        %v1442 = vpack.c.b16 %v1420, %v1419
        %v1443 = vpack.c.b16 %v1422, %v1421
        %v1444 = vpack.c.b16 %v1424, %v1423
        %v1445 = vpack.c.b16 %v1426, %v1425
        %v1446 = vpack.c.b16 %v1428, %v1427
        %v1447 = vpack.c.b16 %v1430, %v1429
        %v1448 = vpack.c.b16 %v1432, %v1431
        %v1450 = vsel %vm609, %v1368, 0
        %v1453 = vsel %vm609, %v1433, 0
        %v1456 = vsel %vm609, %v1434, 0
        %v1459 = vsel %vm609, %v1435, 0
        %v1462 = vsel %vm609, %v1436, 0
        %v1465 = vsel %vm609, %v1437, 0
        %v1468 = vsel %vm609, %v1438, 0
        %v1471 = vsel %vm609, %v1439, 0
        %v1474 = vsel %vm609, %v1440, 0
        %v1477 = vsel %vm609, %v1441, 0
        %v1480 = vsel %vm609, %v1442, 0
        %v1483 = vsel %vm609, %v1443, 0
        %v1486 = vsel %vm609, %v1444, 0
        %v1489 = vsel %vm609, %v1445, 0
        %v1492 = vsel %vm609, %v1446, 0
        %v1495 = vsel %vm609, %v1447, 0
        %v1498 = vsel %vm609, %v1448, 0
        %1500 = vmatprep.subr.bf16.mxu0 0
        %1501 = vmatpush1.bf16.xpose.msra.mxu0 %v1453
        %1502 = vmatprep.subr.bf16.mxu0 0
        %1503 = vmatpush1.bf16.xpose.msra.mxu0 %v1456
        %1504 = vmatprep.subr.bf16.mxu0 0
        %1505 = vmatpush1.bf16.xpose.msra.mxu0 %v1459
        %1506 = vmatprep.subr.bf16.mxu0 0
        %1507 = vmatpush1.bf16.xpose.msra.mxu0 %v1462
        %1508 = vmatprep.subr.bf16.mxu0 0
        %1509 = vmatpush1.bf16.xpose.msra.mxu0 %v1465
        %1510 = vmatprep.subr.bf16.mxu0 0
        %1511 = vmatpush1.bf16.xpose.msra.mxu0 %v1468
        %1512 = vmatprep.subr.bf16.mxu0 0
        %1513 = vmatpush1.bf16.xpose.msra.mxu0 %v1471
        %1514 = vmatprep.subr.bf16.mxu0 0
        %1515 = vmatpush1.bf16.xpose.msra.mxu0 %v1474
        %1516 = vmatprep.subr.bf16.mxu0 0
        %1517 = vmatpush1.bf16.xpose.msra.mxu0 %v1477
        %1518 = vmatprep.subr.bf16.mxu0 0
        %1519 = vmatpush1.bf16.xpose.msra.mxu0 %v1480
        %1520 = vmatprep.subr.bf16.mxu0 0
        %1521 = vmatpush1.bf16.xpose.msra.mxu0 %v1483
        %1522 = vmatprep.subr.bf16.mxu0 0
        %1523 = vmatpush1.bf16.xpose.msra.mxu0 %v1486
        %1524 = vmatprep.subr.bf16.mxu0 0
        %1525 = vmatpush1.bf16.xpose.msra.mxu0 %v1489
        %1526 = vmatprep.subr.bf16.mxu0 0
        %1527 = vmatpush1.bf16.xpose.msra.mxu0 %v1492
        %1528 = vmatprep.subr.bf16.mxu0 0
        %1529 = vmatpush1.bf16.xpose.msra.mxu0 %v1495
        %1530 = vmatprep.subr.bf16.mxu0 0
        %1531 = vmatpush1.bf16.xpose.msra.mxu0 %v1498
        %1532 = vmatprep.mubr.bf16.mxu0 0
        %1533 = vmatmul.mubr.bf16.gmra.mrb[0].mxu0 %v1450
        %v1534 = vpop.f32.mrb[0].mxu0
        %v1535 = vadd.f32 0.0, %v1534
        %v1536 = vpop.f32.mrb[0].mxu0
        %v1537 = vadd.f32 0.0, %v1536
        %v1538 = vpop.f32.mrb[0].mxu0
        %v1539 = vpop.f32.mrb[0].mxu0
        %1540 = vdwg.mxu0
        %1543 = vrot.lane.b32.xlu0 %v1535, 1
        %v1544 = vpop.permute.xlu0 %1543
        %1545 = vrot.lane.b32.xlu0 %v1537, 1
        %v1546 = vpop.permute.xlu0 %1545
        %v1547 = vsel %vm708, %v1544, %v1546
        %1549 = vrot.lane.b32.xlu0 %v1535, 2
        %v1550 = vpop.permute.xlu0 %1549
        %1551 = vrot.lane.b32.xlu0 %v1537, 2
        %v1552 = vpop.permute.xlu0 %1551
        %v1553 = vsel %vm715, %v1550, %v1552
        %1555 = vrot.lane.b32.xlu0 %v1535, 3
        %v1556 = vpop.permute.xlu0 %1555
        %1557 = vrot.lane.b32.xlu0 %v1537, 3
        %v1558 = vpop.permute.xlu0 %1557
        %v1559 = vsel %vm722, %v1556, %v1558
        %1561 = vrot.lane.b32.xlu0 %v1535, 4
        %v1562 = vpop.permute.xlu0 %1561
        %1563 = vrot.lane.b32.xlu0 %v1537, 4
        %v1564 = vpop.permute.xlu0 %1563
        %v1565 = vsel %vm729, %v1562, %v1564
        %1567 = vrot.lane.b32.xlu0 %v1535, 5
        %v1568 = vpop.permute.xlu0 %1567
        %1569 = vrot.lane.b32.xlu0 %v1537, 5
        %v1570 = vpop.permute.xlu0 %1569
        %v1571 = vsel %vm736, %v1568, %v1570
        %1573 = vrot.lane.b32.xlu0 %v1535, 6
        %v1574 = vpop.permute.xlu0 %1573
        %1575 = vrot.lane.b32.xlu0 %v1537, 6
        %v1576 = vpop.permute.xlu0 %1575
        %v1577 = vsel %vm743, %v1574, %v1576
        %1579 = vrot.lane.b32.xlu0 %v1535, 7
        %v1580 = vpop.permute.xlu0 %1579
        %1581 = vrot.lane.b32.xlu0 %v1537, 7
        %v1582 = vpop.permute.xlu0 %1581
        %v1583 = vsel %vm750, %v1580, %v1582
        %v1585 = vsel %vm753, %v1537, %v1547
        %v1586 = vsel %vm755, %v1585, %v1553
        %v1587 = vsel %vm757, %v1586, %v1559
        %v1588 = vsel %vm759, %v1587, %v1565
        %v1589 = vsel %vm761, %v1588, %v1571
        %v1590 = vsel %vm763, %v1589, %v1577
        %v1591 = vsel %vm765, %v1590, %v1583
        %1592 = vrot.lane.b32.xlu0 %v439, 112
        %v1593 = vpop.permute.xlu0 %1592
        %v1595 = vsel %vm609, %v1593, 0
        %1597 = vmatprep.subr.bf16.mxu0 0
        %1598 = vmatpush1.bf16.xpose.msra.mxu0 %v1595
        %1599 = vmatprep.subr.bf16.mxu0 0
        %1600 = vmatpush1.bf16.xpose.msra.mxu0 0
        %1601 = vmatprep.subr.bf16.mxu0 0
        %1602 = vmatpush1.bf16.xpose.msra.mxu0 0
        %1603 = vmatprep.subr.bf16.mxu0 0
        %1604 = vmatpush1.bf16.xpose.msra.mxu0 0
        %1605 = vmatprep.subr.bf16.mxu0 0
        %1606 = vmatpush1.bf16.xpose.msra.mxu0 0
        %1607 = vmatprep.subr.bf16.mxu0 0
        %1608 = vmatpush1.bf16.xpose.msra.mxu0 0
        %1609 = vmatprep.subr.bf16.mxu0 0
        %1610 = vmatpush1.bf16.xpose.msra.mxu0 0
        %1611 = vmatprep.subr.bf16.mxu0 0
        %1612 = vmatpush1.bf16.xpose.msra.mxu0 0
        %1613 = vmatprep.subr.bf16.mxu0 0
        %1614 = vmatpush1.bf16.xpose.msra.mxu0 0
        %1615 = vmatprep.subr.bf16.mxu0 0
        %1616 = vmatpush1.bf16.xpose.msra.mxu0 0
        %1617 = vmatprep.subr.bf16.mxu0 0
        %1618 = vmatpush1.bf16.xpose.msra.mxu0 0
        %1619 = vmatprep.subr.bf16.mxu0 0
        %1620 = vmatpush1.bf16.xpose.msra.mxu0 0
        %1621 = vmatprep.subr.bf16.mxu0 0
        %1622 = vmatpush1.bf16.xpose.msra.mxu0 0
        %1623 = vmatprep.subr.bf16.mxu0 0
        %1624 = vmatpush1.bf16.xpose.msra.mxu0 0
        %1625 = vmatprep.subr.bf16.mxu0 0
        %1626 = vmatpush1.bf16.xpose.msra.mxu0 0
        %1627 = vmatprep.subr.bf16.mxu0 0
        %1628 = vmatpush1.bf16.xpose.msra.mxu0 0
        %1629 = vmatprep.mubr.bf16.mxu0 0
        %1630 = vmatmul.mubr.bf16.gmra.mrb[0].mxu0 %v1450
        %v1631 = vpop.f32.mrb[0].mxu0
        %v1632 = vadd.f32 %v1591, %v1631
        %v1633 = vpop.f32.mrb[0].mxu0
        %v1634 = vpop.f32.mrb[0].mxu0
        %v1635 = vpop.f32.mrb[0].mxu0
        %1636 = vdwg.mxu0
        %v1637 = vsel %vm609, %v1632, -inf
        %1638 = vmax.xlane.f32.xlu0 %v1637
        %v1639 = vpop.xlane.xlu0 %1638
        %v1640 = vsub.f32 %v1632, %v1639
        %v1641 = vmul.f32 %v1640, 1.442695
        %v1642 = vpow.pop %v1641
        %v1643 = vsel %vm609, %v1642, 0.0
        %1644 = vadd.xlane.f32.xlu0 %v1643
        %v1645 = vpop.xlane.xlu0 %1644
        %v1646 = vpack.c.bf16 %v1642, %v1642
        %1647 = vrot.lane.b32.xlu0 %v496, 112
        %v1648 = vpop.permute.xlu0 %1647
        %v1650 = vsel %vm609, %v1646, 0
        %v1653 = vsel %vm759, %v1648, 0
        %1655 = vmatprep.subr.bf16.mxu0 0
        %1656 = vmatpush1.bf16.msra.mxu0 %v1653
        %1657 = vmatprep.subr.bf16.mxu0 0
        %1658 = vmatpush1.bf16.msra.mxu0 0
        %1659 = vmatprep.subr.bf16.mxu0 0
        %1660 = vmatpush1.bf16.msra.mxu0 0
        %1661 = vmatprep.subr.bf16.mxu0 0
        %1662 = vmatpush1.bf16.msra.mxu0 0
        %1663 = vmatprep.subr.bf16.mxu0 0
        %1664 = vmatpush1.bf16.msra.mxu0 0
        %1665 = vmatprep.subr.bf16.mxu0 0
        %1666 = vmatpush1.bf16.msra.mxu0 0
        %1667 = vmatprep.subr.bf16.mxu0 0
        %1668 = vmatpush1.bf16.msra.mxu0 0
        %1669 = vmatprep.subr.bf16.mxu0 0
        %1670 = vmatpush1.bf16.msra.mxu0 0
        %1671 = vmatprep.subr.bf16.mxu0 0
        %1672 = vmatpush1.bf16.msra.mxu0 0
        %1673 = vmatprep.subr.bf16.mxu0 0
        %1674 = vmatpush1.bf16.msra.mxu0 0
        %1675 = vmatprep.subr.bf16.mxu0 0
        %1676 = vmatpush1.bf16.msra.mxu0 0
        %1677 = vmatprep.subr.bf16.mxu0 0
        %1678 = vmatpush1.bf16.msra.mxu0 0
        %1679 = vmatprep.subr.bf16.mxu0 0
        %1680 = vmatpush1.bf16.msra.mxu0 0
        %1681 = vmatprep.subr.bf16.mxu0 0
        %1682 = vmatpush1.bf16.msra.mxu0 0
        %1683 = vmatprep.subr.bf16.mxu0 0
        %1684 = vmatpush1.bf16.msra.mxu0 0
        %1685 = vmatprep.subr.bf16.mxu0 0
        %1686 = vmatpush1.bf16.msra.mxu0 0
        %1687 = vmatprep.mubr.bf16.mxu0 0
        %1688 = vmatmul.mubr.bf16.gmra.mrb[0].mxu0 %v1650
        %v1689 = vpop.f32.mrb[0].mxu0
        %v1690 = vadd.f32 0.0, %v1689
        %v1691 = vpop.f32.mrb[0].mxu0
        %v1692 = vpop.f32.mrb[0].mxu0
        %v1693 = vpop.f32.mrb[0].mxu0
        %1694 = vdwg.mxu0
        %v1695 = vrcp.pop %v1645
        %v1696 = vmul.f32 %v1690, %v1695
        %v1697 = vpack.c.bf16 %v1696, %v1696
        %v1698 = vld [vmem:[%s5 + $0x8] sm:$0xf]
        %v1700 = vsel %vm609, %v1697, 0
        %v1703 = vsel %vm759, %v1698, 0
        %1705 = vmatprep.subr.bf16.mxu0 0
        %1706 = vmatpush1.bf16.msra.mxu0 %v1703
        %1707 = vmatprep.subr.bf16.mxu0 0
        %1708 = vmatpush1.bf16.msra.mxu0 0
        %1709 = vmatprep.subr.bf16.mxu0 0
        %1710 = vmatpush1.bf16.msra.mxu0 0
        %1711 = vmatprep.subr.bf16.mxu0 0
        %1712 = vmatpush1.bf16.msra.mxu0 0
        %1713 = vmatprep.subr.bf16.mxu0 0
        %1714 = vmatpush1.bf16.msra.mxu0 0
        %1715 = vmatprep.subr.bf16.mxu0 0
        %1716 = vmatpush1.bf16.msra.mxu0 0
        %1717 = vmatprep.subr.bf16.mxu0 0
        %1718 = vmatpush1.bf16.msra.mxu0 0
        %1719 = vmatprep.subr.bf16.mxu0 0
        %1720 = vmatpush1.bf16.msra.mxu0 0
        %1721 = vmatprep.subr.bf16.mxu0 0
        %1722 = vmatpush1.bf16.msra.mxu0 0
        %1723 = vmatprep.subr.bf16.mxu0 0
        %1724 = vmatpush1.bf16.msra.mxu0 0
        %1725 = vmatprep.subr.bf16.mxu0 0
        %1726 = vmatpush1.bf16.msra.mxu0 0
        %1727 = vmatprep.subr.bf16.mxu0 0
        %1728 = vmatpush1.bf16.msra.mxu0 0
        %1729 = vmatprep.subr.bf16.mxu0 0
        %1730 = vmatpush1.bf16.msra.mxu0 0
        %1731 = vmatprep.subr.bf16.mxu0 0
        %1732 = vmatpush1.bf16.msra.mxu0 0
        %1733 = vmatprep.subr.bf16.mxu0 0
        %1734 = vmatpush1.bf16.msra.mxu0 0
        %1735 = vmatprep.subr.bf16.mxu0 0
        %1736 = vmatpush1.bf16.msra.mxu0 0
        %1737 = vmatprep.mubr.bf16.mxu0 0
        %1738 = vmatmul.mubr.bf16.gmra.mrb[0].mxu0 %v1700
        %v1739 = vpop.f32.mrb[0].mxu0
        %v1740 = vadd.f32 0.0, %v1739
        %v1741 = vpop.f32.mrb[0].mxu0
        %v1742 = vpop.f32.mrb[0].mxu0
        %v1743 = vpop.f32.mrb[0].mxu0
        %1744 = vdwg.mxu0
        %v1745 = vld [vmem:[#allocation2] sm:$0xff]
        %v1746 = vadd.f32 %v1745, %v1740
        %1747 = vst.msk [vmem:[#allocation2] sm:$0xff] %vm335, %v1746
        %s1748 = scalar_lea.vmem %s6, 384
        %v1749 = vld [vmem:[%s1748] sm:$0xf]
        %v1750 = vld [vmem:[%s1748 + $0x4] sm:$0xf]
        %v1751 = vld [vmem:[%s1748 + $0x8] sm:$0xf]
        %v1752 = vld [vmem:[%s1748 + $0xc] sm:$0xf]
        %v1753 = vld [vmem:[%s1748 + $0x10] sm:$0xf]
        %v1754 = vld [vmem:[%s1748 + $0x14] sm:$0xf]
        %v1755 = vld [vmem:[%s1748 + $0x18] sm:$0xf]
        %v1756 = vld [vmem:[%s1748 + $0x1c] sm:$0xf]
        %v1757 = vld [vmem:[%s1748 + $0x20] sm:$0xf]
        %v1758 = vld [vmem:[%s1748 + $0x24] sm:$0xf]
        %v1759 = vld [vmem:[%s1748 + $0x28] sm:$0xf]
        %v1760 = vld [vmem:[%s1748 + $0x2c] sm:$0xf]
        %v1761 = vld [vmem:[%s1748 + $0x30] sm:$0xf]
        %v1762 = vld [vmem:[%s1748 + $0x34] sm:$0xf]
        %v1763 = vld [vmem:[%s1748 + $0x38] sm:$0xf]
        %v1764 = vld [vmem:[%s1748 + $0x3c] sm:$0xf]
        %v1765 = vld [vmem:[%s1748 + $0x40] sm:$0xf]
        %v1766 = vld [vmem:[%s1748 + $0x44] sm:$0xf]
        %v1767 = vld [vmem:[%s1748 + $0x48] sm:$0xf]
        %v1768 = vld [vmem:[%s1748 + $0x4c] sm:$0xf]
        %v1769 = vld [vmem:[%s1748 + $0x50] sm:$0xf]
        %v1770 = vld [vmem:[%s1748 + $0x54] sm:$0xf]
        %v1771 = vld [vmem:[%s1748 + $0x58] sm:$0xf]
        %v1772 = vld [vmem:[%s1748 + $0x5c] sm:$0xf]
        %v1773 = vld [vmem:[%s1748 + $0x60] sm:$0xf]
        %v1774 = vld [vmem:[%s1748 + $0x64] sm:$0xf]
        %v1775 = vld [vmem:[%s1748 + $0x68] sm:$0xf]
        %v1776 = vld [vmem:[%s1748 + $0x6c] sm:$0xf]
        %v1777 = vld [vmem:[%s1748 + $0x70] sm:$0xf]
        %v1778 = vld [vmem:[%s1748 + $0x74] sm:$0xf]
        %v1779 = vld [vmem:[%s1748 + $0x78] sm:$0xf]
        %v1780 = vld [vmem:[%s1748 + $0x7c] sm:$0xf]
        %1781 = vrot.lane.b32.xlu0 %v379, 104
        %v1782 = vpop.permute.xlu0 %1781
        %v1815 = vunpack.c.l.b16 %v1749
        %v1816 = vunpack.c.l.b16 %v1750
        %v1817 = vunpack.c.l.b16 %v1751
        %v1818 = vunpack.c.l.b16 %v1752
        %v1819 = vunpack.c.l.b16 %v1753
        %v1820 = vunpack.c.l.b16 %v1754
        %v1821 = vunpack.c.l.b16 %v1755
        %v1822 = vunpack.c.l.b16 %v1756
        %v1823 = vunpack.c.l.b16 %v1757
        %v1824 = vunpack.c.l.b16 %v1758
        %v1825 = vunpack.c.l.b16 %v1759
        %v1826 = vunpack.c.l.b16 %v1760
        %v1827 = vunpack.c.l.b16 %v1761
        %v1828 = vunpack.c.l.b16 %v1762
        %v1829 = vunpack.c.l.b16 %v1763
        %v1830 = vunpack.c.l.b16 %v1764
        %v1831 = vunpack.c.l.b16 %v1765
        %v1832 = vunpack.c.l.b16 %v1766
        %v1833 = vunpack.c.l.b16 %v1767
        %v1834 = vunpack.c.l.b16 %v1768
        %v1835 = vunpack.c.l.b16 %v1769
        %v1836 = vunpack.c.l.b16 %v1770
        %v1837 = vunpack.c.l.b16 %v1771
        %v1838 = vunpack.c.l.b16 %v1772
        %v1839 = vunpack.c.l.b16 %v1773
        %v1840 = vunpack.c.l.b16 %v1774
        %v1841 = vunpack.c.l.b16 %v1775
        %v1842 = vunpack.c.l.b16 %v1776
        %v1843 = vunpack.c.l.b16 %v1777
        %v1844 = vunpack.c.l.b16 %v1778
        %v1845 = vunpack.c.l.b16 %v1779
        %v1846 = vunpack.c.l.b16 %v1780
        %v1847 = vpack.c.b16 %v1816, %v1815
        %v1848 = vpack.c.b16 %v1818, %v1817
        %v1849 = vpack.c.b16 %v1820, %v1819
        %v1850 = vpack.c.b16 %v1822, %v1821
        %v1851 = vpack.c.b16 %v1824, %v1823
        %v1852 = vpack.c.b16 %v1826, %v1825
        %v1853 = vpack.c.b16 %v1828, %v1827
        %v1854 = vpack.c.b16 %v1830, %v1829
        %v1855 = vpack.c.b16 %v1832, %v1831
        %v1856 = vpack.c.b16 %v1834, %v1833
        %v1857 = vpack.c.b16 %v1836, %v1835
        %v1858 = vpack.c.b16 %v1838, %v1837
        %v1859 = vpack.c.b16 %v1840, %v1839
        %v1860 = vpack.c.b16 %v1842, %v1841
        %v1861 = vpack.c.b16 %v1844, %v1843
        %v1862 = vpack.c.b16 %v1846, %v1845
        %v1864 = vsel %vm609, %v1782, 0
        %v1867 = vsel %vm609, %v1847, 0
        %v1870 = vsel %vm609, %v1848, 0
        %v1873 = vsel %vm609, %v1849, 0
        %v1876 = vsel %vm609, %v1850, 0
        %v1879 = vsel %vm609, %v1851, 0
        %v1882 = vsel %vm609, %v1852, 0
        %v1885 = vsel %vm609, %v1853, 0
        %v1888 = vsel %vm609, %v1854, 0
        %v1891 = vsel %vm609, %v1855, 0
        %v1894 = vsel %vm609, %v1856, 0
        %v1897 = vsel %vm609, %v1857, 0
        %v1900 = vsel %vm609, %v1858, 0
        %v1903 = vsel %vm609, %v1859, 0
        %v1906 = vsel %vm609, %v1860, 0
        %v1909 = vsel %vm609, %v1861, 0
        %v1912 = vsel %vm609, %v1862, 0
        %1914 = vmatprep.subr.bf16.mxu0 0
        %1915 = vmatpush1.bf16.xpose.msra.mxu0 %v1867
        %1916 = vmatprep.subr.bf16.mxu0 0
        %1917 = vmatpush1.bf16.xpose.msra.mxu0 %v1870
        %1918 = vmatprep.subr.bf16.mxu0 0
        %1919 = vmatpush1.bf16.xpose.msra.mxu0 %v1873
        %1920 = vmatprep.subr.bf16.mxu0 0
        %1921 = vmatpush1.bf16.xpose.msra.mxu0 %v1876
        %1922 = vmatprep.subr.bf16.mxu0 0
        %1923 = vmatpush1.bf16.xpose.msra.mxu0 %v1879
        %1924 = vmatprep.subr.bf16.mxu0 0
        %1925 = vmatpush1.bf16.xpose.msra.mxu0 %v1882
        %1926 = vmatprep.subr.bf16.mxu0 0
        %1927 = vmatpush1.bf16.xpose.msra.mxu0 %v1885
        %1928 = vmatprep.subr.bf16.mxu0 0
        %1929 = vmatpush1.bf16.xpose.msra.mxu0 %v1888
        %1930 = vmatprep.subr.bf16.mxu0 0
        %1931 = vmatpush1.bf16.xpose.msra.mxu0 %v1891
        %1932 = vmatprep.subr.bf16.mxu0 0
        %1933 = vmatpush1.bf16.xpose.msra.mxu0 %v1894
        %1934 = vmatprep.subr.bf16.mxu0 0
        %1935 = vmatpush1.bf16.xpose.msra.mxu0 %v1897
        %1936 = vmatprep.subr.bf16.mxu0 0
        %1937 = vmatpush1.bf16.xpose.msra.mxu0 %v1900
        %1938 = vmatprep.subr.bf16.mxu0 0
        %1939 = vmatpush1.bf16.xpose.msra.mxu0 %v1903
        %1940 = vmatprep.subr.bf16.mxu0 0
        %1941 = vmatpush1.bf16.xpose.msra.mxu0 %v1906
        %1942 = vmatprep.subr.bf16.mxu0 0
        %1943 = vmatpush1.bf16.xpose.msra.mxu0 %v1909
        %1944 = vmatprep.subr.bf16.mxu0 0
        %1945 = vmatpush1.bf16.xpose.msra.mxu0 %v1912
        %1946 = vmatprep.mubr.bf16.mxu0 0
        %1947 = vmatmul.mubr.bf16.gmra.mrb[0].mxu0 %v1864
        %v1948 = vpop.f32.mrb[0].mxu0
        %v1949 = vadd.f32 0.0, %v1948
        %v1950 = vpop.f32.mrb[0].mxu0
        %v1951 = vadd.f32 0.0, %v1950
        %v1952 = vpop.f32.mrb[0].mxu0
        %v1953 = vpop.f32.mrb[0].mxu0
        %1954 = vdwg.mxu0
        %1957 = vrot.lane.b32.xlu0 %v1949, 1
        %v1958 = vpop.permute.xlu0 %1957
        %1959 = vrot.lane.b32.xlu0 %v1951, 1
        %v1960 = vpop.permute.xlu0 %1959
        %v1961 = vsel %vm708, %v1958, %v1960
        %1963 = vrot.lane.b32.xlu0 %v1949, 2
        %v1964 = vpop.permute.xlu0 %1963
        %1965 = vrot.lane.b32.xlu0 %v1951, 2
        %v1966 = vpop.permute.xlu0 %1965
        %v1967 = vsel %vm715, %v1964, %v1966
        %1969 = vrot.lane.b32.xlu0 %v1949, 3
        %v1970 = vpop.permute.xlu0 %1969
        %1971 = vrot.lane.b32.xlu0 %v1951, 3
        %v1972 = vpop.permute.xlu0 %1971
        %v1973 = vsel %vm722, %v1970, %v1972
        %1975 = vrot.lane.b32.xlu0 %v1949, 4
        %v1976 = vpop.permute.xlu0 %1975
        %1977 = vrot.lane.b32.xlu0 %v1951, 4
        %v1978 = vpop.permute.xlu0 %1977
        %v1979 = vsel %vm729, %v1976, %v1978
        %1981 = vrot.lane.b32.xlu0 %v1949, 5
        %v1982 = vpop.permute.xlu0 %1981
        %1983 = vrot.lane.b32.xlu0 %v1951, 5
        %v1984 = vpop.permute.xlu0 %1983
        %v1985 = vsel %vm736, %v1982, %v1984
        %1987 = vrot.lane.b32.xlu0 %v1949, 6
        %v1988 = vpop.permute.xlu0 %1987
        %1989 = vrot.lane.b32.xlu0 %v1951, 6
        %v1990 = vpop.permute.xlu0 %1989
        %v1991 = vsel %vm743, %v1988, %v1990
        %1993 = vrot.lane.b32.xlu0 %v1949, 7
        %v1994 = vpop.permute.xlu0 %1993
        %1995 = vrot.lane.b32.xlu0 %v1951, 7
        %v1996 = vpop.permute.xlu0 %1995
        %v1997 = vsel %vm750, %v1994, %v1996
        %v1999 = vsel %vm753, %v1951, %v1961
        %v2000 = vsel %vm755, %v1999, %v1967
        %v2001 = vsel %vm757, %v2000, %v1973
        %v2002 = vsel %vm759, %v2001, %v1979
        %v2003 = vsel %vm761, %v2002, %v1985
        %v2004 = vsel %vm763, %v2003, %v1991
        %v2005 = vsel %vm765, %v2004, %v1997
        %2006 = vrot.lane.b32.xlu0 %v439, 104
        %v2007 = vpop.permute.xlu0 %2006
        %v2009 = vsel %vm609, %v2007, 0
        %2011 = vmatprep.subr.bf16.mxu0 0
        %2012 = vmatpush1.bf16.xpose.msra.mxu0 %v2009
        %2013 = vmatprep.subr.bf16.mxu0 0
        %2014 = vmatpush1.bf16.xpose.msra.mxu0 0
        %2015 = vmatprep.subr.bf16.mxu0 0
        %2016 = vmatpush1.bf16.xpose.msra.mxu0 0
        %2017 = vmatprep.subr.bf16.mxu0 0
        %2018 = vmatpush1.bf16.xpose.msra.mxu0 0
        %2019 = vmatprep.subr.bf16.mxu0 0
        %2020 = vmatpush1.bf16.xpose.msra.mxu0 0
        %2021 = vmatprep.subr.bf16.mxu0 0
        %2022 = vmatpush1.bf16.xpose.msra.mxu0 0
        %2023 = vmatprep.subr.bf16.mxu0 0
        %2024 = vmatpush1.bf16.xpose.msra.mxu0 0
        %2025 = vmatprep.subr.bf16.mxu0 0
        %2026 = vmatpush1.bf16.xpose.msra.mxu0 0
        %2027 = vmatprep.subr.bf16.mxu0 0
        %2028 = vmatpush1.bf16.xpose.msra.mxu0 0
        %2029 = vmatprep.subr.bf16.mxu0 0
        %2030 = vmatpush1.bf16.xpose.msra.mxu0 0
        %2031 = vmatprep.subr.bf16.mxu0 0
        %2032 = vmatpush1.bf16.xpose.msra.mxu0 0
        %2033 = vmatprep.subr.bf16.mxu0 0
        %2034 = vmatpush1.bf16.xpose.msra.mxu0 0
        %2035 = vmatprep.subr.bf16.mxu0 0
        %2036 = vmatpush1.bf16.xpose.msra.mxu0 0
        %2037 = vmatprep.subr.bf16.mxu0 0
        %2038 = vmatpush1.bf16.xpose.msra.mxu0 0
        %2039 = vmatprep.subr.bf16.mxu0 0
        %2040 = vmatpush1.bf16.xpose.msra.mxu0 0
        %2041 = vmatprep.subr.bf16.mxu0 0
        %2042 = vmatpush1.bf16.xpose.msra.mxu0 0
        %2043 = vmatprep.mubr.bf16.mxu0 0
        %2044 = vmatmul.mubr.bf16.gmra.mrb[0].mxu0 %v1864
        %v2045 = vpop.f32.mrb[0].mxu0
        %v2046 = vadd.f32 %v2005, %v2045
        %v2047 = vpop.f32.mrb[0].mxu0
        %v2048 = vpop.f32.mrb[0].mxu0
        %v2049 = vpop.f32.mrb[0].mxu0
        %2050 = vdwg.mxu0
        %v2051 = vsel %vm609, %v2046, -inf
        %2052 = vmax.xlane.f32.xlu0 %v2051
        %v2053 = vpop.xlane.xlu0 %2052
        %v2054 = vsub.f32 %v2046, %v2053
        %v2055 = vmul.f32 %v2054, 1.442695
        %v2056 = vpow.pop %v2055
        %v2057 = vsel %vm609, %v2056, 0.0
        %2058 = vadd.xlane.f32.xlu0 %v2057
        %v2059 = vpop.xlane.xlu0 %2058
        %v2060 = vpack.c.bf16 %v2056, %v2056
        %2061 = vrot.lane.b32.xlu0 %v496, 104
        %v2062 = vpop.permute.xlu0 %2061
        %v2064 = vsel %vm609, %v2060, 0
        %v2067 = vsel %vm759, %v2062, 0
        %2069 = vmatprep.subr.bf16.mxu0 0
        %2070 = vmatpush1.bf16.msra.mxu0 %v2067
        %2071 = vmatprep.subr.bf16.mxu0 0
        %2072 = vmatpush1.bf16.msra.mxu0 0
        %2073 = vmatprep.subr.bf16.mxu0 0
        %2074 = vmatpush1.bf16.msra.mxu0 0
        %2075 = vmatprep.subr.bf16.mxu0 0
        %2076 = vmatpush1.bf16.msra.mxu0 0
        %2077 = vmatprep.subr.bf16.mxu0 0
        %2078 = vmatpush1.bf16.msra.mxu0 0
        %2079 = vmatprep.subr.bf16.mxu0 0
        %2080 = vmatpush1.bf16.msra.mxu0 0
        %2081 = vmatprep.subr.bf16.mxu0 0
        %2082 = vmatpush1.bf16.msra.mxu0 0
        %2083 = vmatprep.subr.bf16.mxu0 0
        %2084 = vmatpush1.bf16.msra.mxu0 0
        %2085 = vmatprep.subr.bf16.mxu0 0
        %2086 = vmatpush1.bf16.msra.mxu0 0
        %2087 = vmatprep.subr.bf16.mxu0 0
        %2088 = vmatpush1.bf16.msra.mxu0 0
        %2089 = vmatprep.subr.bf16.mxu0 0
        %2090 = vmatpush1.bf16.msra.mxu0 0
        %2091 = vmatprep.subr.bf16.mxu0 0
        %2092 = vmatpush1.bf16.msra.mxu0 0
        %2093 = vmatprep.subr.bf16.mxu0 0
        %2094 = vmatpush1.bf16.msra.mxu0 0
        %2095 = vmatprep.subr.bf16.mxu0 0
        %2096 = vmatpush1.bf16.msra.mxu0 0
        %2097 = vmatprep.subr.bf16.mxu0 0
        %2098 = vmatpush1.bf16.msra.mxu0 0
        %2099 = vmatprep.subr.bf16.mxu0 0
        %2100 = vmatpush1.bf16.msra.mxu0 0
        %2101 = vmatprep.mubr.bf16.mxu0 0
        %2102 = vmatmul.mubr.bf16.gmra.mrb[0].mxu0 %v2064
        %v2103 = vpop.f32.mrb[0].mxu0
        %v2104 = vadd.f32 0.0, %v2103
        %v2105 = vpop.f32.mrb[0].mxu0
        %v2106 = vpop.f32.mrb[0].mxu0
        %v2107 = vpop.f32.mrb[0].mxu0
        %2108 = vdwg.mxu0
        %v2109 = vrcp.pop %v2059
        %v2110 = vmul.f32 %v2104, %v2109
        %v2111 = vpack.c.bf16 %v2110, %v2110
        %v2112 = vld [vmem:[%s5 + $0xc] sm:$0xf]
        %v2114 = vsel %vm609, %v2111, 0
        %v2117 = vsel %vm759, %v2112, 0
        %2119 = vmatprep.subr.bf16.mxu0 0
        %2120 = vmatpush1.bf16.msra.mxu0 %v2117
        %2121 = vmatprep.subr.bf16.mxu0 0
        %2122 = vmatpush1.bf16.msra.mxu0 0
        %2123 = vmatprep.subr.bf16.mxu0 0
        %2124 = vmatpush1.bf16.msra.mxu0 0
        %2125 = vmatprep.subr.bf16.mxu0 0
        %2126 = vmatpush1.bf16.msra.mxu0 0
        %2127 = vmatprep.subr.bf16.mxu0 0
        %2128 = vmatpush1.bf16.msra.mxu0 0
        %2129 = vmatprep.subr.bf16.mxu0 0
        %2130 = vmatpush1.bf16.msra.mxu0 0
        %2131 = vmatprep.subr.bf16.mxu0 0
        %2132 = vmatpush1.bf16.msra.mxu0 0
        %2133 = vmatprep.subr.bf16.mxu0 0
        %2134 = vmatpush1.bf16.msra.mxu0 0
        %2135 = vmatprep.subr.bf16.mxu0 0
        %2136 = vmatpush1.bf16.msra.mxu0 0
        %2137 = vmatprep.subr.bf16.mxu0 0
        %2138 = vmatpush1.bf16.msra.mxu0 0
        %2139 = vmatprep.subr.bf16.mxu0 0
        %2140 = vmatpush1.bf16.msra.mxu0 0
        %2141 = vmatprep.subr.bf16.mxu0 0
        %2142 = vmatpush1.bf16.msra.mxu0 0
        %2143 = vmatprep.subr.bf16.mxu0 0
        %2144 = vmatpush1.bf16.msra.mxu0 0
        %2145 = vmatprep.subr.bf16.mxu0 0
        %2146 = vmatpush1.bf16.msra.mxu0 0
        %2147 = vmatprep.subr.bf16.mxu0 0
        %2148 = vmatpush1.bf16.msra.mxu0 0
        %2149 = vmatprep.subr.bf16.mxu0 0
        %2150 = vmatpush1.bf16.msra.mxu0 0
        %2151 = vmatprep.mubr.bf16.mxu0 0
        %2152 = vmatmul.mubr.bf16.gmra.mrb[0].mxu0 %v2114
        %v2153 = vpop.f32.mrb[0].mxu0
        %v2154 = vadd.f32 0.0, %v2153
        %v2155 = vpop.f32.mrb[0].mxu0
        %v2156 = vpop.f32.mrb[0].mxu0
        %v2157 = vpop.f32.mrb[0].mxu0
        %2158 = vdwg.mxu0
        %v2159 = vld [vmem:[#allocation2] sm:$0xff]
        %v2160 = vadd.f32 %v2159, %v2154
        %2161 = vst.msk [vmem:[#allocation2] sm:$0xff] %vm335, %v2160
        %v2162 = vld [vmem:[#allocation2] sm:$0xff]
        %2163 = vst.msk [vmem:[%s304] sm:$0xff] %vm335, %v2162
        %s2164 = sand.u32 %s202, 1
        %s2165 = scalar_lea.sflag [#allocation4], %s2164
        %s2166 = sand.u32 %s202, 1
        %s2167 = smul.addr %s2166, 8
        %s2168 = scalar_lea.vmem [#allocation3], %s2167
        // Predicated region
        $region49: #{tpu_custom_call.1} parent=47 // pred_check
          %p2169 = pneg %p212
        $region50: #{tpu_custom_call.1} parent=47 // pred_check_branch
          %2171 = sbr.rel (%p2169) target = $region52
        $region51: #{tpu_custom_call.1} parent=47 // pred_region
          %s2173 = ssub.s32 128, 128
          %2174 = vsyncadd %s2165, %s2173
          %s2175 = sadd.s32 %s26, %s25
          %s2176 = smul.addr %s2175, 128
          %s2177 = scalar_lea.hbm %s7, %s2176
          %s2179 = sshll.u32 %s2168, 4
          %s2180 = int_to_ptr.vmem [resolvable:$true] %s2179
          %2182 = dma.vmem_to_hbm [thread:$0]  %s2180, 128, %s2177, %s2165
        $region52: #{tpu_custom_call.1} parent=47 // pred_fallthru
          _
      $region48: #{tpu_custom_call.1} parent=5 // pred_fallthru
        _
      %p2183 = scmp.le.s32.totalorder 2, %s16
      // Predicated region
      $region53: #{tpu_custom_call.1} parent=5 // pred_check
        %p2184 = pneg %p2183
      $region54: #{tpu_custom_call.1} parent=5 // pred_check_branch
        %2186 = sbr.rel (%p2184) target = $region56
      $region55: #{tpu_custom_call.1} parent=5 // pred_region
        %s2187 = ssub.s32 %s16, 2
        // Predicated region
        $region57: #{tpu_custom_call.1} parent=55 // pred_check
          %p2188 = pneg %p218
        $region58: #{tpu_custom_call.1} parent=55 // pred_check_branch
          %2190 = sbr.rel (%p2188) target = $region60
        $region59: #{tpu_custom_call.1} parent=55 // pred_region
          %s2191 = sand.u32 %s203, 1
          %s2192 = scalar_lea.sflag [#allocation4], %s2191
          %s2193 = sand.u32 %s203, 1
          %s2194 = smul.addr %s2193, 8
          %s2195 = scalar_lea.vmem [#allocation3], %s2194
          %2196 = dma.done %s2192, 128
        $region60: #{tpu_custom_call.1} parent=55 // pred_fallthru
          _
      $region56: #{tpu_custom_call.1} parent=5 // pred_fallthru
        _
    $region6: #{tpu_custom_call.1} parent=1 // loop_footer
      %s20 = sadd.s32 1, %s16
    $region7: #{tpu_custom_call.1} parent=1 // loop_footer_branch
      %15 = sbr.rel target = $region3
    $region8: #{tpu_custom_call.1} parent=1 // loop_exit
      _
    %2197 = vsyncpa [#allocation4], 1
    %s2198 = scalar_lea.sflag [#allocation4], 1
    %2199 = vsyncpa %s2198, 1

</llo_original>
